<compile_context>
chip_gen: v5e
topology: v5e:2x2
jax: 0.10.0
libtpu: 0.0.40
codegen_flags: <defaults>
</compile_context>

<pallas_src>
import jax
import jax.numpy as jnp
from jax.experimental import pallas as pl
from jax.experimental.pallas import tpu as pltpu

H1 = 512   # shared trunk hidden
H2 = 256   # per-head hidden


def _round_up(n, m):
    return ((n + m - 1) // m) * m


# ---------------------------------------------------------------------------
# Kernel: trunk + all heads fused; bf16 matmul operands, f32 accumulation.
# ---------------------------------------------------------------------------
def multi_q_kernel(x_ref, w0_ref, b0_ref, w1_ref, b1_ref, w2_ref, b2_ref,
                   out_ref):
    # Shared trunk: (TB, obs_dim) @ (obs_dim, H1)
    h = jnp.dot(x_ref[...].astype(jnp.bfloat16), w0_ref[...],
                preferred_element_type=jnp.float32) + b0_ref[...]
    h = jnp.maximum(h, 0.0)
    # All heads' first layers fused: (TB, H1) @ (H1, A*H2) -> lane-dense N=A*256
    z = jnp.dot(h.astype(jnp.bfloat16), w1_ref[...],
                preferred_element_type=jnp.float32) + b1_ref[...]
    z = jnp.maximum(z, 0.0)
    # All heads' second layers fused via block-diagonal weights:
    # (TB, A*H2) @ (A*H2, n_pad) -> lane-dense, unmasked stores.
    o = jnp.dot(z.astype(jnp.bfloat16), w2_ref[...],
                preferred_element_type=jnp.float32) + b2_ref[...]
    out_ref[...] = o.astype(out_ref.dtype)


# ---------------------------------------------------------------------------
# One-time weight preparation (fold heads, pad lanes, cast to bf16).
# ---------------------------------------------------------------------------
def prepare_fused_params(params, *, matmul_dtype=jnp.bfloat16):
    """Fold per-head weights into fused matrices once.  Call once, reuse."""
    w0, b0, w1, b1, w2, b2 = params
    obs_dim = w0.shape[0]
    A = w1.shape[0]

    # layer 1: (A, H1, H2) -> (H1, A*H2), head i occupies cols [i*H2, (i+1)*H2)
    w1_flat = jnp.transpose(w1, (1, 0, 2)).reshape(H1, A * H2)
    b1_flat = b1.reshape(1, A * H2)

    # layer 2: block-diagonal (A*H2, n_pad); output lanes padded to 128
    n_out = A * A
    n_pad = max(128, _round_up(n_out, 128))
    eye = jnp.eye(A, dtype=w2.dtype)
    w2_bd = jnp.einsum("ahk,ab->ahbk", w2, eye).reshape(A * H2, n_out)
    w2_big = jnp.pad(w2_bd, ((0, 0), (0, n_pad - n_out)))
    b2_big = jnp.pad(b2.reshape(1, n_out), ((0, 0), (0, n_pad - n_out)))

    return dict(
        w0=w0.astype(matmul_dtype),
        b0=b0.astype(jnp.float32),
        w1=w1_flat.astype(matmul_dtype),
        b1=b1_flat.astype(jnp.float32),
        w2=w2_big.astype(matmul_dtype),
        b2=b2_big.astype(jnp.float32),
        action_dim=A, obs_dim=obs_dim, n_out=n_out, n_pad=n_pad,
    )


# ---------------------------------------------------------------------------
# Per-generation tiling / VMEM defaults.
# ---------------------------------------------------------------------------
def _chip_defaults():
    try:
        kind = jax.devices()[0].device_kind.lower()
    except Exception:
        kind = ""
    if "v5" in kind:                       # v5e: 16 MiB default scoped VMEM
        return dict(tile_b=256, vmem_limit=32 << 20, min_grid_steps=1)
    if "v7" in kind or "7x" in kind:       # v7x: 64 MiB VMEM, 2 TCs/chip
        return dict(tile_b=512, vmem_limit=48 << 20, min_grid_steps=2)
    return dict(tile_b=512, vmem_limit=64 << 20, min_grid_steps=1)   # v6e / other


def _pick_tile_b(B, requested, defaults):
    tb = defaults["tile_b"] if requested is None else requested
    tb = max(16, min(tb, _round_up(B, 16)))     # multiple of 16 (bf16-safe)
    tb = _round_up(tb, 16)
    # v7x: keep >= 2 grid steps when the batch is big enough so the "parallel"
    # batch axis actually shards across both TensorCores.
    if defaults["min_grid_steps"] > 1 and B >= 2 * 128:
        tb = min(tb, _round_up(pl.cdiv(B, 2), 16))
    return tb


def _in_specs(obs_dim, tb, A, n_pad, single_buffer_weights):
    def wspec(shape):
        idx = lambda i, _nd=len(shape): (0,) * _nd
        if single_buffer_weights:
            # Constant-index resident weights: no point double-buffering them.
            return pl.BlockSpec(shape, idx, pipeline_mode=pl.Buffered(1))
        return pl.BlockSpec(shape, idx)

    return [
        pl.BlockSpec((tb, obs_dim), lambda i: (i, 0)),   # x tile (pipelined)
        wspec((obs_dim, H1)),                            # W0
        wspec((1, H1)),                                  # b0
        wspec((H1, A * H2)),                             # W1 (fused heads)
        wspec((1, A * H2)),                              # b1 (fused heads)
        wspec((A * H2, n_pad)),                          # W2 (block-diagonal)
        wspec((1, n_pad)),                               # b2 (lane-padded)
    ]


# ---------------------------------------------------------------------------
# Forward pass.
# ---------------------------------------------------------------------------
def multi_q_forward(x, fused, *, tile_b=None):
    """Returns a list of A arrays, each (B, A) — matching the torch module."""
    B, obs_dim = x.shape
    assert obs_dim == fused["obs_dim"]
    A, n_out, n_pad = fused["action_dim"], fused["n_out"], fused["n_pad"]

    defaults = _chip_defaults()
    tb = _pick_tile_b(B, tile_b, defaults)
    grid = (pl.cdiv(B, tb),)                    # ragged last block handled by Pallas

    nk = A * H2
    cost = pl.CostEstimate(
        flops=2 * B * (obs_dim * H1 + H1 * nk + nk * n_pad),
        transcendentals=0,
        bytes_accessed=(B * obs_dim * 4 + B * n_pad * 4
                        + (obs_dim * H1 + H1 * nk + nk * n_pad) * 2
                        + (H1 + nk + n_pad) * 4),
    )

    args = (x, fused["w0"], fused["b0"], fused["w1"], fused["b1"],
            fused["w2"], fused["b2"])

    def call(single_buffer_weights):
        return pl.pallas_call(
            multi_q_kernel,
            out_shape=jax.ShapeDtypeStruct((B, n_pad), jnp.float32),
            grid=grid,
            in_specs=_in_specs(obs_dim, tb, A, n_pad, single_buffer_weights),
            out_specs=pl.BlockSpec((tb, n_pad), lambda i: (i, 0)),
            compiler_params=pltpu.CompilerParams(
                dimension_semantics=("parallel",),      # no cross-step state
                vmem_limit_bytes=defaults["vmem_limit"]),
            cost_estimate=cost,
        )(*args)

    try:
        out = call(True)      # single-buffer the resident weights (~1.3 MiB saved)
    except Exception:         # pl.Buffered(1) unsupported -> default buffering
        out = call(False)

    out = out[:, :n_out]      # drop lane padding
    return [out[:, i * A:(i + 1) * A] for i in range(A)]


# ---------------------------------------------------------------------------
# Parameter init (torch-style uniform) and pure-JAX reference.
# ---------------------------------------------------------------------------
def init_params(key, obs_dim, action_dim):
    ks = jax.random.split(key, 6)

    def u(k, shape, fan_in):
        bound = 1.0 / jnp.sqrt(float(fan_in))
        return jax.random.uniform(k, shape, jnp.float32, -bound, bound)

    A = action_dim
    w0 = u(ks[0], (obs_dim, H1), obs_dim)        # shared Linear(obs_dim, 512)
    b0 = u(ks[1], (1, H1), obs_dim)
    w1 = u(ks[2], (A, H1, H2), H1)               # per-head Linear(512, 256)
    b1 = u(ks[3], (A, 1, H2), H1)
    w2 = u(ks[4], (A, H2, A), H2)                # per-head Linear(256, A)
    b2 = u(ks[5], (A, 1, A), H2)
    return (w0, b0, w1, b1, w2, b2)


def reference_forward(x, params):
    w0, b0, w1, b1, w2, b2 = params
    h = jnp.maximum(x @ w0 + b0, 0.0)
    outs = []
    for i in range(w1.shape[0]):
        z = jnp.maximum(h @ w1[i] + b1[i], 0.0)
        outs.append(z @ w2[i] + b2[i])
    return outs


if __name__ == "__main__":
    batch, obs_dim, action_dim = 2, 32, 4

    key = jax.random.PRNGKey(0)
    k_x, k_p = jax.random.split(key)
    x = jax.random.normal(k_x, (batch, obs_dim), jnp.float32)
    params = init_params(k_p, obs_dim, action_dim)

    fused = prepare_fused_params(params)        # one-time fold + bf16 cast
    fused = jax.tree_util.tree_map(
        lambda v: jax.block_until_ready(v) if isinstance(v, jnp.ndarray) else v,
        fused)

    outs = multi_q_forward(x, fused)
    outs = [jax.block_until_ready(o) for o in outs]

    refs = reference_forward(x, params)
    for o, r in zip(outs, refs):
        assert o.shape == (batch, action_dim)
        # bf16 matmul operands with f32 accumulation -> loosened tolerance
        assert jnp.allclose(o, r, atol=3e-2, rtol=3e-2), "mismatch vs reference"

    print("KERNEL_OK")
</pallas_src>

<mosaic_0001>
module attributes {stable_mosaic.version = 11 : i64} {
  func.func @multi_q_kernel(%arg0: i32, %arg1: memref<16x32xf32, #tpu.memory_space<vmem>>, %arg2: memref<32x512xbf16, #tpu.memory_space<vmem>>, %arg3: memref<1x512xf32, #tpu.memory_space<vmem>>, %arg4: memref<512x1024xbf16, #tpu.memory_space<vmem>>, %arg5: memref<1x1024xf32, #tpu.memory_space<vmem>>, %arg6: memref<1024x128xbf16, #tpu.memory_space<vmem>>, %arg7: memref<1x128xf32, #tpu.memory_space<vmem>>, %arg8: memref<16x128xf32, #tpu.memory_space<vmem>>) attributes {dimension_semantics = [#tpu.dimension_semantics<parallel>], iteration_bounds = array<i64: 1>, scalar_prefetch = 0 : i64, scratch_operands = 0 : i64, tpu.core_type = #tpu.core_type<tc>, window_params = [{transform_indices = @transform_0, window_bounds = array<i64: 16, 32>}, {pipeline_mode = #tpu.pipeline_mode<synchronous>, transform_indices = @transform_1, window_bounds = array<i64: 32, 512>}, {pipeline_mode = #tpu.pipeline_mode<synchronous>, transform_indices = @transform_2, window_bounds = array<i64: 1, 512>}, {pipeline_mode = #tpu.pipeline_mode<synchronous>, transform_indices = @transform_3, window_bounds = array<i64: 512, 1024>}, {pipeline_mode = #tpu.pipeline_mode<synchronous>, transform_indices = @transform_4, window_bounds = array<i64: 1, 1024>}, {pipeline_mode = #tpu.pipeline_mode<synchronous>, transform_indices = @transform_5, window_bounds = array<i64: 1024, 128>}, {pipeline_mode = #tpu.pipeline_mode<synchronous>, transform_indices = @transform_6, window_bounds = array<i64: 1, 128>}, {transform_indices = @transform_7, window_bounds = array<i64: 16, 128>}]} {
    %c0 = arith.constant 0 : index
    %c0_0 = arith.constant 0 : index
    %0 = vector.load %arg1[%c0, %c0_0] : memref<16x32xf32, #tpu.memory_space<vmem>>, vector<16x32xf32>
    %1 = arith.truncf %0 : vector<16x32xf32> to vector<16x32xbf16>
    %c0_1 = arith.constant 0 : index
    %c0_2 = arith.constant 0 : index
    %2 = vector.load %arg2[%c0_1, %c0_2] : memref<32x512xbf16, #tpu.memory_space<vmem>>, vector<32x512xbf16>
    %cst = arith.constant dense<0.000000e+00> : vector<16x512xf32>
    %3 = tpu.matmul %1, %2, %cst {dimension_numbers = #tpu.dot_dimension_numbers<[1], [0], [0], [1], [0, 0, 1, 1], [], []>} : vector<16x32xbf16>, vector<32x512xbf16>, vector<16x512xf32> -> vector<16x512xf32>
    %c0_3 = arith.constant 0 : index
    %c0_4 = arith.constant 0 : index
    %4 = vector.load %arg3[%c0_3, %c0_4] : memref<1x512xf32, #tpu.memory_space<vmem>>, vector<1x512xf32>
    %5 = vector.broadcast %4 : vector<1x512xf32> to vector<16x512xf32>
    %6 = arith.addf %3, %5 : vector<16x512xf32>
    %cst_5 = arith.constant 0.000000e+00 : f32
    %7 = vector.broadcast %cst_5 : f32 to vector<16x512xf32>
    %8 = arith.maximumf %6, %7 : vector<16x512xf32>
    %9 = arith.truncf %8 : vector<16x512xf32> to vector<16x512xbf16>
    %c0_6 = arith.constant 0 : index
    %c0_7 = arith.constant 0 : index
    %10 = vector.load %arg4[%c0_6, %c0_7] : memref<512x1024xbf16, #tpu.memory_space<vmem>>, vector<512x1024xbf16>
    %cst_8 = arith.constant dense<0.000000e+00> : vector<16x1024xf32>
    %11 = tpu.matmul %9, %10, %cst_8 {dimension_numbers = #tpu.dot_dimension_numbers<[1], [0], [0], [1], [0, 0, 1, 1], [], []>} : vector<16x512xbf16>, vector<512x1024xbf16>, vector<16x1024xf32> -> vector<16x1024xf32>
    %c0_9 = arith.constant 0 : index
    %c0_10 = arith.constant 0 : index
    %12 = vector.load %arg5[%c0_9, %c0_10] : memref<1x1024xf32, #tpu.memory_space<vmem>>, vector<1x1024xf32>
    %13 = vector.broadcast %12 : vector<1x1024xf32> to vector<16x1024xf32>
    %14 = arith.addf %11, %13 : vector<16x1024xf32>
    %cst_11 = arith.constant 0.000000e+00 : f32
    %15 = vector.broadcast %cst_11 : f32 to vector<16x1024xf32>
    %16 = arith.maximumf %14, %15 : vector<16x1024xf32>
    %17 = arith.truncf %16 : vector<16x1024xf32> to vector<16x1024xbf16>
    %c0_12 = arith.constant 0 : index
    %c0_13 = arith.constant 0 : index
    %18 = vector.load %arg6[%c0_12, %c0_13] : memref<1024x128xbf16, #tpu.memory_space<vmem>>, vector<1024x128xbf16>
    %cst_14 = arith.constant dense<0.000000e+00> : vector<16x128xf32>
    %19 = tpu.matmul %17, %18, %cst_14 {dimension_numbers = #tpu.dot_dimension_numbers<[1], [0], [0], [1], [0, 0, 1, 1], [], []>} : vector<16x1024xbf16>, vector<1024x128xbf16>, vector<16x128xf32> -> vector<16x128xf32>
    %c0_15 = arith.constant 0 : index
    %c0_16 = arith.constant 0 : index
    %20 = vector.load %arg7[%c0_15, %c0_16] : memref<1x128xf32, #tpu.memory_space<vmem>>, vector<1x128xf32>
    %21 = vector.broadcast %20 : vector<1x128xf32> to vector<16x128xf32>
    %22 = arith.addf %19, %21 : vector<16x128xf32>
    %c0_17 = arith.constant 0 : index
    %c0_18 = arith.constant 0 : index
    %23 = vector.load %arg8[%c0_17, %c0_18] : memref<16x128xf32, #tpu.memory_space<vmem>>, vector<16x128xf32>
    tpu.vector_store %arg8[%c0_17, %c0_18], %22 {strides = array<i32>} : memref<16x128xf32, #tpu.memory_space<vmem>>, vector<16x128xf32>,
    return
  }
  func.func @transform_0(%arg0: i32) -> (i32, i32) {
    %c0_i32 = arith.constant 0 : i32
    %c0_i32_0 = arith.constant 0 : i32
    return %arg0, %c0_i32 : i32, i32
  }
  func.func @transform_1(%arg0: i32) -> (i32, i32) {
    %c0_i32 = arith.constant 0 : i32
    %c0_i32_0 = arith.constant 0 : i32
    %c0_i32_1 = arith.constant 0 : i32
    return %c0_i32, %c0_i32_0 : i32, i32
  }
  func.func @transform_2(%arg0: i32) -> (i32, i32) {
    %c0_i32 = arith.constant 0 : i32
    %c0_i32_0 = arith.constant 0 : i32
    %c0_i32_1 = arith.constant 0 : i32
    return %c0_i32, %c0_i32_0 : i32, i32
  }
  func.func @transform_3(%arg0: i32) -> (i32, i32) {
    %c0_i32 = arith.constant 0 : i32
    %c0_i32_0 = arith.constant 0 : i32
    %c0_i32_1 = arith.constant 0 : i32
    return %c0_i32, %c0_i32_0 : i32, i32
  }
  func.func @transform_4(%arg0: i32) -> (i32, i32) {
    %c0_i32 = arith.constant 0 : i32
    %c0_i32_0 = arith.constant 0 : i32
    %c0_i32_1 = arith.constant 0 : i32
    return %c0_i32, %c0_i32_0 : i32, i32
  }
  func.func @transform_5(%arg0: i32) -> (i32, i32) {
    %c0_i32 = arith.constant 0 : i32
    %c0_i32_0 = arith.constant 0 : i32
    %c0_i32_1 = arith.constant 0 : i32
    return %c0_i32, %c0_i32_0 : i32, i32
  }
  func.func @transform_6(%arg0: i32) -> (i32, i32) {
    %c0_i32 = arith.constant 0 : i32
    %c0_i32_0 = arith.constant 0 : i32
    %c0_i32_1 = arith.constant 0 : i32
    return %c0_i32, %c0_i32_0 : i32, i32
  }
  func.func @transform_7(%arg0: i32) -> (i32, i32) {
    %c0_i32 = arith.constant 0 : i32
    %c0_i32_0 = arith.constant 0 : i32
    return %arg0, %c0_i32 : i32, i32
  }
}

module attributes {stable_mosaic.version = 11 : i64} {
  func.func @multi_q_kernel(%arg0: i32, %arg1: memref<16x32xf32, #tpu.memory_space<vmem>>, %arg2: memref<32x512xbf16, #tpu.memory_space<vmem>>, %arg3: memref<1x512xf32, #tpu.memory_space<vmem>>, %arg4: memref<512x1024xbf16, #tpu.memory_space<vmem>>, %arg5: memref<1x1024xf32, #tpu.memory_space<vmem>>, %arg6: memref<1024x128xbf16, #tpu.memory_space<vmem>>, %arg7: memref<1x128xf32, #tpu.memory_space<vmem>>, %arg8: memref<16x128xf32, #tpu.memory_space<vmem>>) attributes {dimension_semantics = [#tpu.dimension_semantics<parallel>], iteration_bounds = array<i64: 1>, scalar_prefetch = 0 : i64, scratch_operands = 0 : i64, tpu.core_type = #tpu.core_type<tc>, window_params = [{transform_indices = @transform_0, window_bounds = array<i64: 16, 32>}, {pipeline_mode = #tpu.pipeline_mode<synchronous>, transform_indices = @transform_1, window_bounds = array<i64: 32, 512>}, {pipeline_mode = #tpu.pipeline_mode<synchronous>, transform_indices = @transform_2, window_bounds = array<i64: 1, 512>}, {pipeline_mode = #tpu.pipeline_mode<synchronous>, transform_indices = @transform_3, window_bounds = array<i64: 512, 1024>}, {pipeline_mode = #tpu.pipeline_mode<synchronous>, transform_indices = @transform_4, window_bounds = array<i64: 1, 1024>}, {pipeline_mode = #tpu.pipeline_mode<synchronous>, transform_indices = @transform_5, window_bounds = array<i64: 1024, 128>}, {pipeline_mode = #tpu.pipeline_mode<synchronous>, transform_indices = @transform_6, window_bounds = array<i64: 1, 128>}, {transform_indices = @transform_7, window_bounds = array<i64: 16, 128>}]} {
    %c0 = arith.constant 0 : index
    %c0_0 = arith.constant 0 : index
    %0 = vector.load %arg1[%c0, %c0_0] : memref<16x32xf32, #tpu.memory_space<vmem>>, vector<16x32xf32>
    %1 = arith.truncf %0 : vector<16x32xf32> to vector<16x32xbf16>
    %c0_1 = arith.constant 0 : index
    %c0_2 = arith.constant 0 : index
    %2 = vector.load %arg2[%c0_1, %c0_2] : memref<32x512xbf16, #tpu.memory_space<vmem>>, vector<32x512xbf16>
    %cst = arith.constant dense<0.000000e+00> : vector<16x512xf32>
    %3 = tpu.matmul %1, %2, %cst {dimension_numbers = #tpu.dot_dimension_numbers<[1], [0], [0], [1], [0, 0, 1, 1], [], []>} : vector<16x32xbf16>, vector<32x512xbf16>, vector<16x512xf32> -> vector<16x512xf32>
    %c0_3 = arith.constant 0 : index
    %c0_4 = arith.constant 0 : index
    %4 = vector.load %arg3[%c0_3, %c0_4] : memref<1x512xf32, #tpu.memory_space<vmem>>, vector<1x512xf32>
    %5 = vector.broadcast %4 : vector<1x512xf32> to vector<16x512xf32>
    %6 = arith.addf %3, %5 : vector<16x512xf32>
    %cst_5 = arith.constant 0.000000e+00 : f32
    %7 = vector.broadcast %cst_5 : f32 to vector<16x512xf32>
    %8 = arith.maximumf %6, %7 : vector<16x512xf32>
    %9 = arith.truncf %8 : vector<16x512xf32> to vector<16x512xbf16>
    %c0_6 = arith.constant 0 : index
    %c0_7 = arith.constant 0 : index
    %10 = vector.load %arg4[%c0_6, %c0_7] : memref<512x1024xbf16, #tpu.memory_space<vmem>>, vector<512x1024xbf16>
    %cst_8 = arith.constant dense<0.000000e+00> : vector<16x1024xf32>
    %11 = tpu.matmul %9, %10, %cst_8 {dimension_numbers = #tpu.dot_dimension_numbers<[1], [0], [0], [1], [0, 0, 1, 1], [], []>} : vector<16x512xbf16>, vector<512x1024xbf16>, vector<16x1024xf32> -> vector<16x1024xf32>
    %c0_9 = arith.constant 0 : index
    %c0_10 = arith.constant 0 : index
    %12 = vector.load %arg5[%c0_9, %c0_10] : memref<1x1024xf32, #tpu.memory_space<vmem>>, vector<1x1024xf32>
    %13 = vector.broadcast %12 : vector<1x1024xf32> to vector<16x1024xf32>
    %14 = arith.addf %11, %13 : vector<16x1024xf32>
    %cst_11 = arith.constant 0.000000e+00 : f32
    %15 = vector.broadcast %cst_11 : f32 to vector<16x1024xf32>
    %16 = arith.maximumf %14, %15 : vector<16x1024xf32>
    %17 = arith.truncf %16 : vector<16x1024xf32> to vector<16x1024xbf16>
    %c0_12 = arith.constant 0 : index
    %c0_13 = arith.constant 0 : index
    %18 = vector.load %arg6[%c0_12, %c0_13] : memref<1024x128xbf16, #tpu.memory_space<vmem>>, vector<1024x128xbf16>
    %cst_14 = arith.constant dense<0.000000e+00> : vector<16x128xf32>
    %19 = tpu.matmul %17, %18, %cst_14 {dimension_numbers = #tpu.dot_dimension_numbers<[1], [0], [0], [1], [0, 0, 1, 1], [], []>} : vector<16x1024xbf16>, vector<1024x128xbf16>, vector<16x128xf32> -> vector<16x128xf32>
    %c0_15 = arith.constant 0 : index
    %c0_16 = arith.constant 0 : index
    %20 = vector.load %arg7[%c0_15, %c0_16] : memref<1x128xf32, #tpu.memory_space<vmem>>, vector<1x128xf32>
    %21 = vector.broadcast %20 : vector<1x128xf32> to vector<16x128xf32>
    %22 = arith.addf %19, %21 : vector<16x128xf32>
    %c0_17 = arith.constant 0 : index
    %c0_18 = arith.constant 0 : index
    %23 = vector.load %arg8[%c0_17, %c0_18] : memref<16x128xf32, #tpu.memory_space<vmem>>, vector<16x128xf32>
    tpu.vector_store %arg8[%c0_17, %c0_18], %22 {strides = array<i32>} : memref<16x128xf32, #tpu.memory_space<vmem>>, vector<16x128xf32>,
    return
  }
  func.func @transform_0(%arg0: i32) -> (i32, i32) {
    %c0_i32 = arith.constant 0 : i32
    %c0_i32_0 = arith.constant 0 : i32
    return %arg0, %c0_i32 : i32, i32
  }
  func.func @transform_1(%arg0: i32) -> (i32, i32) {
    %c0_i32 = arith.constant 0 : i32
    %c0_i32_0 = arith.constant 0 : i32
    %c0_i32_1 = arith.constant 0 : i32
    return %c0_i32, %c0_i32_0 : i32, i32
  }
  func.func @transform_2(%arg0: i32) -> (i32, i32) {
    %c0_i32 = arith.constant 0 : i32
    %c0_i32_0 = arith.constant 0 : i32
    %c0_i32_1 = arith.constant 0 : i32
    return %c0_i32, %c0_i32_0 : i32, i32
  }
  func.func @transform_3(%arg0: i32) -> (i32, i32) {
    %c0_i32 = arith.constant 0 : i32
    %c0_i32_0 = arith.constant 0 : i32
    %c0_i32_1 = arith.constant 0 : i32
    return %c0_i32, %c0_i32_0 : i32, i32
  }
  func.func @transform_4(%arg0: i32) -> (i32, i32) {
    %c0_i32 = arith.constant 0 : i32
    %c0_i32_0 = arith.constant 0 : i32
    %c0_i32_1 = arith.constant 0 : i32
    return %c0_i32, %c0_i32_0 : i32, i32
  }
  func.func @transform_5(%arg0: i32) -> (i32, i32) {
    %c0_i32 = arith.constant 0 : i32
    %c0_i32_0 = arith.constant 0 : i32
    %c0_i32_1 = arith.constant 0 : i32
    return %c0_i32, %c0_i32_0 : i32, i32
  }
  func.func @transform_6(%arg0: i32) -> (i32, i32) {
    %c0_i32 = arith.constant 0 : i32
    %c0_i32_0 = arith.constant 0 : i32
    %c0_i32_1 = arith.constant 0 : i32
    return %c0_i32, %c0_i32_0 : i32, i32
  }
  func.func @transform_7(%arg0: i32) -> (i32, i32) {
    %c0_i32 = arith.constant 0 : i32
    %c0_i32_0 = arith.constant 0 : i32
    return %arg0, %c0_i32 : i32, i32
  }
}

</mosaic_0001>

<llo_original>
// kernel: tpu_custom_call.1
$region0: #{tpu_custom_call.1}
  #allocation0 [shape = 'u32[]', space=smem, size = 0x4, offset = 0x4, fixed_abs, tag = 'smem constant byte address 0x4 - core index']
  #allocation1 [shape = 'u32[72,128]{1,0:T(1,128)}', space=vmem, size = 0x9000, scoped, tag = 'internal scratch']
  %s0 = inlined_call_operand.hbm [shape: f32[2,32], index: 0, kind: input, shape index: {}]
  %s1 = inlined_call_operand.hbm [shape: bf16[32,512], index: 1, kind: input, shape index: {}]
  %s2 = inlined_call_operand.hbm [shape: f32[1,512], index: 2, kind: input, shape index: {}]
  %s3 = inlined_call_operand.hbm [shape: bf16[512,1024], index: 3, kind: input, shape index: {}]
  %s4 = inlined_call_operand.hbm [shape: f32[1,1024], index: 4, kind: input, shape index: {}]
  %s5 = inlined_call_operand.hbm [shape: bf16[1024,128], index: 5, kind: input, shape index: {}]
  %s6 = inlined_call_operand.vmem [shape: f32[1,128], index: 6, kind: input, shape index: {}]
  %s7 = inlined_call_operand.hbm [shape: f32[2,128], index: 7, kind: output, shape index: {}]
  %s8 = sld [smem:[#allocation0]]
  $region62: #{tpu_custom_call.1} parent=0
    _
  %s10 = ssub.s32 1, %s8
  %s11 = scalar_select 0, %s10, %s8
  $region1: #{tpu_custom_call.1} parent=0
    #allocation2 [shape = 'u8[8192]{0}', space=vmem, size = 0x2000, scoped, tag = 'input window, operand 0, single buffered']
    #allocation3 [shape = 's32[1]{0}', space=sflag, size = 0x4, scoped, tag = 'scoped memory for tpu_custom_call.1']
    #allocation4 [shape = 's32[1]{0}', space=sflag, size = 0x4, scoped, tag = 'scoped memory for tpu_custom_call.1']
    #allocation5 [shape = 'u8[32768]{0}', space=vmem, size = 0x8000, scoped, tag = 'input window, operand 1, single buffered']
    #allocation6 [shape = 's32[1]{0}', space=sflag, size = 0x4, scoped, tag = 'scoped memory for tpu_custom_call.1']
    #allocation7 [shape = 'u8[2048]{0}', space=vmem, size = 0x800, scoped, tag = 'input window, operand 2, single buffered']
    #allocation8 [shape = 'u8[1048576]{0}', space=vmem, size = 0x100000, scoped, tag = 'input window, operand 3, single buffered']
    #allocation9 [shape = 's32[1]{0}', space=sflag, size = 0x4, scoped, tag = 'scoped memory for tpu_custom_call.1']
    #allocation10 [shape = 'u8[4096]{0}', space=vmem, size = 0x1000, scoped, tag = 'input window, operand 4, single buffered']
    #allocation11 [shape = 'u8[262144]{0}', space=vmem, size = 0x40000, scoped, tag = 'input window, operand 5, single buffered']
    #allocation12 [shape = 's32[1]{0}', space=sflag, size = 0x4, scoped, tag = 'scoped memory for tpu_custom_call.1']
    #allocation13 [shape = 'u8[8192]{0}', space=vmem, size = 0x2000, scoped, tag = 'output window, operand 0, single buffered']
    %12 = vsyncpa [#allocation3], 0
    %13 = vsyncpa [#allocation6], 0
    %14 = vsyncpa [#allocation9], 0
    %15 = vsyncpa [#allocation12], 0
    %16 = vsyncpa [#allocation4], 0
    // Predicated region
    $region2: #{tpu_custom_call.1} parent=1 // pred_check
      _
    $region3: #{tpu_custom_call.1} parent=1 // pred_check_branch
      %18 = sbr.rel (0) target = $region5
    $region4: #{tpu_custom_call.1} parent=1 // pred_region
      %20 = vsyncadd [#allocation3], 224
      %s21 = sshll.u32 %s0, 4
      %s22 = int_to_ptr.hbm [resolvable:$true] %s21
      %s23 = sshll.u32 [#allocation2], 4
      %s24 = int_to_ptr.vmem [resolvable:$true] %s23
      %29 = dma.hbm_to_vmem [thread:$0]  %s22, 32, %s24, [#allocation3], 32, 32, 2
    $region5: #{tpu_custom_call.1} parent=1 // pred_fallthru
      _
    // Predicated region
    $region6: #{tpu_custom_call.1} parent=1 // pred_check
      _
    $region7: #{tpu_custom_call.1} parent=1 // pred_check_branch
      %31 = sbr.rel (0) target = $region9
    $region8: #{tpu_custom_call.1} parent=1 // pred_region
      %33 = vsyncadd [#allocation6], 0
      %s34 = sshll.u32 %s1, 4
      %s35 = int_to_ptr.hbm [resolvable:$true] %s34
      %s36 = sshll.u32 [#allocation5], 4
      %s37 = int_to_ptr.vmem [resolvable:$true] %s36
      %42 = dma.hbm_to_vmem [thread:$0]  %s35, 1024, %s37, [#allocation6], 256, 256, 16
    $region9: #{tpu_custom_call.1} parent=1 // pred_fallthru
      _
    // Predicated region
    $region10: #{tpu_custom_call.1} parent=1 // pred_check
      _
    $region11: #{tpu_custom_call.1} parent=1 // pred_check_branch
      %44 = sbr.rel (0) target = $region13
    $region12: #{tpu_custom_call.1} parent=1 // pred_region
      %46 = vsyncadd [#allocation6], 0
      %s48 = sshll.u32 %s2, 4
      %s49 = int_to_ptr.hbm [resolvable:$true] %s48
      %s50 = sshll.u32 [#allocation7], 4
      %s51 = int_to_ptr.vmem [resolvable:$true] %s50
      %53 = dma.hbm_to_vmem [thread:$0]  %s49, 64, %s51, [#allocation6]
    $region13: #{tpu_custom_call.1} parent=1 // pred_fallthru
      _
    // Predicated region
    $region14: #{tpu_custom_call.1} parent=1 // pred_check
      _
    $region15: #{tpu_custom_call.1} parent=1 // pred_check_branch
      %55 = sbr.rel (0) target = $region17
    $region16: #{tpu_custom_call.1} parent=1 // pred_region
      %57 = vsyncadd [#allocation9], 0
      %s58 = sshll.u32 %s3, 4
      %s59 = int_to_ptr.hbm [resolvable:$true] %s58
      %s60 = sshll.u32 [#allocation8], 4
      %s61 = int_to_ptr.vmem [resolvable:$true] %s60
      %66 = dma.hbm_to_vmem [thread:$0]  %s59, 32768, %s61, [#allocation9], 512, 512, 32
    $region17: #{tpu_custom_call.1} parent=1 // pred_fallthru
      _
    // Predicated region
    $region18: #{tpu_custom_call.1} parent=1 // pred_check
      _
    $region19: #{tpu_custom_call.1} parent=1 // pred_check_branch
      %68 = sbr.rel (0) target = $region21
    $region20: #{tpu_custom_call.1} parent=1 // pred_region
      %70 = vsyncadd [#allocation9], 0
      %s72 = sshll.u32 %s4, 4
      %s73 = int_to_ptr.hbm [resolvable:$true] %s72
      %s74 = sshll.u32 [#allocation10], 4
      %s75 = int_to_ptr.vmem [resolvable:$true] %s74
      %77 = dma.hbm_to_vmem [thread:$0]  %s73, 128, %s75, [#allocation9]
    $region21: #{tpu_custom_call.1} parent=1 // pred_fallthru
      _
    // Predicated region
    $region22: #{tpu_custom_call.1} parent=1 // pred_check
      _
    $region23: #{tpu_custom_call.1} parent=1 // pred_check_branch
      %79 = sbr.rel (0) target = $region25
    $region24: #{tpu_custom_call.1} parent=1 // pred_region
      %81 = vsyncadd [#allocation12], 0
      %s82 = sshll.u32 %s5, 4
      %s83 = int_to_ptr.hbm [resolvable:$true] %s82
      %s84 = sshll.u32 [#allocation11], 4
      %s85 = int_to_ptr.vmem [resolvable:$true] %s84
      %90 = dma.hbm_to_vmem [thread:$0]  %s83, 8192, %s85, [#allocation12], 64, 64, 4
    $region25: #{tpu_custom_call.1} parent=1 // pred_fallthru
      _
    // Predicated region
    $region26: #{tpu_custom_call.1} parent=1 // pred_check
      _
    $region27: #{tpu_custom_call.1} parent=1 // pred_check_branch
      %92 = sbr.rel (0) target = $region29
    $region28: #{tpu_custom_call.1} parent=1 // pred_region
      _
    $region29: #{tpu_custom_call.1} parent=1 // pred_fallthru
      _
    // Predicated region
    $region30: #{tpu_custom_call.1} parent=1 // pred_check
      _
    $region31: #{tpu_custom_call.1} parent=1 // pred_check_branch
      %94 = sbr.rel (0) target = $region33
    $region32: #{tpu_custom_call.1} parent=1 // pred_region
      %96 = dma.done [#allocation3], 256
    $region33: #{tpu_custom_call.1} parent=1 // pred_fallthru
      _
    // Predicated region
    $region34: #{tpu_custom_call.1} parent=1 // pred_check
      _
    $region35: #{tpu_custom_call.1} parent=1 // pred_check_branch
      %98 = sbr.rel (0) target = $region37
    $region36: #{tpu_custom_call.1} parent=1 // pred_region
      %100 = dma.done [#allocation6], 1024
    $region37: #{tpu_custom_call.1} parent=1 // pred_fallthru
      _
    // Predicated region
    $region38: #{tpu_custom_call.1} parent=1 // pred_check
      _
    $region39: #{tpu_custom_call.1} parent=1 // pred_check_branch
      %102 = sbr.rel (0) target = $region41
    $region40: #{tpu_custom_call.1} parent=1 // pred_region
      %104 = dma.done [#allocation6], 64
    $region41: #{tpu_custom_call.1} parent=1 // pred_fallthru
      _
    // Predicated region
    $region42: #{tpu_custom_call.1} parent=1 // pred_check
      _
    $region43: #{tpu_custom_call.1} parent=1 // pred_check_branch
      %106 = sbr.rel (0) target = $region45
    $region44: #{tpu_custom_call.1} parent=1 // pred_region
      %108 = dma.done [#allocation9], 32768
    $region45: #{tpu_custom_call.1} parent=1 // pred_fallthru
      _
    // Predicated region
    $region46: #{tpu_custom_call.1} parent=1 // pred_check
      _
    $region47: #{tpu_custom_call.1} parent=1 // pred_check_branch
      %110 = sbr.rel (0) target = $region49
    $region48: #{tpu_custom_call.1} parent=1 // pred_region
      %112 = dma.done [#allocation9], 128
    $region49: #{tpu_custom_call.1} parent=1 // pred_fallthru
      _
    // Predicated region
    $region50: #{tpu_custom_call.1} parent=1 // pred_check
      _
    $region51: #{tpu_custom_call.1} parent=1 // pred_check_branch
      %114 = sbr.rel (0) target = $region53
    $region52: #{tpu_custom_call.1} parent=1 // pred_region
      %116 = dma.done [#allocation12], 8192
    $region53: #{tpu_custom_call.1} parent=1 // pred_fallthru
      _
    %v118 = vld [vmem:[#allocation2] sm:$0xff]
    %v119 = vld [vmem:[#allocation2 + $0x8] sm:$0xff]
    %v120 = vpack.c.bf16 %v119, %v118
    %v121 = vld [vmem:[#allocation5] sm:$0xff]
    %v122 = vld [vmem:[#allocation5 + $0x8] sm:$0xff]
    %v123 = vld [vmem:[#allocation5 + $0x10] sm:$0xff]
    %v124 = vld [vmem:[#allocation5 + $0x18] sm:$0xff]
    %v125 = vld [vmem:[#allocation5 + $0x20] sm:$0xff]
    %v126 = vld [vmem:[#allocation5 + $0x28] sm:$0xff]
    %v127 = vld [vmem:[#allocation5 + $0x30] sm:$0xff]
    %v128 = vld [vmem:[#allocation5 + $0x38] sm:$0xff]
    %v129 = vld [vmem:[#allocation7] sm:$0xf]
    %v131 = vperm.slane %v129, 0
    %v132 = vperm.slane %v129, 1
    %v133 = vperm.slane %v129, 2
    %v134 = vperm.slane %v129, 3
    %v147 = vunpack.c.l.b16 %v121
    %v148 = vunpack.c.h.b16 %v121
    %v149 = vunpack.c.l.b16 %v122
    %v150 = vunpack.c.h.b16 %v122
    %v151 = vunpack.c.l.b16 %v123
    %v152 = vunpack.c.h.b16 %v123
    %v153 = vunpack.c.l.b16 %v124
    %v154 = vunpack.c.h.b16 %v124
    %v155 = vunpack.c.l.b16 %v125
    %v156 = vunpack.c.h.b16 %v125
    %v157 = vunpack.c.l.b16 %v126
    %v158 = vunpack.c.h.b16 %v126
    %v159 = vunpack.c.l.b16 %v127
    %v160 = vunpack.c.h.b16 %v127
    %v161 = vunpack.c.l.b16 %v128
    %v162 = vunpack.c.h.b16 %v128
    %v163 = vpack.c.b16 %v151, %v147
    %v164 = vpack.c.b16 %v152, %v148
    %v165 = vpack.c.b16 %v153, %v149
    %v166 = vpack.c.b16 %v154, %v150
    %v167 = vpack.c.b16 %v159, %v155
    %v168 = vpack.c.b16 %v160, %v156
    %v169 = vpack.c.b16 %v161, %v157
    %v170 = vpack.c.b16 %v162, %v158
    %vm179 = vcmask 261120
    %v181 = vsel %vm179, %v120, 0
    %183 = vmatpush.bf16.msra.mxu0 0
    %184 = vmatpush.bf16.msra.mxu0 0
    %185 = vmatpush.bf16.msra.mxu0 0
    %186 = vmatpush.bf16.msra.mxu0 0
    %187 = vmatpush.bf16.msra.mxu0 0
    %188 = vmatpush.bf16.msra.mxu0 0
    %189 = vmatpush.bf16.msra.mxu0 %v167
    %190 = vmatpush.bf16.msra.mxu0 %v163
    %191 = vmatmul.bf16.gmra.mxu0 %v181
    %v192 = vpop.f32.mrf.mxu0
    %v193 = vadd.f32 %v131, %v192
    %v194 = vpop.f32.mrf.mxu0
    %v195 = vadd.f32 %v131, %v194
    %196 = vdwg.mxu0
    %197 = vmatpush.bf16.msra.mxu0 0
    %198 = vmatpush.bf16.msra.mxu0 0
    %199 = vmatpush.bf16.msra.mxu0 0
    %200 = vmatpush.bf16.msra.mxu0 0
    %201 = vmatpush.bf16.msra.mxu0 0
    %202 = vmatpush.bf16.msra.mxu0 0
    %203 = vmatpush.bf16.msra.mxu0 %v168
    %204 = vmatpush.bf16.msra.mxu0 %v164
    %205 = vmatmul.bf16.gmra.mxu0 %v181
    %v206 = vpop.f32.mrf.mxu0
    %v207 = vadd.f32 %v132, %v206
    %v208 = vpop.f32.mrf.mxu0
    %v209 = vadd.f32 %v132, %v208
    %210 = vdwg.mxu0
    %211 = vmatpush.bf16.msra.mxu0 0
    %212 = vmatpush.bf16.msra.mxu0 0
    %213 = vmatpush.bf16.msra.mxu0 0
    %214 = vmatpush.bf16.msra.mxu0 0
    %215 = vmatpush.bf16.msra.mxu0 0
    %216 = vmatpush.bf16.msra.mxu0 0
    %217 = vmatpush.bf16.msra.mxu0 %v169
    %218 = vmatpush.bf16.msra.mxu0 %v165
    %219 = vmatmul.bf16.gmra.mxu0 %v181
    %v220 = vpop.f32.mrf.mxu0
    %v221 = vadd.f32 %v133, %v220
    %v222 = vpop.f32.mrf.mxu0
    %v223 = vadd.f32 %v133, %v222
    %224 = vdwg.mxu0
    %225 = vmatpush.bf16.msra.mxu0 0
    %226 = vmatpush.bf16.msra.mxu0 0
    %227 = vmatpush.bf16.msra.mxu0 0
    %228 = vmatpush.bf16.msra.mxu0 0
    %229 = vmatpush.bf16.msra.mxu0 0
    %230 = vmatpush.bf16.msra.mxu0 0
    %231 = vmatpush.bf16.msra.mxu0 %v170
    %232 = vmatpush.bf16.msra.mxu0 %v166
    %233 = vmatmul.bf16.gmra.mxu0 %v181
    %v234 = vpop.f32.mrf.mxu0
    %v235 = vadd.f32 %v134, %v234
    %v236 = vpop.f32.mrf.mxu0
    %v237 = vadd.f32 %v134, %v236
    %238 = vdwg.mxu0
    %v239 = vmax.f32 %v193, 0.0
    %v240 = vmax.f32 %v207, 0.0
    %v241 = vmax.f32 %v221, 0.0
    %v242 = vmax.f32 %v235, 0.0
    %v243 = vmax.f32 %v195, 0.0
    %v244 = vmax.f32 %v209, 0.0
    %v245 = vmax.f32 %v223, 0.0
    %v246 = vmax.f32 %v237, 0.0
    %v247 = vpack.c.bf16 %v243, %v239
    %v248 = vpack.c.bf16 %v244, %v240
    %v249 = vpack.c.bf16 %v245, %v241
    %v250 = vpack.c.bf16 %v246, %v242
    %v251 = vld [vmem:[#allocation8] sm:$0xff]
    %v252 = vld [vmem:[#allocation8 + $0x8] sm:$0xff]
    %v253 = vld [vmem:[#allocation8 + $0x10] sm:$0xff]
    %v254 = vld [vmem:[#allocation8 + $0x18] sm:$0xff]
    %v255 = vld [vmem:[#allocation8 + $0x20] sm:$0xff]
    %v256 = vld [vmem:[#allocation8 + $0x28] sm:$0xff]
    %v257 = vld [vmem:[#allocation8 + $0x30] sm:$0xff]
    %v258 = vld [vmem:[#allocation8 + $0x38] sm:$0xff]
    %v259 = vld [vmem:[#allocation8 + $0x40] sm:$0xff]
    %v260 = vld [vmem:[#allocation8 + $0x48] sm:$0xff]
    %v261 = vld [vmem:[#allocation8 + $0x50] sm:$0xff]
    %v262 = vld [vmem:[#allocation8 + $0x58] sm:$0xff]
    %v263 = vld [vmem:[#allocation8 + $0x60] sm:$0xff]
    %v264 = vld [vmem:[#allocation8 + $0x68] sm:$0xff]
    %v265 = vld [vmem:[#allocation8 + $0x70] sm:$0xff]
    %v266 = vld [vmem:[#allocation8 + $0x78] sm:$0xff]
    %v267 = vld [vmem:[#allocation8 + $0x80] sm:$0xff]
    %v268 = vld [vmem:[#allocation8 + $0x88] sm:$0xff]
    %v269 = vld [vmem:[#allocation8 + $0x90] sm:$0xff]
    %v270 = vld [vmem:[#allocation8 + $0x98] sm:$0xff]
    %v271 = vld [vmem:[#allocation8 + $0xa0] sm:$0xff]
    %v272 = vld [vmem:[#allocation8 + $0xa8] sm:$0xff]
    %v273 = vld [vmem:[#allocation8 + $0xb0] sm:$0xff]
    %v274 = vld [vmem:[#allocation8 + $0xb8] sm:$0xff]
    %v275 = vld [vmem:[#allocation8 + $0xc0] sm:$0xff]
    %v276 = vld [vmem:[#allocation8 + $0xc8] sm:$0xff]
    %v277 = vld [vmem:[#allocation8 + $0xd0] sm:$0xff]
    %v278 = vld [vmem:[#allocation8 + $0xd8] sm:$0xff]
    %v279 = vld [vmem:[#allocation8 + $0xe0] sm:$0xff]
    %v280 = vld [vmem:[#allocation8 + $0xe8] sm:$0xff]
    %v281 = vld [vmem:[#allocation8 + $0xf0] sm:$0xff]
    %v282 = vld [vmem:[#allocation8 + $0xf8] sm:$0xff]
    %v283 = vld [vmem:[#allocation8 + $0x100] sm:$0xff]
    %v284 = vld [vmem:[#allocation8 + $0x108] sm:$0xff]
    %v285 = vld [vmem:[#allocation8 + $0x110] sm:$0xff]
    %v286 = vld [vmem:[#allocation8 + $0x118] sm:$0xff]
    %v287 = vld [vmem:[#allocation8 + $0x120] sm:$0xff]
    %v288 = vld [vmem:[#allocation8 + $0x128] sm:$0xff]
    %v289 = vld [vmem:[#allocation8 + $0x130] sm:$0xff]
    %v290 = vld [vmem:[#allocation8 + $0x138] sm:$0xff]
    %v291 = vld [vmem:[#allocation8 + $0x140] sm:$0xff]
    %v292 = vld [vmem:[#allocation8 + $0x148] sm:$0xff]
    %v293 = vld [vmem:[#allocation8 + $0x150] sm:$0xff]
    %v294 = vld [vmem:[#allocation8 + $0x158] sm:$0xff]
    %v295 = vld [vmem:[#allocation8 + $0x160] sm:$0xff]
    %v296 = vld [vmem:[#allocation8 + $0x168] sm:$0xff]
    %v297 = vld [vmem:[#allocation8 + $0x170] sm:$0xff]
    %v298 = vld [vmem:[#allocation8 + $0x178] sm:$0xff]
    %v299 = vld [vmem:[#allocation8 + $0x180] sm:$0xff]
    %v300 = vld [vmem:[#allocation8 + $0x188] sm:$0xff]
    %v301 = vld [vmem:[#allocation8 + $0x190] sm:$0xff]
    %v302 = vld [vmem:[#allocation8 + $0x198] sm:$0xff]
    %v303 = vld [vmem:[#allocation8 + $0x1a0] sm:$0xff]
    %v304 = vld [vmem:[#allocation8 + $0x1a8] sm:$0xff]
    %v305 = vld [vmem:[#allocation8 + $0x1b0] sm:$0xff]
    %v306 = vld [vmem:[#allocation8 + $0x1b8] sm:$0xff]
    %v307 = vld [vmem:[#allocation8 + $0x1c0] sm:$0xff]
    %v308 = vld [vmem:[#allocation8 + $0x1c8] sm:$0xff]
    %v309 = vld [vmem:[#allocation8 + $0x1d0] sm:$0xff]
    %v310 = vld [vmem:[#allocation8 + $0x1d8] sm:$0xff]
    %v311 = vld [vmem:[#allocation8 + $0x1e0] sm:$0xff]
    %v312 = vld [vmem:[#allocation8 + $0x1e8] sm:$0xff]
    %v313 = vld [vmem:[#allocation8 + $0x1f0] sm:$0xff]
    %v314 = vld [vmem:[#allocation8 + $0x1f8] sm:$0xff]
    %v315 = vld [vmem:[#allocation8 + $0x200] sm:$0xff]
    %v316 = vld [vmem:[#allocation8 + $0x208] sm:$0xff]
    %v317 = vld [vmem:[#allocation8 + $0x210] sm:$0xff]
    %v318 = vld [vmem:[#allocation8 + $0x218] sm:$0xff]
    %v319 = vld [vmem:[#allocation8 + $0x220] sm:$0xff]
    %v320 = vld [vmem:[#allocation8 + $0x228] sm:$0xff]
    %v321 = vld [vmem:[#allocation8 + $0x230] sm:$0xff]
    %v322 = vld [vmem:[#allocation8 + $0x238] sm:$0xff]
    %v323 = vld [vmem:[#allocation8 + $0x240] sm:$0xff]
    %v324 = vld [vmem:[#allocation8 + $0x248] sm:$0xff]
    %v325 = vld [vmem:[#allocation8 + $0x250] sm:$0xff]
    %v326 = vld [vmem:[#allocation8 + $0x258] sm:$0xff]
    %v327 = vld [vmem:[#allocation8 + $0x260] sm:$0xff]
    %v328 = vld [vmem:[#allocation8 + $0x268] sm:$0xff]
    %v329 = vld [vmem:[#allocation8 + $0x270] sm:$0xff]
    %v330 = vld [vmem:[#allocation8 + $0x278] sm:$0xff]
    %v331 = vld [vmem:[#allocation8 + $0x280] sm:$0xff]
    %v332 = vld [vmem:[#allocation8 + $0x288] sm:$0xff]
    %v333 = vld [vmem:[#allocation8 + $0x290] sm:$0xff]
    %v334 = vld [vmem:[#allocation8 + $0x298] sm:$0xff]
    %v335 = vld [vmem:[#allocation8 + $0x2a0] sm:$0xff]
    %v336 = vld [vmem:[#allocation8 + $0x2a8] sm:$0xff]
    %v337 = vld [vmem:[#allocation8 + $0x2b0] sm:$0xff]
    %v338 = vld [vmem:[#allocation8 + $0x2b8] sm:$0xff]
    %v339 = vld [vmem:[#allocation8 + $0x2c0] sm:$0xff]
    %v340 = vld [vmem:[#allocation8 + $0x2c8] sm:$0xff]
    %v341 = vld [vmem:[#allocation8 + $0x2d0] sm:$0xff]
    %v342 = vld [vmem:[#allocation8 + $0x2d8] sm:$0xff]
    %v343 = vld [vmem:[#allocation8 + $0x2e0] sm:$0xff]
    %v344 = vld [vmem:[#allocation8 + $0x2e8] sm:$0xff]
    %v345 = vld [vmem:[#allocation8 + $0x2f0] sm:$0xff]
    %v346 = vld [vmem:[#allocation8 + $0x2f8] sm:$0xff]
    %v347 = vld [vmem:[#allocation8 + $0x300] sm:$0xff]
    %v348 = vld [vmem:[#allocation8 + $0x308] sm:$0xff]
    %v349 = vld [vmem:[#allocation8 + $0x310] sm:$0xff]
    %v350 = vld [vmem:[#allocation8 + $0x318] sm:$0xff]
    %v351 = vld [vmem:[#allocation8 + $0x320] sm:$0xff]
    %v352 = vld [vmem:[#allocation8 + $0x328] sm:$0xff]
    %v353 = vld [vmem:[#allocation8 + $0x330] sm:$0xff]
    %v354 = vld [vmem:[#allocation8 + $0x338] sm:$0xff]
    %v355 = vld [vmem:[#allocation8 + $0x340] sm:$0xff]
    %v356 = vld [vmem:[#allocation8 + $0x348] sm:$0xff]
    %v357 = vld [vmem:[#allocation8 + $0x350] sm:$0xff]
    %v358 = vld [vmem:[#allocation8 + $0x358] sm:$0xff]
    %v359 = vld [vmem:[#allocation8 + $0x360] sm:$0xff]
    %v360 = vld [vmem:[#allocation8 + $0x368] sm:$0xff]
    %v361 = vld [vmem:[#allocation8 + $0x370] sm:$0xff]
    %v362 = vld [vmem:[#allocation8 + $0x378] sm:$0xff]
    %v363 = vld [vmem:[#allocation8 + $0x380] sm:$0xff]
    %v364 = vld [vmem:[#allocation8 + $0x388] sm:$0xff]
    %v365 = vld [vmem:[#allocation8 + $0x390] sm:$0xff]
    %v366 = vld [vmem:[#allocation8 + $0x398] sm:$0xff]
    %v367 = vld [vmem:[#allocation8 + $0x3a0] sm:$0xff]
    %v368 = vld [vmem:[#allocation8 + $0x3a8] sm:$0xff]
    %v369 = vld [vmem:[#allocation8 + $0x3b0] sm:$0xff]
    %v370 = vld [vmem:[#allocation8 + $0x3b8] sm:$0xff]
    %v371 = vld [vmem:[#allocation8 + $0x3c0] sm:$0xff]
    %v372 = vld [vmem:[#allocation8 + $0x3c8] sm:$0xff]
    %v373 = vld [vmem:[#allocation8 + $0x3d0] sm:$0xff]
    %v374 = vld [vmem:[#allocation8 + $0x3d8] sm:$0xff]
    %v375 = vld [vmem:[#allocation8 + $0x3e0] sm:$0xff]
    %v376 = vld [vmem:[#allocation8 + $0x3e8] sm:$0xff]
    %v377 = vld [vmem:[#allocation8 + $0x3f0] sm:$0xff]
    %v378 = vld [vmem:[#allocation8 + $0x3f8] sm:$0xff]
    %v379 = vld [vmem:[#allocation8 + $0x400] sm:$0xff]
    %v380 = vld [vmem:[#allocation8 + $0x408] sm:$0xff]
    %v381 = vld [vmem:[#allocation8 + $0x410] sm:$0xff]
    %v382 = vld [vmem:[#allocation8 + $0x418] sm:$0xff]
    %v383 = vld [vmem:[#allocation8 + $0x420] sm:$0xff]
    %v384 = vld [vmem:[#allocation8 + $0x428] sm:$0xff]
    %v385 = vld [vmem:[#allocation8 + $0x430] sm:$0xff]
    %v386 = vld [vmem:[#allocation8 + $0x438] sm:$0xff]
    %v387 = vld [vmem:[#allocation8 + $0x440] sm:$0xff]
    %v388 = vld [vmem:[#allocation8 + $0x448] sm:$0xff]
    %v389 = vld [vmem:[#allocation8 + $0x450] sm:$0xff]
    %v390 = vld [vmem:[#allocation8 + $0x458] sm:$0xff]
    %v391 = vld [vmem:[#allocation8 + $0x460] sm:$0xff]
    %v392 = vld [vmem:[#allocation8 + $0x468] sm:$0xff]
    %v393 = vld [vmem:[#allocation8 + $0x470] sm:$0xff]
    %v394 = vld [vmem:[#allocation8 + $0x478] sm:$0xff]
    %v395 = vld [vmem:[#allocation8 + $0x480] sm:$0xff]
    %v396 = vld [vmem:[#allocation8 + $0x488] sm:$0xff]
    %v397 = vld [vmem:[#allocation8 + $0x490] sm:$0xff]
    %v398 = vld [vmem:[#allocation8 + $0x498] sm:$0xff]
    %v399 = vld [vmem:[#allocation8 + $0x4a0] sm:$0xff]
    %v400 = vld [vmem:[#allocation8 + $0x4a8] sm:$0xff]
    %v401 = vld [vmem:[#allocation8 + $0x4b0] sm:$0xff]
    %v402 = vld [vmem:[#allocation8 + $0x4b8] sm:$0xff]
    %v403 = vld [vmem:[#allocation8 + $0x4c0] sm:$0xff]
    %v404 = vld [vmem:[#allocation8 + $0x4c8] sm:$0xff]
    %v405 = vld [vmem:[#allocation8 + $0x4d0] sm:$0xff]
    %v406 = vld [vmem:[#allocation8 + $0x4d8] sm:$0xff]
    %v407 = vld [vmem:[#allocation8 + $0x4e0] sm:$0xff]
    %v408 = vld [vmem:[#allocation8 + $0x4e8] sm:$0xff]
    %v409 = vld [vmem:[#allocation8 + $0x4f0] sm:$0xff]
    %v410 = vld [vmem:[#allocation8 + $0x4f8] sm:$0xff]
    %v411 = vld [vmem:[#allocation8 + $0x500] sm:$0xff]
    %v412 = vld [vmem:[#allocation8 + $0x508] sm:$0xff]
    %v413 = vld [vmem:[#allocation8 + $0x510] sm:$0xff]
    %v414 = vld [vmem:[#allocation8 + $0x518] sm:$0xff]
    %v415 = vld [vmem:[#allocation8 + $0x520] sm:$0xff]
    %v416 = vld [vmem:[#allocation8 + $0x528] sm:$0xff]
    %v417 = vld [vmem:[#allocation8 + $0x530] sm:$0xff]
    %v418 = vld [vmem:[#allocation8 + $0x538] sm:$0xff]
    %v419 = vld [vmem:[#allocation8 + $0x540] sm:$0xff]
    %v420 = vld [vmem:[#allocation8 + $0x548] sm:$0xff]
    %v421 = vld [vmem:[#allocation8 + $0x550] sm:$0xff]
    %v422 = vld [vmem:[#allocation8 + $0x558] sm:$0xff]
    %v423 = vld [vmem:[#allocation8 + $0x560] sm:$0xff]
    %v424 = vld [vmem:[#allocation8 + $0x568] sm:$0xff]
    %v425 = vld [vmem:[#allocation8 + $0x570] sm:$0xff]
    %v426 = vld [vmem:[#allocation8 + $0x578] sm:$0xff]
    %v427 = vld [vmem:[#allocation8 + $0x580] sm:$0xff]
    %v428 = vld [vmem:[#allocation8 + $0x588] sm:$0xff]
    %v429 = vld [vmem:[#allocation8 + $0x590] sm:$0xff]
    %v430 = vld [vmem:[#allocation8 + $0x598] sm:$0xff]
    %v431 = vld [vmem:[#allocation8 + $0x5a0] sm:$0xff]
    %v432 = vld [vmem:[#allocation8 + $0x5a8] sm:$0xff]
    %v433 = vld [vmem:[#allocation8 + $0x5b0] sm:$0xff]
    %v434 = vld [vmem:[#allocation8 + $0x5b8] sm:$0xff]
    %v435 = vld [vmem:[#allocation8 + $0x5c0] sm:$0xff]
    %v436 = vld [vmem:[#allocation8 + $0x5c8] sm:$0xff]
    %v437 = vld [vmem:[#allocation8 + $0x5d0] sm:$0xff]
    %v438 = vld [vmem:[#allocation8 + $0x5d8] sm:$0xff]
    %v439 = vld [vmem:[#allocation8 + $0x5e0] sm:$0xff]
    %v440 = vld [vmem:[#allocation8 + $0x5e8] sm:$0xff]
    %v441 = vld [vmem:[#allocation8 + $0x5f0] sm:$0xff]
    %v442 = vld [vmem:[#allocation8 + $0x5f8] sm:$0xff]
    %v443 = vld [vmem:[#allocation8 + $0x600] sm:$0xff]
    %v444 = vld [vmem:[#allocation8 + $0x608] sm:$0xff]
    %v445 = vld [vmem:[#allocation8 + $0x610] sm:$0xff]
    %v446 = vld [vmem:[#allocation8 + $0x618] sm:$0xff]
    %v447 = vld [vmem:[#allocation8 + $0x620] sm:$0xff]
    %v448 = vld [vmem:[#allocation8 + $0x628] sm:$0xff]
    %v449 = vld [vmem:[#allocation8 + $0x630] sm:$0xff]
    %v450 = vld [vmem:[#allocation8 + $0x638] sm:$0xff]
    %v451 = vld [vmem:[#allocation8 + $0x640] sm:$0xff]
    %v452 = vld [vmem:[#allocation8 + $0x648] sm:$0xff]
    %v453 = vld [vmem:[#allocation8 + $0x650] sm:$0xff]
    %v454 = vld [vmem:[#allocation8 + $0x658] sm:$0xff]
    %v455 = vld [vmem:[#allocation8 + $0x660] sm:$0xff]
    %v456 = vld [vmem:[#allocation8 + $0x668] sm:$0xff]
    %v457 = vld [vmem:[#allocation8 + $0x670] sm:$0xff]
    %v458 = vld [vmem:[#allocation8 + $0x678] sm:$0xff]
    %v459 = vld [vmem:[#allocation8 + $0x680] sm:$0xff]
    %v460 = vld [vmem:[#allocation8 + $0x688] sm:$0xff]
    %v461 = vld [vmem:[#allocation8 + $0x690] sm:$0xff]
    %v462 = vld [vmem:[#allocation8 + $0x698] sm:$0xff]
    %v463 = vld [vmem:[#allocation8 + $0x6a0] sm:$0xff]
    %v464 = vld [vmem:[#allocation8 + $0x6a8] sm:$0xff]
    %v465 = vld [vmem:[#allocation8 + $0x6b0] sm:$0xff]
    %v466 = vld [vmem:[#allocation8 + $0x6b8] sm:$0xff]
    %v467 = vld [vmem:[#allocation8 + $0x6c0] sm:$0xff]
    %v468 = vld [vmem:[#allocation8 + $0x6c8] sm:$0xff]
    %v469 = vld [vmem:[#allocation8 + $0x6d0] sm:$0xff]
    %v470 = vld [vmem:[#allocation8 + $0x6d8] sm:$0xff]
    %v471 = vld [vmem:[#allocation8 + $0x6e0] sm:$0xff]
    %v472 = vld [vmem:[#allocation8 + $0x6e8] sm:$0xff]
    %v473 = vld [vmem:[#allocation8 + $0x6f0] sm:$0xff]
    %v474 = vld [vmem:[#allocation8 + $0x6f8] sm:$0xff]
    %v475 = vld [vmem:[#allocation8 + $0x700] sm:$0xff]
    %v476 = vld [vmem:[#allocation8 + $0x708] sm:$0xff]
    %v477 = vld [vmem:[#allocation8 + $0x710] sm:$0xff]
    %v478 = vld [vmem:[#allocation8 + $0x718] sm:$0xff]
    %v479 = vld [vmem:[#allocation8 + $0x720] sm:$0xff]
    %v480 = vld [vmem:[#allocation8 + $0x728] sm:$0xff]
    %v481 = vld [vmem:[#allocation8 + $0x730] sm:$0xff]
    %v482 = vld [vmem:[#allocation8 + $0x738] sm:$0xff]
    %v483 = vld [vmem:[#allocation8 + $0x740] sm:$0xff]
    %v484 = vld [vmem:[#allocation8 + $0x748] sm:$0xff]
    %v485 = vld [vmem:[#allocation8 + $0x750] sm:$0xff]
    %v486 = vld [vmem:[#allocation8 + $0x758] sm:$0xff]
    %v487 = vld [vmem:[#allocation8 + $0x760] sm:$0xff]
    %v488 = vld [vmem:[#allocation8 + $0x768] sm:$0xff]
    %v489 = vld [vmem:[#allocation8 + $0x770] sm:$0xff]
    %v490 = vld [vmem:[#allocation8 + $0x778] sm:$0xff]
    %v491 = vld [vmem:[#allocation8 + $0x780] sm:$0xff]
    %v492 = vld [vmem:[#allocation8 + $0x788] sm:$0xff]
    %v493 = vld [vmem:[#allocation8 + $0x790] sm:$0xff]
    %v494 = vld [vmem:[#allocation8 + $0x798] sm:$0xff]
    %v495 = vld [vmem:[#allocation8 + $0x7a0] sm:$0xff]
    %v496 = vld [vmem:[#allocation8 + $0x7a8] sm:$0xff]
    %v497 = vld [vmem:[#allocation8 + $0x7b0] sm:$0xff]
    %v498 = vld [vmem:[#allocation8 + $0x7b8] sm:$0xff]
    %v499 = vld [vmem:[#allocation8 + $0x7c0] sm:$0xff]
    %v500 = vld [vmem:[#allocation8 + $0x7c8] sm:$0xff]
    %v501 = vld [vmem:[#allocation8 + $0x7d0] sm:$0xff]
    %v502 = vld [vmem:[#allocation8 + $0x7d8] sm:$0xff]
    %v503 = vld [vmem:[#allocation8 + $0x7e0] sm:$0xff]
    %v504 = vld [vmem:[#allocation8 + $0x7e8] sm:$0xff]
    %v505 = vld [vmem:[#allocation8 + $0x7f0] sm:$0xff]
    %v506 = vld [vmem:[#allocation8 + $0x7f8] sm:$0xff]
    %v507 = vld [vmem:[#allocation10] sm:$0xff]
    %v509 = vperm.slane %v507, 0
    %v510 = vperm.slane %v507, 1
    %v511 = vperm.slane %v507, 2
    %v512 = vperm.slane %v507, 3
    %v513 = vperm.slane %v507, 4
    %v514 = vperm.slane %v507, 5
    %v515 = vperm.slane %v507, 6
    %v516 = vperm.slane %v507, 7
    %v781 = vunpack.c.l.b16 %v251
    %v782 = vunpack.c.h.b16 %v251
    %v783 = vunpack.c.l.b16 %v252
    %v784 = vunpack.c.h.b16 %v252
    %v785 = vunpack.c.l.b16 %v253
    %v786 = vunpack.c.h.b16 %v253
    %v787 = vunpack.c.l.b16 %v254
    %v788 = vunpack.c.h.b16 %v254
    %v789 = vunpack.c.l.b16 %v255
    %v790 = vunpack.c.h.b16 %v255
    %v791 = vunpack.c.l.b16 %v256
    %v792 = vunpack.c.h.b16 %v256
    %v793 = vunpack.c.l.b16 %v257
    %v794 = vunpack.c.h.b16 %v257
    %v795 = vunpack.c.l.b16 %v258
    %v796 = vunpack.c.h.b16 %v258
    %v797 = vunpack.c.l.b16 %v259
    %v798 = vunpack.c.h.b16 %v259
    %v799 = vunpack.c.l.b16 %v260
    %v800 = vunpack.c.h.b16 %v260
    %v801 = vunpack.c.l.b16 %v261
    %v802 = vunpack.c.h.b16 %v261
    %v803 = vunpack.c.l.b16 %v262
    %v804 = vunpack.c.h.b16 %v262
    %v805 = vunpack.c.l.b16 %v263
    %v806 = vunpack.c.h.b16 %v263
    %v807 = vunpack.c.l.b16 %v264
    %v808 = vunpack.c.h.b16 %v264
    %v809 = vunpack.c.l.b16 %v265
    %v810 = vunpack.c.h.b16 %v265
    %v811 = vunpack.c.l.b16 %v266
    %v812 = vunpack.c.h.b16 %v266
    %v813 = vunpack.c.l.b16 %v267
    %v814 = vunpack.c.h.b16 %v267
    %v815 = vunpack.c.l.b16 %v268
    %v816 = vunpack.c.h.b16 %v268
    %v817 = vunpack.c.l.b16 %v269
    %v818 = vunpack.c.h.b16 %v269
    %v819 = vunpack.c.l.b16 %v270
    %v820 = vunpack.c.h.b16 %v270
    %v821 = vunpack.c.l.b16 %v271
    %v822 = vunpack.c.h.b16 %v271
    %v823 = vunpack.c.l.b16 %v272
    %v824 = vunpack.c.h.b16 %v272
    %v825 = vunpack.c.l.b16 %v273
    %v826 = vunpack.c.h.b16 %v273
    %v827 = vunpack.c.l.b16 %v274
    %v828 = vunpack.c.h.b16 %v274
    %v829 = vunpack.c.l.b16 %v275
    %v830 = vunpack.c.h.b16 %v275
    %v831 = vunpack.c.l.b16 %v276
    %v832 = vunpack.c.h.b16 %v276
    %v833 = vunpack.c.l.b16 %v277
    %v834 = vunpack.c.h.b16 %v277
    %v835 = vunpack.c.l.b16 %v278
    %v836 = vunpack.c.h.b16 %v278
    %v837 = vunpack.c.l.b16 %v279
    %v838 = vunpack.c.h.b16 %v279
    %v839 = vunpack.c.l.b16 %v280
    %v840 = vunpack.c.h.b16 %v280
    %v841 = vunpack.c.l.b16 %v281
    %v842 = vunpack.c.h.b16 %v281
    %v843 = vunpack.c.l.b16 %v282
    %v844 = vunpack.c.h.b16 %v282
    %v845 = vunpack.c.l.b16 %v283
    %v846 = vunpack.c.h.b16 %v283
    %v847 = vunpack.c.l.b16 %v284
    %v848 = vunpack.c.h.b16 %v284
    %v849 = vunpack.c.l.b16 %v285
    %v850 = vunpack.c.h.b16 %v285
    %v851 = vunpack.c.l.b16 %v286
    %v852 = vunpack.c.h.b16 %v286
    %v853 = vunpack.c.l.b16 %v287
    %v854 = vunpack.c.h.b16 %v287
    %v855 = vunpack.c.l.b16 %v288
    %v856 = vunpack.c.h.b16 %v288
    %v857 = vunpack.c.l.b16 %v289
    %v858 = vunpack.c.h.b16 %v289
    %v859 = vunpack.c.l.b16 %v290
    %v860 = vunpack.c.h.b16 %v290
    %v861 = vunpack.c.l.b16 %v291
    %v862 = vunpack.c.h.b16 %v291
    %v863 = vunpack.c.l.b16 %v292
    %v864 = vunpack.c.h.b16 %v292
    %v865 = vunpack.c.l.b16 %v293
    %v866 = vunpack.c.h.b16 %v293
    %v867 = vunpack.c.l.b16 %v294
    %v868 = vunpack.c.h.b16 %v294
    %v869 = vunpack.c.l.b16 %v295
    %v870 = vunpack.c.h.b16 %v295
    %v871 = vunpack.c.l.b16 %v296
    %v872 = vunpack.c.h.b16 %v296
    %v873 = vunpack.c.l.b16 %v297
    %v874 = vunpack.c.h.b16 %v297
    %v875 = vunpack.c.l.b16 %v298
    %v876 = vunpack.c.h.b16 %v298
    %v877 = vunpack.c.l.b16 %v299
    %v878 = vunpack.c.h.b16 %v299
    %v879 = vunpack.c.l.b16 %v300
    %v880 = vunpack.c.h.b16 %v300
    %v881 = vunpack.c.l.b16 %v301
    %v882 = vunpack.c.h.b16 %v301
    %v883 = vunpack.c.l.b16 %v302
    %v884 = vunpack.c.h.b16 %v302
    %v885 = vunpack.c.l.b16 %v303
    %v886 = vunpack.c.h.b16 %v303
    %v887 = vunpack.c.l.b16 %v304
    %v888 = vunpack.c.h.b16 %v304
    %v889 = vunpack.c.l.b16 %v305
    %v890 = vunpack.c.h.b16 %v305
    %v891 = vunpack.c.l.b16 %v306
    %v892 = vunpack.c.h.b16 %v306
    %v893 = vunpack.c.l.b16 %v307
    %v894 = vunpack.c.h.b16 %v307
    %v895 = vunpack.c.l.b16 %v308
    %v896 = vunpack.c.h.b16 %v308
    %v897 = vunpack.c.l.b16 %v309
    %v898 = vunpack.c.h.b16 %v309
    %v899 = vunpack.c.l.b16 %v310
    %v900 = vunpack.c.h.b16 %v310
    %v901 = vunpack.c.l.b16 %v311
    %v902 = vunpack.c.h.b16 %v311
    %v903 = vunpack.c.l.b16 %v312
    %v904 = vunpack.c.h.b16 %v312
    %v905 = vunpack.c.l.b16 %v313
    %v906 = vunpack.c.h.b16 %v313
    %v907 = vunpack.c.l.b16 %v314
    %v908 = vunpack.c.h.b16 %v314
    %v909 = vunpack.c.l.b16 %v315
    %v910 = vunpack.c.h.b16 %v315
    %v911 = vunpack.c.l.b16 %v316
    %v912 = vunpack.c.h.b16 %v316
    %v913 = vunpack.c.l.b16 %v317
    %v914 = vunpack.c.h.b16 %v317
    %v915 = vunpack.c.l.b16 %v318
    %v916 = vunpack.c.h.b16 %v318
    %v917 = vunpack.c.l.b16 %v319
    %v918 = vunpack.c.h.b16 %v319
    %v919 = vunpack.c.l.b16 %v320
    %v920 = vunpack.c.h.b16 %v320
    %v921 = vunpack.c.l.b16 %v321
    %v922 = vunpack.c.h.b16 %v321
    %v923 = vunpack.c.l.b16 %v322
    %v924 = vunpack.c.h.b16 %v322
    %v925 = vunpack.c.l.b16 %v323
    %v926 = vunpack.c.h.b16 %v323
    %v927 = vunpack.c.l.b16 %v324
    %v928 = vunpack.c.h.b16 %v324
    %v929 = vunpack.c.l.b16 %v325
    %v930 = vunpack.c.h.b16 %v325
    %v931 = vunpack.c.l.b16 %v326
    %v932 = vunpack.c.h.b16 %v326
    %v933 = vunpack.c.l.b16 %v327
    %v934 = vunpack.c.h.b16 %v327
    %v935 = vunpack.c.l.b16 %v328
    %v936 = vunpack.c.h.b16 %v328
    %v937 = vunpack.c.l.b16 %v329
    %v938 = vunpack.c.h.b16 %v329
    %v939 = vunpack.c.l.b16 %v330
    %v940 = vunpack.c.h.b16 %v330
    %v941 = vunpack.c.l.b16 %v331
    %v942 = vunpack.c.h.b16 %v331
    %v943 = vunpack.c.l.b16 %v332
    %v944 = vunpack.c.h.b16 %v332
    %v945 = vunpack.c.l.b16 %v333
    %v946 = vunpack.c.h.b16 %v333
    %v947 = vunpack.c.l.b16 %v334
    %v948 = vunpack.c.h.b16 %v334
    %v949 = vunpack.c.l.b16 %v335
    %v950 = vunpack.c.h.b16 %v335
    %v951 = vunpack.c.l.b16 %v336
    %v952 = vunpack.c.h.b16 %v336
    %v953 = vunpack.c.l.b16 %v337
    %v954 = vunpack.c.h.b16 %v337
    %v955 = vunpack.c.l.b16 %v338
    %v956 = vunpack.c.h.b16 %v338
    %v957 = vunpack.c.l.b16 %v339
    %v958 = vunpack.c.h.b16 %v339
    %v959 = vunpack.c.l.b16 %v340
    %v960 = vunpack.c.h.b16 %v340
    %v961 = vunpack.c.l.b16 %v341
    %v962 = vunpack.c.h.b16 %v341
    %v963 = vunpack.c.l.b16 %v342
    %v964 = vunpack.c.h.b16 %v342
    %v965 = vunpack.c.l.b16 %v343
    %v966 = vunpack.c.h.b16 %v343
    %v967 = vunpack.c.l.b16 %v344
    %v968 = vunpack.c.h.b16 %v344
    %v969 = vunpack.c.l.b16 %v345
    %v970 = vunpack.c.h.b16 %v345
    %v971 = vunpack.c.l.b16 %v346
    %v972 = vunpack.c.h.b16 %v346
    %v973 = vunpack.c.l.b16 %v347
    %v974 = vunpack.c.h.b16 %v347
    %v975 = vunpack.c.l.b16 %v348
    %v976 = vunpack.c.h.b16 %v348
    %v977 = vunpack.c.l.b16 %v349
    %v978 = vunpack.c.h.b16 %v349
    %v979 = vunpack.c.l.b16 %v350
    %v980 = vunpack.c.h.b16 %v350
    %v981 = vunpack.c.l.b16 %v351
    %v982 = vunpack.c.h.b16 %v351
    %v983 = vunpack.c.l.b16 %v352
    %v984 = vunpack.c.h.b16 %v352
    %v985 = vunpack.c.l.b16 %v353
    %v986 = vunpack.c.h.b16 %v353
    %v987 = vunpack.c.l.b16 %v354
    %v988 = vunpack.c.h.b16 %v354
    %v989 = vunpack.c.l.b16 %v355
    %v990 = vunpack.c.h.b16 %v355
    %v991 = vunpack.c.l.b16 %v356
    %v992 = vunpack.c.h.b16 %v356
    %v993 = vunpack.c.l.b16 %v357
    %v994 = vunpack.c.h.b16 %v357
    %v995 = vunpack.c.l.b16 %v358
    %v996 = vunpack.c.h.b16 %v358
    %v997 = vunpack.c.l.b16 %v359
    %v998 = vunpack.c.h.b16 %v359
    %v999 = vunpack.c.l.b16 %v360
    %v1000 = vunpack.c.h.b16 %v360
    %v1001 = vunpack.c.l.b16 %v361
    %v1002 = vunpack.c.h.b16 %v361
    %v1003 = vunpack.c.l.b16 %v362
    %v1004 = vunpack.c.h.b16 %v362
    %v1005 = vunpack.c.l.b16 %v363
    %v1006 = vunpack.c.h.b16 %v363
    %v1007 = vunpack.c.l.b16 %v364
    %v1008 = vunpack.c.h.b16 %v364
    %v1009 = vunpack.c.l.b16 %v365
    %v1010 = vunpack.c.h.b16 %v365
    %v1011 = vunpack.c.l.b16 %v366
    %v1012 = vunpack.c.h.b16 %v366
    %v1013 = vunpack.c.l.b16 %v367
    %v1014 = vunpack.c.h.b16 %v367
    %v1015 = vunpack.c.l.b16 %v368
    %v1016 = vunpack.c.h.b16 %v368
    %v1017 = vunpack.c.l.b16 %v369
    %v1018 = vunpack.c.h.b16 %v369
    %v1019 = vunpack.c.l.b16 %v370
    %v1020 = vunpack.c.h.b16 %v370
    %v1021 = vunpack.c.l.b16 %v371
    %v1022 = vunpack.c.h.b16 %v371
    %v1023 = vunpack.c.l.b16 %v372
    %v1024 = vunpack.c.h.b16 %v372
    %v1025 = vunpack.c.l.b16 %v373
    %v1026 = vunpack.c.h.b16 %v373
    %v1027 = vunpack.c.l.b16 %v374
    %v1028 = vunpack.c.h.b16 %v374
    %v1029 = vunpack.c.l.b16 %v375
    %v1030 = vunpack.c.h.b16 %v375
    %v1031 = vunpack.c.l.b16 %v376
    %v1032 = vunpack.c.h.b16 %v376
    %v1033 = vunpack.c.l.b16 %v377
    %v1034 = vunpack.c.h.b16 %v377
    %v1035 = vunpack.c.l.b16 %v378
    %v1036 = vunpack.c.h.b16 %v378
    %v1037 = vunpack.c.l.b16 %v379
    %v1038 = vunpack.c.h.b16 %v379
    %v1039 = vunpack.c.l.b16 %v380
    %v1040 = vunpack.c.h.b16 %v380
    %v1041 = vunpack.c.l.b16 %v381
    %v1042 = vunpack.c.h.b16 %v381
    %v1043 = vunpack.c.l.b16 %v382
    %v1044 = vunpack.c.h.b16 %v382
    %v1045 = vunpack.c.l.b16 %v383
    %v1046 = vunpack.c.h.b16 %v383
    %v1047 = vunpack.c.l.b16 %v384
    %v1048 = vunpack.c.h.b16 %v384
    %v1049 = vunpack.c.l.b16 %v385
    %v1050 = vunpack.c.h.b16 %v385
    %v1051 = vunpack.c.l.b16 %v386
    %v1052 = vunpack.c.h.b16 %v386
    %v1053 = vunpack.c.l.b16 %v387
    %v1054 = vunpack.c.h.b16 %v387
    %v1055 = vunpack.c.l.b16 %v388
    %v1056 = vunpack.c.h.b16 %v388
    %v1057 = vunpack.c.l.b16 %v389
    %v1058 = vunpack.c.h.b16 %v389
    %v1059 = vunpack.c.l.b16 %v390
    %v1060 = vunpack.c.h.b16 %v390
    %v1061 = vunpack.c.l.b16 %v391
    %v1062 = vunpack.c.h.b16 %v391
    %v1063 = vunpack.c.l.b16 %v392
    %v1064 = vunpack.c.h.b16 %v392
    %v1065 = vunpack.c.l.b16 %v393
    %v1066 = vunpack.c.h.b16 %v393
    %v1067 = vunpack.c.l.b16 %v394
    %v1068 = vunpack.c.h.b16 %v394
    %v1069 = vunpack.c.l.b16 %v395
    %v1070 = vunpack.c.h.b16 %v395
    %v1071 = vunpack.c.l.b16 %v396
    %v1072 = vunpack.c.h.b16 %v396
    %v1073 = vunpack.c.l.b16 %v397
    %v1074 = vunpack.c.h.b16 %v397
    %v1075 = vunpack.c.l.b16 %v398
    %v1076 = vunpack.c.h.b16 %v398
    %v1077 = vunpack.c.l.b16 %v399
    %v1078 = vunpack.c.h.b16 %v399
    %v1079 = vunpack.c.l.b16 %v400
    %v1080 = vunpack.c.h.b16 %v400
    %v1081 = vunpack.c.l.b16 %v401
    %v1082 = vunpack.c.h.b16 %v401
    %v1083 = vunpack.c.l.b16 %v402
    %v1084 = vunpack.c.h.b16 %v402
    %v1085 = vunpack.c.l.b16 %v403
    %v1086 = vunpack.c.h.b16 %v403
    %v1087 = vunpack.c.l.b16 %v404
    %v1088 = vunpack.c.h.b16 %v404
    %v1089 = vunpack.c.l.b16 %v405
    %v1090 = vunpack.c.h.b16 %v405
    %v1091 = vunpack.c.l.b16 %v406
    %v1092 = vunpack.c.h.b16 %v406
    %v1093 = vunpack.c.l.b16 %v407
    %v1094 = vunpack.c.h.b16 %v407
    %v1095 = vunpack.c.l.b16 %v408
    %v1096 = vunpack.c.h.b16 %v408
    %v1097 = vunpack.c.l.b16 %v409
    %v1098 = vunpack.c.h.b16 %v409
    %v1099 = vunpack.c.l.b16 %v410
    %v1100 = vunpack.c.h.b16 %v410
    %v1101 = vunpack.c.l.b16 %v411
    %v1102 = vunpack.c.h.b16 %v411
    %v1103 = vunpack.c.l.b16 %v412
    %v1104 = vunpack.c.h.b16 %v412
    %v1105 = vunpack.c.l.b16 %v413
    %v1106 = vunpack.c.h.b16 %v413
    %v1107 = vunpack.c.l.b16 %v414
    %v1108 = vunpack.c.h.b16 %v414
    %v1109 = vunpack.c.l.b16 %v415
    %v1110 = vunpack.c.h.b16 %v415
    %v1111 = vunpack.c.l.b16 %v416
    %v1112 = vunpack.c.h.b16 %v416
    %v1113 = vunpack.c.l.b16 %v417
    %v1114 = vunpack.c.h.b16 %v417
    %v1115 = vunpack.c.l.b16 %v418
    %v1116 = vunpack.c.h.b16 %v418
    %v1117 = vunpack.c.l.b16 %v419
    %v1118 = vunpack.c.h.b16 %v419
    %v1119 = vunpack.c.l.b16 %v420
    %v1120 = vunpack.c.h.b16 %v420
    %v1121 = vunpack.c.l.b16 %v421
    %v1122 = vunpack.c.h.b16 %v421
    %v1123 = vunpack.c.l.b16 %v422
    %v1124 = vunpack.c.h.b16 %v422
    %v1125 = vunpack.c.l.b16 %v423
    %v1126 = vunpack.c.h.b16 %v423
    %v1127 = vunpack.c.l.b16 %v424
    %v1128 = vunpack.c.h.b16 %v424
    %v1129 = vunpack.c.l.b16 %v425
    %v1130 = vunpack.c.h.b16 %v425
    %v1131 = vunpack.c.l.b16 %v426
    %v1132 = vunpack.c.h.b16 %v426
    %v1133 = vunpack.c.l.b16 %v427
    %v1134 = vunpack.c.h.b16 %v427
    %v1135 = vunpack.c.l.b16 %v428
    %v1136 = vunpack.c.h.b16 %v428
    %v1137 = vunpack.c.l.b16 %v429
    %v1138 = vunpack.c.h.b16 %v429
    %v1139 = vunpack.c.l.b16 %v430
    %v1140 = vunpack.c.h.b16 %v430
    %v1141 = vunpack.c.l.b16 %v431
    %v1142 = vunpack.c.h.b16 %v431
    %v1143 = vunpack.c.l.b16 %v432
    %v1144 = vunpack.c.h.b16 %v432
    %v1145 = vunpack.c.l.b16 %v433
    %v1146 = vunpack.c.h.b16 %v433
    %v1147 = vunpack.c.l.b16 %v434
    %v1148 = vunpack.c.h.b16 %v434
    %v1149 = vunpack.c.l.b16 %v435
    %v1150 = vunpack.c.h.b16 %v435
    %v1151 = vunpack.c.l.b16 %v436
    %v1152 = vunpack.c.h.b16 %v436
    %v1153 = vunpack.c.l.b16 %v437
    %v1154 = vunpack.c.h.b16 %v437
    %v1155 = vunpack.c.l.b16 %v438
    %v1156 = vunpack.c.h.b16 %v438
    %v1157 = vunpack.c.l.b16 %v439
    %v1158 = vunpack.c.h.b16 %v439
    %v1159 = vunpack.c.l.b16 %v440
    %v1160 = vunpack.c.h.b16 %v440
    %v1161 = vunpack.c.l.b16 %v441
    %v1162 = vunpack.c.h.b16 %v441
    %v1163 = vunpack.c.l.b16 %v442
    %v1164 = vunpack.c.h.b16 %v442
    %v1165 = vunpack.c.l.b16 %v443
    %v1166 = vunpack.c.h.b16 %v443
    %v1167 = vunpack.c.l.b16 %v444
    %v1168 = vunpack.c.h.b16 %v444
    %v1169 = vunpack.c.l.b16 %v445
    %v1170 = vunpack.c.h.b16 %v445
    %v1171 = vunpack.c.l.b16 %v446
    %v1172 = vunpack.c.h.b16 %v446
    %v1173 = vunpack.c.l.b16 %v447
    %v1174 = vunpack.c.h.b16 %v447
    %v1175 = vunpack.c.l.b16 %v448
    %v1176 = vunpack.c.h.b16 %v448
    %v1177 = vunpack.c.l.b16 %v449
    %v1178 = vunpack.c.h.b16 %v449
    %v1179 = vunpack.c.l.b16 %v450
    %v1180 = vunpack.c.h.b16 %v450
    %v1181 = vunpack.c.l.b16 %v451
    %v1182 = vunpack.c.h.b16 %v451
    %v1183 = vunpack.c.l.b16 %v452
    %v1184 = vunpack.c.h.b16 %v452
    %v1185 = vunpack.c.l.b16 %v453
    %v1186 = vunpack.c.h.b16 %v453
    %v1187 = vunpack.c.l.b16 %v454
    %v1188 = vunpack.c.h.b16 %v454
    %v1189 = vunpack.c.l.b16 %v455
    %v1190 = vunpack.c.h.b16 %v455
    %v1191 = vunpack.c.l.b16 %v456
    %v1192 = vunpack.c.h.b16 %v456
    %v1193 = vunpack.c.l.b16 %v457
    %v1194 = vunpack.c.h.b16 %v457
    %v1195 = vunpack.c.l.b16 %v458
    %v1196 = vunpack.c.h.b16 %v458
    %v1197 = vunpack.c.l.b16 %v459
    %v1198 = vunpack.c.h.b16 %v459
    %v1199 = vunpack.c.l.b16 %v460
    %v1200 = vunpack.c.h.b16 %v460
    %v1201 = vunpack.c.l.b16 %v461
    %v1202 = vunpack.c.h.b16 %v461
    %v1203 = vunpack.c.l.b16 %v462
    %v1204 = vunpack.c.h.b16 %v462
    %v1205 = vunpack.c.l.b16 %v463
    %v1206 = vunpack.c.h.b16 %v463
    %v1207 = vunpack.c.l.b16 %v464
    %v1208 = vunpack.c.h.b16 %v464
    %v1209 = vunpack.c.l.b16 %v465
    %v1210 = vunpack.c.h.b16 %v465
    %v1211 = vunpack.c.l.b16 %v466
    %v1212 = vunpack.c.h.b16 %v466
    %v1213 = vunpack.c.l.b16 %v467
    %v1214 = vunpack.c.h.b16 %v467
    %v1215 = vunpack.c.l.b16 %v468
    %v1216 = vunpack.c.h.b16 %v468
    %v1217 = vunpack.c.l.b16 %v469
    %v1218 = vunpack.c.h.b16 %v469
    %v1219 = vunpack.c.l.b16 %v470
    %v1220 = vunpack.c.h.b16 %v470
    %v1221 = vunpack.c.l.b16 %v471
    %v1222 = vunpack.c.h.b16 %v471
    %v1223 = vunpack.c.l.b16 %v472
    %v1224 = vunpack.c.h.b16 %v472
    %v1225 = vunpack.c.l.b16 %v473
    %v1226 = vunpack.c.h.b16 %v473
    %v1227 = vunpack.c.l.b16 %v474
    %v1228 = vunpack.c.h.b16 %v474
    %v1229 = vunpack.c.l.b16 %v475
    %v1230 = vunpack.c.h.b16 %v475
    %v1231 = vunpack.c.l.b16 %v476
    %v1232 = vunpack.c.h.b16 %v476
    %v1233 = vunpack.c.l.b16 %v477
    %v1234 = vunpack.c.h.b16 %v477
    %v1235 = vunpack.c.l.b16 %v478
    %v1236 = vunpack.c.h.b16 %v478
    %v1237 = vunpack.c.l.b16 %v479
    %v1238 = vunpack.c.h.b16 %v479
    %v1239 = vunpack.c.l.b16 %v480
    %v1240 = vunpack.c.h.b16 %v480
    %v1241 = vunpack.c.l.b16 %v481
    %v1242 = vunpack.c.h.b16 %v481
    %v1243 = vunpack.c.l.b16 %v482
    %v1244 = vunpack.c.h.b16 %v482
    %v1245 = vunpack.c.l.b16 %v483
    %v1246 = vunpack.c.h.b16 %v483
    %v1247 = vunpack.c.l.b16 %v484
    %v1248 = vunpack.c.h.b16 %v484
    %v1249 = vunpack.c.l.b16 %v485
    %v1250 = vunpack.c.h.b16 %v485
    %v1251 = vunpack.c.l.b16 %v486
    %v1252 = vunpack.c.h.b16 %v486
    %v1253 = vunpack.c.l.b16 %v487
    %v1254 = vunpack.c.h.b16 %v487
    %v1255 = vunpack.c.l.b16 %v488
    %v1256 = vunpack.c.h.b16 %v488
    %v1257 = vunpack.c.l.b16 %v489
    %v1258 = vunpack.c.h.b16 %v489
    %v1259 = vunpack.c.l.b16 %v490
    %v1260 = vunpack.c.h.b16 %v490
    %v1261 = vunpack.c.l.b16 %v491
    %v1262 = vunpack.c.h.b16 %v491
    %v1263 = vunpack.c.l.b16 %v492
    %v1264 = vunpack.c.h.b16 %v492
    %v1265 = vunpack.c.l.b16 %v493
    %v1266 = vunpack.c.h.b16 %v493
    %v1267 = vunpack.c.l.b16 %v494
    %v1268 = vunpack.c.h.b16 %v494
    %v1269 = vunpack.c.l.b16 %v495
    %v1270 = vunpack.c.h.b16 %v495
    %v1271 = vunpack.c.l.b16 %v496
    %v1272 = vunpack.c.h.b16 %v496
    %v1273 = vunpack.c.l.b16 %v497
    %v1274 = vunpack.c.h.b16 %v497
    %v1275 = vunpack.c.l.b16 %v498
    %v1276 = vunpack.c.h.b16 %v498
    %v1277 = vunpack.c.l.b16 %v499
    %v1278 = vunpack.c.h.b16 %v499
    %v1279 = vunpack.c.l.b16 %v500
    %v1280 = vunpack.c.h.b16 %v500
    %v1281 = vunpack.c.l.b16 %v501
    %v1282 = vunpack.c.h.b16 %v501
    %v1283 = vunpack.c.l.b16 %v502
    %v1284 = vunpack.c.h.b16 %v502
    %v1285 = vunpack.c.l.b16 %v503
    %v1286 = vunpack.c.h.b16 %v503
    %v1287 = vunpack.c.l.b16 %v504
    %v1288 = vunpack.c.h.b16 %v504
    %v1289 = vunpack.c.l.b16 %v505
    %v1290 = vunpack.c.h.b16 %v505
    %v1291 = vunpack.c.l.b16 %v506
    %v1292 = vunpack.c.h.b16 %v506
    %v1293 = vpack.c.b16 %v789, %v781
    %v1294 = vpack.c.b16 %v790, %v782
    %v1295 = vpack.c.b16 %v791, %v783
    %v1296 = vpack.c.b16 %v792, %v784
    %v1297 = vpack.c.b16 %v793, %v785
    %v1298 = vpack.c.b16 %v794, %v786
    %v1299 = vpack.c.b16 %v795, %v787
    %v1300 = vpack.c.b16 %v796, %v788
    %v1301 = vpack.c.b16 %v805, %v797
    %v1302 = vpack.c.b16 %v806, %v798
    %v1303 = vpack.c.b16 %v807, %v799
    %v1304 = vpack.c.b16 %v808, %v800
    %v1305 = vpack.c.b16 %v809, %v801
    %v1306 = vpack.c.b16 %v810, %v802
    %v1307 = vpack.c.b16 %v811, %v803
    %v1308 = vpack.c.b16 %v812, %v804
    %v1309 = vpack.c.b16 %v821, %v813
    %v1310 = vpack.c.b16 %v822, %v814
    %v1311 = vpack.c.b16 %v823, %v815
    %v1312 = vpack.c.b16 %v824, %v816
    %v1313 = vpack.c.b16 %v825, %v817
    %v1314 = vpack.c.b16 %v826, %v818
    %v1315 = vpack.c.b16 %v827, %v819
    %v1316 = vpack.c.b16 %v828, %v820
    %v1317 = vpack.c.b16 %v837, %v829
    %v1318 = vpack.c.b16 %v838, %v830
    %v1319 = vpack.c.b16 %v839, %v831
    %v1320 = vpack.c.b16 %v840, %v832
    %v1321 = vpack.c.b16 %v841, %v833
    %v1322 = vpack.c.b16 %v842, %v834
    %v1323 = vpack.c.b16 %v843, %v835
    %v1324 = vpack.c.b16 %v844, %v836
    %v1325 = vpack.c.b16 %v853, %v845
    %v1326 = vpack.c.b16 %v854, %v846
    %v1327 = vpack.c.b16 %v855, %v847
    %v1328 = vpack.c.b16 %v856, %v848
    %v1329 = vpack.c.b16 %v857, %v849
    %v1330 = vpack.c.b16 %v858, %v850
    %v1331 = vpack.c.b16 %v859, %v851
    %v1332 = vpack.c.b16 %v860, %v852
    %v1333 = vpack.c.b16 %v869, %v861
    %v1334 = vpack.c.b16 %v870, %v862
    %v1335 = vpack.c.b16 %v871, %v863
    %v1336 = vpack.c.b16 %v872, %v864
    %v1337 = vpack.c.b16 %v873, %v865
    %v1338 = vpack.c.b16 %v874, %v866
    %v1339 = vpack.c.b16 %v875, %v867
    %v1340 = vpack.c.b16 %v876, %v868
    %v1341 = vpack.c.b16 %v885, %v877
    %v1342 = vpack.c.b16 %v886, %v878
    %v1343 = vpack.c.b16 %v887, %v879
    %v1344 = vpack.c.b16 %v888, %v880
    %v1345 = vpack.c.b16 %v889, %v881
    %v1346 = vpack.c.b16 %v890, %v882
    %v1347 = vpack.c.b16 %v891, %v883
    %v1348 = vpack.c.b16 %v892, %v884
    %v1349 = vpack.c.b16 %v901, %v893
    %v1350 = vpack.c.b16 %v902, %v894
    %v1351 = vpack.c.b16 %v903, %v895
    %v1352 = vpack.c.b16 %v904, %v896
    %v1353 = vpack.c.b16 %v905, %v897
    %v1354 = vpack.c.b16 %v906, %v898
    %v1355 = vpack.c.b16 %v907, %v899
    %v1356 = vpack.c.b16 %v908, %v900
    %v1357 = vpack.c.b16 %v917, %v909
    %v1358 = vpack.c.b16 %v918, %v910
    %v1359 = vpack.c.b16 %v919, %v911
    %v1360 = vpack.c.b16 %v920, %v912
    %v1361 = vpack.c.b16 %v921, %v913
    %v1362 = vpack.c.b16 %v922, %v914
    %v1363 = vpack.c.b16 %v923, %v915
    %v1364 = vpack.c.b16 %v924, %v916
    %v1365 = vpack.c.b16 %v933, %v925
    %v1366 = vpack.c.b16 %v934, %v926
    %v1367 = vpack.c.b16 %v935, %v927
    %v1368 = vpack.c.b16 %v936, %v928
    %v1369 = vpack.c.b16 %v937, %v929
    %v1370 = vpack.c.b16 %v938, %v930
    %v1371 = vpack.c.b16 %v939, %v931
    %v1372 = vpack.c.b16 %v940, %v932
    %v1373 = vpack.c.b16 %v949, %v941
    %v1374 = vpack.c.b16 %v950, %v942
    %v1375 = vpack.c.b16 %v951, %v943
    %v1376 = vpack.c.b16 %v952, %v944
    %v1377 = vpack.c.b16 %v953, %v945
    %v1378 = vpack.c.b16 %v954, %v946
    %v1379 = vpack.c.b16 %v955, %v947
    %v1380 = vpack.c.b16 %v956, %v948
    %v1381 = vpack.c.b16 %v965, %v957
    %v1382 = vpack.c.b16 %v966, %v958
    %v1383 = vpack.c.b16 %v967, %v959
    %v1384 = vpack.c.b16 %v968, %v960
    %v1385 = vpack.c.b16 %v969, %v961
    %v1386 = vpack.c.b16 %v970, %v962
    %v1387 = vpack.c.b16 %v971, %v963
    %v1388 = vpack.c.b16 %v972, %v964
    %v1389 = vpack.c.b16 %v981, %v973
    %v1390 = vpack.c.b16 %v982, %v974
    %v1391 = vpack.c.b16 %v983, %v975
    %v1392 = vpack.c.b16 %v984, %v976
    %v1393 = vpack.c.b16 %v985, %v977
    %v1394 = vpack.c.b16 %v986, %v978
    %v1395 = vpack.c.b16 %v987, %v979
    %v1396 = vpack.c.b16 %v988, %v980
    %v1397 = vpack.c.b16 %v997, %v989
    %v1398 = vpack.c.b16 %v998, %v990
    %v1399 = vpack.c.b16 %v999, %v991
    %v1400 = vpack.c.b16 %v1000, %v992
    %v1401 = vpack.c.b16 %v1001, %v993
    %v1402 = vpack.c.b16 %v1002, %v994
    %v1403 = vpack.c.b16 %v1003, %v995
    %v1404 = vpack.c.b16 %v1004, %v996
    %v1405 = vpack.c.b16 %v1013, %v1005
    %v1406 = vpack.c.b16 %v1014, %v1006
    %v1407 = vpack.c.b16 %v1015, %v1007
    %v1408 = vpack.c.b16 %v1016, %v1008
    %v1409 = vpack.c.b16 %v1017, %v1009
    %v1410 = vpack.c.b16 %v1018, %v1010
    %v1411 = vpack.c.b16 %v1019, %v1011
    %v1412 = vpack.c.b16 %v1020, %v1012
    %v1413 = vpack.c.b16 %v1029, %v1021
    %v1414 = vpack.c.b16 %v1030, %v1022
    %v1415 = vpack.c.b16 %v1031, %v1023
    %v1416 = vpack.c.b16 %v1032, %v1024
    %v1417 = vpack.c.b16 %v1033, %v1025
    %v1418 = vpack.c.b16 %v1034, %v1026
    %v1419 = vpack.c.b16 %v1035, %v1027
    %v1420 = vpack.c.b16 %v1036, %v1028
    %v1421 = vpack.c.b16 %v1045, %v1037
    %v1422 = vpack.c.b16 %v1046, %v1038
    %v1423 = vpack.c.b16 %v1047, %v1039
    %v1424 = vpack.c.b16 %v1048, %v1040
    %v1425 = vpack.c.b16 %v1049, %v1041
    %v1426 = vpack.c.b16 %v1050, %v1042
    %v1427 = vpack.c.b16 %v1051, %v1043
    %v1428 = vpack.c.b16 %v1052, %v1044
    %v1429 = vpack.c.b16 %v1061, %v1053
    %v1430 = vpack.c.b16 %v1062, %v1054
    %v1431 = vpack.c.b16 %v1063, %v1055
    %v1432 = vpack.c.b16 %v1064, %v1056
    %v1433 = vpack.c.b16 %v1065, %v1057
    %v1434 = vpack.c.b16 %v1066, %v1058
    %v1435 = vpack.c.b16 %v1067, %v1059
    %v1436 = vpack.c.b16 %v1068, %v1060
    %v1437 = vpack.c.b16 %v1077, %v1069
    %v1438 = vpack.c.b16 %v1078, %v1070
    %v1439 = vpack.c.b16 %v1079, %v1071
    %v1440 = vpack.c.b16 %v1080, %v1072
    %v1441 = vpack.c.b16 %v1081, %v1073
    %v1442 = vpack.c.b16 %v1082, %v1074
    %v1443 = vpack.c.b16 %v1083, %v1075
    %v1444 = vpack.c.b16 %v1084, %v1076
    %v1445 = vpack.c.b16 %v1093, %v1085
    %v1446 = vpack.c.b16 %v1094, %v1086
    %v1447 = vpack.c.b16 %v1095, %v1087
    %v1448 = vpack.c.b16 %v1096, %v1088
    %v1449 = vpack.c.b16 %v1097, %v1089
    %v1450 = vpack.c.b16 %v1098, %v1090
    %v1451 = vpack.c.b16 %v1099, %v1091
    %v1452 = vpack.c.b16 %v1100, %v1092
    %v1453 = vpack.c.b16 %v1109, %v1101
    %v1454 = vpack.c.b16 %v1110, %v1102
    %v1455 = vpack.c.b16 %v1111, %v1103
    %v1456 = vpack.c.b16 %v1112, %v1104
    %v1457 = vpack.c.b16 %v1113, %v1105
    %v1458 = vpack.c.b16 %v1114, %v1106
    %v1459 = vpack.c.b16 %v1115, %v1107
    %v1460 = vpack.c.b16 %v1116, %v1108
    %v1461 = vpack.c.b16 %v1125, %v1117
    %v1462 = vpack.c.b16 %v1126, %v1118
    %v1463 = vpack.c.b16 %v1127, %v1119
    %v1464 = vpack.c.b16 %v1128, %v1120
    %v1465 = vpack.c.b16 %v1129, %v1121
    %v1466 = vpack.c.b16 %v1130, %v1122
    %v1467 = vpack.c.b16 %v1131, %v1123
    %v1468 = vpack.c.b16 %v1132, %v1124
    %v1469 = vpack.c.b16 %v1141, %v1133
    %v1470 = vpack.c.b16 %v1142, %v1134
    %v1471 = vpack.c.b16 %v1143, %v1135
    %v1472 = vpack.c.b16 %v1144, %v1136
    %v1473 = vpack.c.b16 %v1145, %v1137
    %v1474 = vpack.c.b16 %v1146, %v1138
    %v1475 = vpack.c.b16 %v1147, %v1139
    %v1476 = vpack.c.b16 %v1148, %v1140
    %v1477 = vpack.c.b16 %v1157, %v1149
    %v1478 = vpack.c.b16 %v1158, %v1150
    %v1479 = vpack.c.b16 %v1159, %v1151
    %v1480 = vpack.c.b16 %v1160, %v1152
    %v1481 = vpack.c.b16 %v1161, %v1153
    %v1482 = vpack.c.b16 %v1162, %v1154
    %v1483 = vpack.c.b16 %v1163, %v1155
    %v1484 = vpack.c.b16 %v1164, %v1156
    %v1485 = vpack.c.b16 %v1173, %v1165
    %v1486 = vpack.c.b16 %v1174, %v1166
    %v1487 = vpack.c.b16 %v1175, %v1167
    %v1488 = vpack.c.b16 %v1176, %v1168
    %v1489 = vpack.c.b16 %v1177, %v1169
    %v1490 = vpack.c.b16 %v1178, %v1170
    %v1491 = vpack.c.b16 %v1179, %v1171
    %v1492 = vpack.c.b16 %v1180, %v1172
    %v1493 = vpack.c.b16 %v1189, %v1181
    %v1494 = vpack.c.b16 %v1190, %v1182
    %v1495 = vpack.c.b16 %v1191, %v1183
    %v1496 = vpack.c.b16 %v1192, %v1184
    %v1497 = vpack.c.b16 %v1193, %v1185
    %v1498 = vpack.c.b16 %v1194, %v1186
    %v1499 = vpack.c.b16 %v1195, %v1187
    %v1500 = vpack.c.b16 %v1196, %v1188
    %v1501 = vpack.c.b16 %v1205, %v1197
    %v1502 = vpack.c.b16 %v1206, %v1198
    %v1503 = vpack.c.b16 %v1207, %v1199
    %v1504 = vpack.c.b16 %v1208, %v1200
    %v1505 = vpack.c.b16 %v1209, %v1201
    %v1506 = vpack.c.b16 %v1210, %v1202
    %v1507 = vpack.c.b16 %v1211, %v1203
    %v1508 = vpack.c.b16 %v1212, %v1204
    %v1509 = vpack.c.b16 %v1221, %v1213
    %v1510 = vpack.c.b16 %v1222, %v1214
    %v1511 = vpack.c.b16 %v1223, %v1215
    %v1512 = vpack.c.b16 %v1224, %v1216
    %v1513 = vpack.c.b16 %v1225, %v1217
    %v1514 = vpack.c.b16 %v1226, %v1218
    %v1515 = vpack.c.b16 %v1227, %v1219
    %v1516 = vpack.c.b16 %v1228, %v1220
    %v1517 = vpack.c.b16 %v1237, %v1229
    %v1518 = vpack.c.b16 %v1238, %v1230
    %v1519 = vpack.c.b16 %v1239, %v1231
    %v1520 = vpack.c.b16 %v1240, %v1232
    %v1521 = vpack.c.b16 %v1241, %v1233
    %v1522 = vpack.c.b16 %v1242, %v1234
    %v1523 = vpack.c.b16 %v1243, %v1235
    %v1524 = vpack.c.b16 %v1244, %v1236
    %v1525 = vpack.c.b16 %v1253, %v1245
    %v1526 = vpack.c.b16 %v1254, %v1246
    %v1527 = vpack.c.b16 %v1255, %v1247
    %v1528 = vpack.c.b16 %v1256, %v1248
    %v1529 = vpack.c.b16 %v1257, %v1249
    %v1530 = vpack.c.b16 %v1258, %v1250
    %v1531 = vpack.c.b16 %v1259, %v1251
    %v1532 = vpack.c.b16 %v1260, %v1252
    %v1533 = vpack.c.b16 %v1269, %v1261
    %v1534 = vpack.c.b16 %v1270, %v1262
    %v1535 = vpack.c.b16 %v1271, %v1263
    %v1536 = vpack.c.b16 %v1272, %v1264
    %v1537 = vpack.c.b16 %v1273, %v1265
    %v1538 = vpack.c.b16 %v1274, %v1266
    %v1539 = vpack.c.b16 %v1275, %v1267
    %v1540 = vpack.c.b16 %v1276, %v1268
    %v1541 = vpack.c.b16 %v1285, %v1277
    %v1542 = vpack.c.b16 %v1286, %v1278
    %v1543 = vpack.c.b16 %v1287, %v1279
    %v1544 = vpack.c.b16 %v1288, %v1280
    %v1545 = vpack.c.b16 %v1289, %v1281
    %v1546 = vpack.c.b16 %v1290, %v1282
    %v1547 = vpack.c.b16 %v1291, %v1283
    %v1548 = vpack.c.b16 %v1292, %v1284
    %1805 = vmatpush.bf16.msra.mxu0 %v1349
    %1806 = vmatpush.bf16.msra.mxu0 %v1341
    %1807 = vmatpush.bf16.msra.mxu0 %v1333
    %1808 = vmatpush.bf16.msra.mxu0 %v1325
    %1809 = vmatpush.bf16.msra.mxu0 %v1317
    %1810 = vmatpush.bf16.msra.mxu0 %v1309
    %1811 = vmatpush.bf16.msra.mxu0 %v1301
    %1812 = vmatpush.bf16.msra.mxu0 %v1293
    %1813 = vmatmul.bf16.gmra.mxu0 %v247
    %v1814 = vpop.f32.mrf.mxu0
    %v1815 = vadd.f32 %v509, %v1814
    %v1816 = vpop.f32.mrf.mxu0
    %v1817 = vadd.f32 %v509, %v1816
    %1818 = vdwg.mxu0
    %1819 = vmatpush.bf16.msra.mxu0 %v1413
    %1820 = vmatpush.bf16.msra.mxu0 %v1405
    %1821 = vmatpush.bf16.msra.mxu0 %v1397
    %1822 = vmatpush.bf16.msra.mxu0 %v1389
    %1823 = vmatpush.bf16.msra.mxu0 %v1381
    %1824 = vmatpush.bf16.msra.mxu0 %v1373
    %1825 = vmatpush.bf16.msra.mxu0 %v1365
    %1826 = vmatpush.bf16.msra.mxu0 %v1357
    %1827 = vmatmul.bf16.gmra.mxu0 %v248
    %v1828 = vpop.f32.mrf.mxu0
    %v1829 = vadd.f32 %v1815, %v1828
    %v1830 = vpop.f32.mrf.mxu0
    %v1831 = vadd.f32 %v1817, %v1830
    %1832 = vdwg.mxu0
    %1833 = vmatpush.bf16.msra.mxu0 %v1477
    %1834 = vmatpush.bf16.msra.mxu0 %v1469
    %1835 = vmatpush.bf16.msra.mxu0 %v1461
    %1836 = vmatpush.bf16.msra.mxu0 %v1453
    %1837 = vmatpush.bf16.msra.mxu0 %v1445
    %1838 = vmatpush.bf16.msra.mxu0 %v1437
    %1839 = vmatpush.bf16.msra.mxu0 %v1429
    %1840 = vmatpush.bf16.msra.mxu0 %v1421
    %1841 = vmatmul.bf16.gmra.mxu0 %v249
    %v1842 = vpop.f32.mrf.mxu0
    %v1843 = vadd.f32 %v1829, %v1842
    %v1844 = vpop.f32.mrf.mxu0
    %v1845 = vadd.f32 %v1831, %v1844
    %1846 = vdwg.mxu0
    %1847 = vmatpush.bf16.msra.mxu0 %v1541
    %1848 = vmatpush.bf16.msra.mxu0 %v1533
    %1849 = vmatpush.bf16.msra.mxu0 %v1525
    %1850 = vmatpush.bf16.msra.mxu0 %v1517
    %1851 = vmatpush.bf16.msra.mxu0 %v1509
    %1852 = vmatpush.bf16.msra.mxu0 %v1501
    %1853 = vmatpush.bf16.msra.mxu0 %v1493
    %1854 = vmatpush.bf16.msra.mxu0 %v1485
    %1855 = vmatmul.bf16.gmra.mxu0 %v250
    %v1856 = vpop.f32.mrf.mxu0
    %v1857 = vadd.f32 %v1843, %v1856
    %v1858 = vpop.f32.mrf.mxu0
    %v1859 = vadd.f32 %v1845, %v1858
    %1860 = vdwg.mxu0
    %1861 = vmatpush.bf16.msra.mxu0 %v1350
    %1862 = vmatpush.bf16.msra.mxu0 %v1342
    %1863 = vmatpush.bf16.msra.mxu0 %v1334
    %1864 = vmatpush.bf16.msra.mxu0 %v1326
    %1865 = vmatpush.bf16.msra.mxu0 %v1318
    %1866 = vmatpush.bf16.msra.mxu0 %v1310
    %1867 = vmatpush.bf16.msra.mxu0 %v1302
    %1868 = vmatpush.bf16.msra.mxu0 %v1294
    %1869 = vmatmul.bf16.gmra.mxu0 %v247
    %v1870 = vpop.f32.mrf.mxu0
    %v1871 = vadd.f32 %v510, %v1870
    %v1872 = vpop.f32.mrf.mxu0
    %v1873 = vadd.f32 %v510, %v1872
    %1874 = vdwg.mxu0
    %1875 = vmatpush.bf16.msra.mxu0 %v1414
    %1876 = vmatpush.bf16.msra.mxu0 %v1406
    %1877 = vmatpush.bf16.msra.mxu0 %v1398
    %1878 = vmatpush.bf16.msra.mxu0 %v1390
    %1879 = vmatpush.bf16.msra.mxu0 %v1382
    %1880 = vmatpush.bf16.msra.mxu0 %v1374
    %1881 = vmatpush.bf16.msra.mxu0 %v1366
    %1882 = vmatpush.bf16.msra.mxu0 %v1358
    %1883 = vmatmul.bf16.gmra.mxu0 %v248
    %v1884 = vpop.f32.mrf.mxu0
    %v1885 = vadd.f32 %v1871, %v1884
    %v1886 = vpop.f32.mrf.mxu0
    %v1887 = vadd.f32 %v1873, %v1886
    %1888 = vdwg.mxu0
    %1889 = vmatpush.bf16.msra.mxu0 %v1478
    %1890 = vmatpush.bf16.msra.mxu0 %v1470
    %1891 = vmatpush.bf16.msra.mxu0 %v1462
    %1892 = vmatpush.bf16.msra.mxu0 %v1454
    %1893 = vmatpush.bf16.msra.mxu0 %v1446
    %1894 = vmatpush.bf16.msra.mxu0 %v1438
    %1895 = vmatpush.bf16.msra.mxu0 %v1430
    %1896 = vmatpush.bf16.msra.mxu0 %v1422
    %1897 = vmatmul.bf16.gmra.mxu0 %v249
    %v1898 = vpop.f32.mrf.mxu0
    %v1899 = vadd.f32 %v1885, %v1898
    %v1900 = vpop.f32.mrf.mxu0
    %v1901 = vadd.f32 %v1887, %v1900
    %1902 = vdwg.mxu0
    %1903 = vmatpush.bf16.msra.mxu0 %v1542
    %1904 = vmatpush.bf16.msra.mxu0 %v1534
    %1905 = vmatpush.bf16.msra.mxu0 %v1526
    %1906 = vmatpush.bf16.msra.mxu0 %v1518
    %1907 = vmatpush.bf16.msra.mxu0 %v1510
    %1908 = vmatpush.bf16.msra.mxu0 %v1502
    %1909 = vmatpush.bf16.msra.mxu0 %v1494
    %1910 = vmatpush.bf16.msra.mxu0 %v1486
    %1911 = vmatmul.bf16.gmra.mxu0 %v250
    %v1912 = vpop.f32.mrf.mxu0
    %v1913 = vadd.f32 %v1899, %v1912
    %v1914 = vpop.f32.mrf.mxu0
    %v1915 = vadd.f32 %v1901, %v1914
    %1916 = vdwg.mxu0
    %1917 = vmatpush.bf16.msra.mxu0 %v1351
    %1918 = vmatpush.bf16.msra.mxu0 %v1343
    %1919 = vmatpush.bf16.msra.mxu0 %v1335
    %1920 = vmatpush.bf16.msra.mxu0 %v1327
    %1921 = vmatpush.bf16.msra.mxu0 %v1319
    %1922 = vmatpush.bf16.msra.mxu0 %v1311
    %1923 = vmatpush.bf16.msra.mxu0 %v1303
    %1924 = vmatpush.bf16.msra.mxu0 %v1295
    %1925 = vmatmul.bf16.gmra.mxu0 %v247
    %v1926 = vpop.f32.mrf.mxu0
    %v1927 = vadd.f32 %v511, %v1926
    %v1928 = vpop.f32.mrf.mxu0
    %v1929 = vadd.f32 %v511, %v1928
    %1930 = vdwg.mxu0
    %1931 = vmatpush.bf16.msra.mxu0 %v1415
    %1932 = vmatpush.bf16.msra.mxu0 %v1407
    %1933 = vmatpush.bf16.msra.mxu0 %v1399
    %1934 = vmatpush.bf16.msra.mxu0 %v1391
    %1935 = vmatpush.bf16.msra.mxu0 %v1383
    %1936 = vmatpush.bf16.msra.mxu0 %v1375
    %1937 = vmatpush.bf16.msra.mxu0 %v1367
    %1938 = vmatpush.bf16.msra.mxu0 %v1359
    %1939 = vmatmul.bf16.gmra.mxu0 %v248
    %v1940 = vpop.f32.mrf.mxu0
    %v1941 = vadd.f32 %v1927, %v1940
    %v1942 = vpop.f32.mrf.mxu0
    %v1943 = vadd.f32 %v1929, %v1942
    %1944 = vdwg.mxu0
    %1945 = vmatpush.bf16.msra.mxu0 %v1479
    %1946 = vmatpush.bf16.msra.mxu0 %v1471
    %1947 = vmatpush.bf16.msra.mxu0 %v1463
    %1948 = vmatpush.bf16.msra.mxu0 %v1455
    %1949 = vmatpush.bf16.msra.mxu0 %v1447
    %1950 = vmatpush.bf16.msra.mxu0 %v1439
    %1951 = vmatpush.bf16.msra.mxu0 %v1431
    %1952 = vmatpush.bf16.msra.mxu0 %v1423
    %1953 = vmatmul.bf16.gmra.mxu0 %v249
    %v1954 = vpop.f32.mrf.mxu0
    %v1955 = vadd.f32 %v1941, %v1954
    %v1956 = vpop.f32.mrf.mxu0
    %v1957 = vadd.f32 %v1943, %v1956
    %1958 = vdwg.mxu0
    %1959 = vmatpush.bf16.msra.mxu0 %v1543
    %1960 = vmatpush.bf16.msra.mxu0 %v1535
    %1961 = vmatpush.bf16.msra.mxu0 %v1527
    %1962 = vmatpush.bf16.msra.mxu0 %v1519
    %1963 = vmatpush.bf16.msra.mxu0 %v1511
    %1964 = vmatpush.bf16.msra.mxu0 %v1503
    %1965 = vmatpush.bf16.msra.mxu0 %v1495
    %1966 = vmatpush.bf16.msra.mxu0 %v1487
    %1967 = vmatmul.bf16.gmra.mxu0 %v250
    %v1968 = vpop.f32.mrf.mxu0
    %v1969 = vadd.f32 %v1955, %v1968
    %v1970 = vpop.f32.mrf.mxu0
    %v1971 = vadd.f32 %v1957, %v1970
    %1972 = vdwg.mxu0
    %1973 = vmatpush.bf16.msra.mxu0 %v1352
    %1974 = vmatpush.bf16.msra.mxu0 %v1344
    %1975 = vmatpush.bf16.msra.mxu0 %v1336
    %1976 = vmatpush.bf16.msra.mxu0 %v1328
    %1977 = vmatpush.bf16.msra.mxu0 %v1320
    %1978 = vmatpush.bf16.msra.mxu0 %v1312
    %1979 = vmatpush.bf16.msra.mxu0 %v1304
    %1980 = vmatpush.bf16.msra.mxu0 %v1296
    %1981 = vmatmul.bf16.gmra.mxu0 %v247
    %v1982 = vpop.f32.mrf.mxu0
    %v1983 = vadd.f32 %v512, %v1982
    %v1984 = vpop.f32.mrf.mxu0
    %v1985 = vadd.f32 %v512, %v1984
    %1986 = vdwg.mxu0
    %1987 = vmatpush.bf16.msra.mxu0 %v1416
    %1988 = vmatpush.bf16.msra.mxu0 %v1408
    %1989 = vmatpush.bf16.msra.mxu0 %v1400
    %1990 = vmatpush.bf16.msra.mxu0 %v1392
    %1991 = vmatpush.bf16.msra.mxu0 %v1384
    %1992 = vmatpush.bf16.msra.mxu0 %v1376
    %1993 = vmatpush.bf16.msra.mxu0 %v1368
    %1994 = vmatpush.bf16.msra.mxu0 %v1360
    %1995 = vmatmul.bf16.gmra.mxu0 %v248
    %v1996 = vpop.f32.mrf.mxu0
    %v1997 = vadd.f32 %v1983, %v1996
    %v1998 = vpop.f32.mrf.mxu0
    %v1999 = vadd.f32 %v1985, %v1998
    %2000 = vdwg.mxu0
    %2001 = vmatpush.bf16.msra.mxu0 %v1480
    %2002 = vmatpush.bf16.msra.mxu0 %v1472
    %2003 = vmatpush.bf16.msra.mxu0 %v1464
    %2004 = vmatpush.bf16.msra.mxu0 %v1456
    %2005 = vmatpush.bf16.msra.mxu0 %v1448
    %2006 = vmatpush.bf16.msra.mxu0 %v1440
    %2007 = vmatpush.bf16.msra.mxu0 %v1432
    %2008 = vmatpush.bf16.msra.mxu0 %v1424
    %2009 = vmatmul.bf16.gmra.mxu0 %v249
    %v2010 = vpop.f32.mrf.mxu0
    %v2011 = vadd.f32 %v1997, %v2010
    %v2012 = vpop.f32.mrf.mxu0
    %v2013 = vadd.f32 %v1999, %v2012
    %2014 = vdwg.mxu0
    %2015 = vmatpush.bf16.msra.mxu0 %v1544
    %2016 = vmatpush.bf16.msra.mxu0 %v1536
    %2017 = vmatpush.bf16.msra.mxu0 %v1528
    %2018 = vmatpush.bf16.msra.mxu0 %v1520
    %2019 = vmatpush.bf16.msra.mxu0 %v1512
    %2020 = vmatpush.bf16.msra.mxu0 %v1504
    %2021 = vmatpush.bf16.msra.mxu0 %v1496
    %2022 = vmatpush.bf16.msra.mxu0 %v1488
    %2023 = vmatmul.bf16.gmra.mxu0 %v250
    %v2024 = vpop.f32.mrf.mxu0
    %v2025 = vadd.f32 %v2011, %v2024
    %v2026 = vpop.f32.mrf.mxu0
    %v2027 = vadd.f32 %v2013, %v2026
    %2028 = vdwg.mxu0
    %2029 = vmatpush.bf16.msra.mxu0 %v1353
    %2030 = vmatpush.bf16.msra.mxu0 %v1345
    %2031 = vmatpush.bf16.msra.mxu0 %v1337
    %2032 = vmatpush.bf16.msra.mxu0 %v1329
    %2033 = vmatpush.bf16.msra.mxu0 %v1321
    %2034 = vmatpush.bf16.msra.mxu0 %v1313
    %2035 = vmatpush.bf16.msra.mxu0 %v1305
    %2036 = vmatpush.bf16.msra.mxu0 %v1297
    %2037 = vmatmul.bf16.gmra.mxu0 %v247
    %v2038 = vpop.f32.mrf.mxu0
    %v2039 = vadd.f32 %v513, %v2038
    %v2040 = vpop.f32.mrf.mxu0
    %v2041 = vadd.f32 %v513, %v2040
    %2042 = vdwg.mxu0
    %2043 = vmatpush.bf16.msra.mxu0 %v1417
    %2044 = vmatpush.bf16.msra.mxu0 %v1409
    %2045 = vmatpush.bf16.msra.mxu0 %v1401
    %2046 = vmatpush.bf16.msra.mxu0 %v1393
    %2047 = vmatpush.bf16.msra.mxu0 %v1385
    %2048 = vmatpush.bf16.msra.mxu0 %v1377
    %2049 = vmatpush.bf16.msra.mxu0 %v1369
    %2050 = vmatpush.bf16.msra.mxu0 %v1361
    %2051 = vmatmul.bf16.gmra.mxu0 %v248
    %v2052 = vpop.f32.mrf.mxu0
    %v2053 = vadd.f32 %v2039, %v2052
    %v2054 = vpop.f32.mrf.mxu0
    %v2055 = vadd.f32 %v2041, %v2054
    %2056 = vdwg.mxu0
    %2057 = vmatpush.bf16.msra.mxu0 %v1481
    %2058 = vmatpush.bf16.msra.mxu0 %v1473
    %2059 = vmatpush.bf16.msra.mxu0 %v1465
    %2060 = vmatpush.bf16.msra.mxu0 %v1457
    %2061 = vmatpush.bf16.msra.mxu0 %v1449
    %2062 = vmatpush.bf16.msra.mxu0 %v1441
    %2063 = vmatpush.bf16.msra.mxu0 %v1433
    %2064 = vmatpush.bf16.msra.mxu0 %v1425
    %2065 = vmatmul.bf16.gmra.mxu0 %v249
    %v2066 = vpop.f32.mrf.mxu0
    %v2067 = vadd.f32 %v2053, %v2066
    %v2068 = vpop.f32.mrf.mxu0
    %v2069 = vadd.f32 %v2055, %v2068
    %2070 = vdwg.mxu0
    %2071 = vmatpush.bf16.msra.mxu0 %v1545
    %2072 = vmatpush.bf16.msra.mxu0 %v1537
    %2073 = vmatpush.bf16.msra.mxu0 %v1529
    %2074 = vmatpush.bf16.msra.mxu0 %v1521
    %2075 = vmatpush.bf16.msra.mxu0 %v1513
    %2076 = vmatpush.bf16.msra.mxu0 %v1505
    %2077 = vmatpush.bf16.msra.mxu0 %v1497
    %2078 = vmatpush.bf16.msra.mxu0 %v1489
    %2079 = vmatmul.bf16.gmra.mxu0 %v250
    %v2080 = vpop.f32.mrf.mxu0
    %v2081 = vadd.f32 %v2067, %v2080
    %v2082 = vpop.f32.mrf.mxu0
    %v2083 = vadd.f32 %v2069, %v2082
    %2084 = vdwg.mxu0
    %2085 = vmatpush.bf16.msra.mxu0 %v1354
    %2086 = vmatpush.bf16.msra.mxu0 %v1346
    %2087 = vmatpush.bf16.msra.mxu0 %v1338
    %2088 = vmatpush.bf16.msra.mxu0 %v1330
    %2089 = vmatpush.bf16.msra.mxu0 %v1322
    %2090 = vmatpush.bf16.msra.mxu0 %v1314
    %2091 = vmatpush.bf16.msra.mxu0 %v1306
    %2092 = vmatpush.bf16.msra.mxu0 %v1298
    %2093 = vmatmul.bf16.gmra.mxu0 %v247
    %v2094 = vpop.f32.mrf.mxu0
    %v2095 = vadd.f32 %v514, %v2094
    %v2096 = vpop.f32.mrf.mxu0
    %v2097 = vadd.f32 %v514, %v2096
    %2098 = vdwg.mxu0
    %2099 = vmatpush.bf16.msra.mxu0 %v1418
    %2100 = vmatpush.bf16.msra.mxu0 %v1410
    %2101 = vmatpush.bf16.msra.mxu0 %v1402
    %2102 = vmatpush.bf16.msra.mxu0 %v1394
    %2103 = vmatpush.bf16.msra.mxu0 %v1386
    %2104 = vmatpush.bf16.msra.mxu0 %v1378
    %2105 = vmatpush.bf16.msra.mxu0 %v1370
    %2106 = vmatpush.bf16.msra.mxu0 %v1362
    %2107 = vmatmul.bf16.gmra.mxu0 %v248
    %v2108 = vpop.f32.mrf.mxu0
    %v2109 = vadd.f32 %v2095, %v2108
    %v2110 = vpop.f32.mrf.mxu0
    %v2111 = vadd.f32 %v2097, %v2110
    %2112 = vdwg.mxu0
    %2113 = vmatpush.bf16.msra.mxu0 %v1482
    %2114 = vmatpush.bf16.msra.mxu0 %v1474
    %2115 = vmatpush.bf16.msra.mxu0 %v1466
    %2116 = vmatpush.bf16.msra.mxu0 %v1458
    %2117 = vmatpush.bf16.msra.mxu0 %v1450
    %2118 = vmatpush.bf16.msra.mxu0 %v1442
    %2119 = vmatpush.bf16.msra.mxu0 %v1434
    %2120 = vmatpush.bf16.msra.mxu0 %v1426
    %2121 = vmatmul.bf16.gmra.mxu0 %v249
    %v2122 = vpop.f32.mrf.mxu0
    %v2123 = vadd.f32 %v2109, %v2122
    %v2124 = vpop.f32.mrf.mxu0
    %v2125 = vadd.f32 %v2111, %v2124
    %2126 = vdwg.mxu0
    %2127 = vmatpush.bf16.msra.mxu0 %v1546
    %2128 = vmatpush.bf16.msra.mxu0 %v1538
    %2129 = vmatpush.bf16.msra.mxu0 %v1530
    %2130 = vmatpush.bf16.msra.mxu0 %v1522
    %2131 = vmatpush.bf16.msra.mxu0 %v1514
    %2132 = vmatpush.bf16.msra.mxu0 %v1506
    %2133 = vmatpush.bf16.msra.mxu0 %v1498
    %2134 = vmatpush.bf16.msra.mxu0 %v1490
    %2135 = vmatmul.bf16.gmra.mxu0 %v250
    %v2136 = vpop.f32.mrf.mxu0
    %v2137 = vadd.f32 %v2123, %v2136
    %v2138 = vpop.f32.mrf.mxu0
    %v2139 = vadd.f32 %v2125, %v2138
    %2140 = vdwg.mxu0
    %2141 = vmatpush.bf16.msra.mxu0 %v1355
    %2142 = vmatpush.bf16.msra.mxu0 %v1347
    %2143 = vmatpush.bf16.msra.mxu0 %v1339
    %2144 = vmatpush.bf16.msra.mxu0 %v1331
    %2145 = vmatpush.bf16.msra.mxu0 %v1323
    %2146 = vmatpush.bf16.msra.mxu0 %v1315
    %2147 = vmatpush.bf16.msra.mxu0 %v1307
    %2148 = vmatpush.bf16.msra.mxu0 %v1299
    %2149 = vmatmul.bf16.gmra.mxu0 %v247
    %v2150 = vpop.f32.mrf.mxu0
    %v2151 = vadd.f32 %v515, %v2150
    %v2152 = vpop.f32.mrf.mxu0
    %v2153 = vadd.f32 %v515, %v2152
    %2154 = vdwg.mxu0
    %2155 = vmatpush.bf16.msra.mxu0 %v1419
    %2156 = vmatpush.bf16.msra.mxu0 %v1411
    %2157 = vmatpush.bf16.msra.mxu0 %v1403
    %2158 = vmatpush.bf16.msra.mxu0 %v1395
    %2159 = vmatpush.bf16.msra.mxu0 %v1387
    %2160 = vmatpush.bf16.msra.mxu0 %v1379
    %2161 = vmatpush.bf16.msra.mxu0 %v1371
    %2162 = vmatpush.bf16.msra.mxu0 %v1363
    %2163 = vmatmul.bf16.gmra.mxu0 %v248
    %v2164 = vpop.f32.mrf.mxu0
    %v2165 = vadd.f32 %v2151, %v2164
    %v2166 = vpop.f32.mrf.mxu0
    %v2167 = vadd.f32 %v2153, %v2166
    %2168 = vdwg.mxu0
    %2169 = vmatpush.bf16.msra.mxu0 %v1483
    %2170 = vmatpush.bf16.msra.mxu0 %v1475
    %2171 = vmatpush.bf16.msra.mxu0 %v1467
    %2172 = vmatpush.bf16.msra.mxu0 %v1459
    %2173 = vmatpush.bf16.msra.mxu0 %v1451
    %2174 = vmatpush.bf16.msra.mxu0 %v1443
    %2175 = vmatpush.bf16.msra.mxu0 %v1435
    %2176 = vmatpush.bf16.msra.mxu0 %v1427
    %2177 = vmatmul.bf16.gmra.mxu0 %v249
    %v2178 = vpop.f32.mrf.mxu0
    %v2179 = vadd.f32 %v2165, %v2178
    %v2180 = vpop.f32.mrf.mxu0
    %v2181 = vadd.f32 %v2167, %v2180
    %2182 = vdwg.mxu0
    %2183 = vmatpush.bf16.msra.mxu0 %v1547
    %2184 = vmatpush.bf16.msra.mxu0 %v1539
    %2185 = vmatpush.bf16.msra.mxu0 %v1531
    %2186 = vmatpush.bf16.msra.mxu0 %v1523
    %2187 = vmatpush.bf16.msra.mxu0 %v1515
    %2188 = vmatpush.bf16.msra.mxu0 %v1507
    %2189 = vmatpush.bf16.msra.mxu0 %v1499
    %2190 = vmatpush.bf16.msra.mxu0 %v1491
    %2191 = vmatmul.bf16.gmra.mxu0 %v250
    %v2192 = vpop.f32.mrf.mxu0
    %v2193 = vadd.f32 %v2179, %v2192
    %v2194 = vpop.f32.mrf.mxu0
    %v2195 = vadd.f32 %v2181, %v2194
    %2196 = vdwg.mxu0
    %2197 = vmatpush.bf16.msra.mxu0 %v1356
    %2198 = vmatpush.bf16.msra.mxu0 %v1348
    %2199 = vmatpush.bf16.msra.mxu0 %v1340
    %2200 = vmatpush.bf16.msra.mxu0 %v1332
    %2201 = vmatpush.bf16.msra.mxu0 %v1324
    %2202 = vmatpush.bf16.msra.mxu0 %v1316
    %2203 = vmatpush.bf16.msra.mxu0 %v1308
    %2204 = vmatpush.bf16.msra.mxu0 %v1300
    %2205 = vmatmul.bf16.gmra.mxu0 %v247
    %v2206 = vpop.f32.mrf.mxu0
    %v2207 = vadd.f32 %v516, %v2206
    %v2208 = vpop.f32.mrf.mxu0
    %v2209 = vadd.f32 %v516, %v2208
    %2210 = vdwg.mxu0
    %2211 = vmatpush.bf16.msra.mxu0 %v1420
    %2212 = vmatpush.bf16.msra.mxu0 %v1412
    %2213 = vmatpush.bf16.msra.mxu0 %v1404
    %2214 = vmatpush.bf16.msra.mxu0 %v1396
    %2215 = vmatpush.bf16.msra.mxu0 %v1388
    %2216 = vmatpush.bf16.msra.mxu0 %v1380
    %2217 = vmatpush.bf16.msra.mxu0 %v1372
    %2218 = vmatpush.bf16.msra.mxu0 %v1364
    %2219 = vmatmul.bf16.gmra.mxu0 %v248
    %v2220 = vpop.f32.mrf.mxu0
    %v2221 = vadd.f32 %v2207, %v2220
    %v2222 = vpop.f32.mrf.mxu0
    %v2223 = vadd.f32 %v2209, %v2222
    %2224 = vdwg.mxu0
    %2225 = vmatpush.bf16.msra.mxu0 %v1484
    %2226 = vmatpush.bf16.msra.mxu0 %v1476
    %2227 = vmatpush.bf16.msra.mxu0 %v1468
    %2228 = vmatpush.bf16.msra.mxu0 %v1460
    %2229 = vmatpush.bf16.msra.mxu0 %v1452
    %2230 = vmatpush.bf16.msra.mxu0 %v1444
    %2231 = vmatpush.bf16.msra.mxu0 %v1436
    %2232 = vmatpush.bf16.msra.mxu0 %v1428
    %2233 = vmatmul.bf16.gmra.mxu0 %v249
    %v2234 = vpop.f32.mrf.mxu0
    %v2235 = vadd.f32 %v2221, %v2234
    %v2236 = vpop.f32.mrf.mxu0
    %v2237 = vadd.f32 %v2223, %v2236
    %2238 = vdwg.mxu0
    %2239 = vmatpush.bf16.msra.mxu0 %v1548
    %2240 = vmatpush.bf16.msra.mxu0 %v1540
    %2241 = vmatpush.bf16.msra.mxu0 %v1532
    %2242 = vmatpush.bf16.msra.mxu0 %v1524
    %2243 = vmatpush.bf16.msra.mxu0 %v1516
    %2244 = vmatpush.bf16.msra.mxu0 %v1508
    %2245 = vmatpush.bf16.msra.mxu0 %v1500
    %2246 = vmatpush.bf16.msra.mxu0 %v1492
    %2247 = vmatmul.bf16.gmra.mxu0 %v250
    %v2248 = vpop.f32.mrf.mxu0
    %v2249 = vadd.f32 %v2235, %v2248
    %v2250 = vpop.f32.mrf.mxu0
    %v2251 = vadd.f32 %v2237, %v2250
    %2252 = vdwg.mxu0
    %v2253 = vmax.f32 %v1857, 0.0
    %v2254 = vmax.f32 %v1913, 0.0
    %v2255 = vmax.f32 %v1969, 0.0
    %v2256 = vmax.f32 %v2025, 0.0
    %v2257 = vmax.f32 %v2081, 0.0
    %v2258 = vmax.f32 %v2137, 0.0
    %v2259 = vmax.f32 %v2193, 0.0
    %v2260 = vmax.f32 %v2249, 0.0
    %v2261 = vmax.f32 %v1859, 0.0
    %v2262 = vmax.f32 %v1915, 0.0
    %v2263 = vmax.f32 %v1971, 0.0
    %v2264 = vmax.f32 %v2027, 0.0
    %v2265 = vmax.f32 %v2083, 0.0
    %v2266 = vmax.f32 %v2139, 0.0
    %v2267 = vmax.f32 %v2195, 0.0
    %v2268 = vmax.f32 %v2251, 0.0
    %v2269 = vpack.c.bf16 %v2261, %v2253
    %v2270 = vpack.c.bf16 %v2262, %v2254
    %v2271 = vpack.c.bf16 %v2263, %v2255
    %v2272 = vpack.c.bf16 %v2264, %v2256
    %v2273 = vpack.c.bf16 %v2265, %v2257
    %v2274 = vpack.c.bf16 %v2266, %v2258
    %v2275 = vpack.c.bf16 %v2267, %v2259
    %v2276 = vpack.c.bf16 %v2268, %v2260
    %v2277 = vld [vmem:[#allocation11] sm:$0xf]
    %v2278 = vld [vmem:[#allocation11 + $0x4] sm:$0xf]
    %v2279 = vld [vmem:[#allocation11 + $0x8] sm:$0xf]
    %v2280 = vld [vmem:[#allocation11 + $0xc] sm:$0xf]
    %v2281 = vld [vmem:[#allocation11 + $0x10] sm:$0xf]
    %v2282 = vld [vmem:[#allocation11 + $0x14] sm:$0xf]
    %v2283 = vld [vmem:[#allocation11 + $0x18] sm:$0xf]
    %v2284 = vld [vmem:[#allocation11 + $0x1c] sm:$0xf]
    %v2285 = vld [vmem:[#allocation11 + $0x20] sm:$0xf]
    %v2286 = vld [vmem:[#allocation11 + $0x24] sm:$0xf]
    %v2287 = vld [vmem:[#allocation11 + $0x28] sm:$0xf]
    %v2288 = vld [vmem:[#allocation11 + $0x2c] sm:$0xf]
    %v2289 = vld [vmem:[#allocation11 + $0x30] sm:$0xf]
    %v2290 = vld [vmem:[#allocation11 + $0x34] sm:$0xf]
    %v2291 = vld [vmem:[#allocation11 + $0x38] sm:$0xf]
    %v2292 = vld [vmem:[#allocation11 + $0x3c] sm:$0xf]
    %v2293 = vld [vmem:[#allocation11 + $0x40] sm:$0xf]
    %v2294 = vld [vmem:[#allocation11 + $0x44] sm:$0xf]
    %v2295 = vld [vmem:[#allocation11 + $0x48] sm:$0xf]
    %v2296 = vld [vmem:[#allocation11 + $0x4c] sm:$0xf]
    %v2297 = vld [vmem:[#allocation11 + $0x50] sm:$0xf]
    %v2298 = vld [vmem:[#allocation11 + $0x54] sm:$0xf]
    %v2299 = vld [vmem:[#allocation11 + $0x58] sm:$0xf]
    %v2300 = vld [vmem:[#allocation11 + $0x5c] sm:$0xf]
    %v2301 = vld [vmem:[#allocation11 + $0x60] sm:$0xf]
    %v2302 = vld [vmem:[#allocation11 + $0x64] sm:$0xf]
    %v2303 = vld [vmem:[#allocation11 + $0x68] sm:$0xf]
    %v2304 = vld [vmem:[#allocation11 + $0x6c] sm:$0xf]
    %v2305 = vld [vmem:[#allocation11 + $0x70] sm:$0xf]
    %v2306 = vld [vmem:[#allocation11 + $0x74] sm:$0xf]
    %v2307 = vld [vmem:[#allocation11 + $0x78] sm:$0xf]
    %v2308 = vld [vmem:[#allocation11 + $0x7c] sm:$0xf]
    %v2309 = vld [vmem:[#allocation11 + $0x80] sm:$0xf]
    %v2310 = vld [vmem:[#allocation11 + $0x84] sm:$0xf]
    %v2311 = vld [vmem:[#allocation11 + $0x88] sm:$0xf]
    %v2312 = vld [vmem:[#allocation11 + $0x8c] sm:$0xf]
    %v2313 = vld [vmem:[#allocation11 + $0x90] sm:$0xf]
    %v2314 = vld [vmem:[#allocation11 + $0x94] sm:$0xf]
    %v2315 = vld [vmem:[#allocation11 + $0x98] sm:$0xf]
    %v2316 = vld [vmem:[#allocation11 + $0x9c] sm:$0xf]
    %v2317 = vld [vmem:[#allocation11 + $0xa0] sm:$0xf]
    %v2318 = vld [vmem:[#allocation11 + $0xa4] sm:$0xf]
    %v2319 = vld [vmem:[#allocation11 + $0xa8] sm:$0xf]
    %v2320 = vld [vmem:[#allocation11 + $0xac] sm:$0xf]
    %v2321 = vld [vmem:[#allocation11 + $0xb0] sm:$0xf]
    %v2322 = vld [vmem:[#allocation11 + $0xb4] sm:$0xf]
    %v2323 = vld [vmem:[#allocation11 + $0xb8] sm:$0xf]
    %v2324 = vld [vmem:[#allocation11 + $0xbc] sm:$0xf]
    %v2325 = vld [vmem:[#allocation11 + $0xc0] sm:$0xf]
    %v2326 = vld [vmem:[#allocation11 + $0xc4] sm:$0xf]
    %v2327 = vld [vmem:[#allocation11 + $0xc8] sm:$0xf]
    %v2328 = vld [vmem:[#allocation11 + $0xcc] sm:$0xf]
    %v2329 = vld [vmem:[#allocation11 + $0xd0] sm:$0xf]
    %v2330 = vld [vmem:[#allocation11 + $0xd4] sm:$0xf]
    %v2331 = vld [vmem:[#allocation11 + $0xd8] sm:$0xf]
    %v2332 = vld [vmem:[#allocation11 + $0xdc] sm:$0xf]
    %v2333 = vld [vmem:[#allocation11 + $0xe0] sm:$0xf]
    %v2334 = vld [vmem:[#allocation11 + $0xe4] sm:$0xf]
    %v2335 = vld [vmem:[#allocation11 + $0xe8] sm:$0xf]
    %v2336 = vld [vmem:[#allocation11 + $0xec] sm:$0xf]
    %v2337 = vld [vmem:[#allocation11 + $0xf0] sm:$0xf]
    %v2338 = vld [vmem:[#allocation11 + $0xf4] sm:$0xf]
    %v2339 = vld [vmem:[#allocation11 + $0xf8] sm:$0xf]
    %v2340 = vld [vmem:[#allocation11 + $0xfc] sm:$0xf]
    %v2341 = vld [vmem:[#allocation11 + $0x100] sm:$0xf]
    %v2342 = vld [vmem:[#allocation11 + $0x104] sm:$0xf]
    %v2343 = vld [vmem:[#allocation11 + $0x108] sm:$0xf]
    %v2344 = vld [vmem:[#allocation11 + $0x10c] sm:$0xf]
    %v2345 = vld [vmem:[#allocation11 + $0x110] sm:$0xf]
    %v2346 = vld [vmem:[#allocation11 + $0x114] sm:$0xf]
    %v2347 = vld [vmem:[#allocation11 + $0x118] sm:$0xf]
    %v2348 = vld [vmem:[#allocation11 + $0x11c] sm:$0xf]
    %v2349 = vld [vmem:[#allocation11 + $0x120] sm:$0xf]
    %v2350 = vld [vmem:[#allocation11 + $0x124] sm:$0xf]
    %v2351 = vld [vmem:[#allocation11 + $0x128] sm:$0xf]
    %v2352 = vld [vmem:[#allocation11 + $0x12c] sm:$0xf]
    %v2353 = vld [vmem:[#allocation11 + $0x130] sm:$0xf]
    %v2354 = vld [vmem:[#allocation11 + $0x134] sm:$0xf]
    %v2355 = vld [vmem:[#allocation11 + $0x138] sm:$0xf]
    %v2356 = vld [vmem:[#allocation11 + $0x13c] sm:$0xf]
    %v2357 = vld [vmem:[#allocation11 + $0x140] sm:$0xf]
    %v2358 = vld [vmem:[#allocation11 + $0x144] sm:$0xf]
    %v2359 = vld [vmem:[#allocation11 + $0x148] sm:$0xf]
    %v2360 = vld [vmem:[#allocation11 + $0x14c] sm:$0xf]
    %v2361 = vld [vmem:[#allocation11 + $0x150] sm:$0xf]
    %v2362 = vld [vmem:[#allocation11 + $0x154] sm:$0xf]
    %v2363 = vld [vmem:[#allocation11 + $0x158] sm:$0xf]
    %v2364 = vld [vmem:[#allocation11 + $0x15c] sm:$0xf]
    %v2365 = vld [vmem:[#allocation11 + $0x160] sm:$0xf]
    %v2366 = vld [vmem:[#allocation11 + $0x164] sm:$0xf]
    %v2367 = vld [vmem:[#allocation11 + $0x168] sm:$0xf]
    %v2368 = vld [vmem:[#allocation11 + $0x16c] sm:$0xf]
    %v2369 = vld [vmem:[#allocation11 + $0x170] sm:$0xf]
    %v2370 = vld [vmem:[#allocation11 + $0x174] sm:$0xf]
    %v2371 = vld [vmem:[#allocation11 + $0x178] sm:$0xf]
    %v2372 = vld [vmem:[#allocation11 + $0x17c] sm:$0xf]
    %v2373 = vld [vmem:[#allocation11 + $0x180] sm:$0xf]
    %v2374 = vld [vmem:[#allocation11 + $0x184] sm:$0xf]
    %v2375 = vld [vmem:[#allocation11 + $0x188] sm:$0xf]
    %v2376 = vld [vmem:[#allocation11 + $0x18c] sm:$0xf]
    %v2377 = vld [vmem:[#allocation11 + $0x190] sm:$0xf]
    %v2378 = vld [vmem:[#allocation11 + $0x194] sm:$0xf]
    %v2379 = vld [vmem:[#allocation11 + $0x198] sm:$0xf]
    %v2380 = vld [vmem:[#allocation11 + $0x19c] sm:$0xf]
    %v2381 = vld [vmem:[#allocation11 + $0x1a0] sm:$0xf]
    %v2382 = vld [vmem:[#allocation11 + $0x1a4] sm:$0xf]
    %v2383 = vld [vmem:[#allocation11 + $0x1a8] sm:$0xf]
    %v2384 = vld [vmem:[#allocation11 + $0x1ac] sm:$0xf]
    %v2385 = vld [vmem:[#allocation11 + $0x1b0] sm:$0xf]
    %v2386 = vld [vmem:[#allocation11 + $0x1b4] sm:$0xf]
    %v2387 = vld [vmem:[#allocation11 + $0x1b8] sm:$0xf]
    %v2388 = vld [vmem:[#allocation11 + $0x1bc] sm:$0xf]
    %v2389 = vld [vmem:[#allocation11 + $0x1c0] sm:$0xf]
    %v2390 = vld [vmem:[#allocation11 + $0x1c4] sm:$0xf]
    %v2391 = vld [vmem:[#allocation11 + $0x1c8] sm:$0xf]
    %v2392 = vld [vmem:[#allocation11 + $0x1cc] sm:$0xf]
    %v2393 = vld [vmem:[#allocation11 + $0x1d0] sm:$0xf]
    %v2394 = vld [vmem:[#allocation11 + $0x1d4] sm:$0xf]
    %v2395 = vld [vmem:[#allocation11 + $0x1d8] sm:$0xf]
    %v2396 = vld [vmem:[#allocation11 + $0x1dc] sm:$0xf]
    %v2397 = vld [vmem:[#allocation11 + $0x1e0] sm:$0xf]
    %v2398 = vld [vmem:[#allocation11 + $0x1e4] sm:$0xf]
    %v2399 = vld [vmem:[#allocation11 + $0x1e8] sm:$0xf]
    %v2400 = vld [vmem:[#allocation11 + $0x1ec] sm:$0xf]
    %v2401 = vld [vmem:[#allocation11 + $0x1f0] sm:$0xf]
    %v2402 = vld [vmem:[#allocation11 + $0x1f4] sm:$0xf]
    %v2403 = vld [vmem:[#allocation11 + $0x1f8] sm:$0xf]
    %v2404 = vld [vmem:[#allocation11 + $0x1fc] sm:$0xf]
    %v2405 = vld [vmem:[%s6] sm:$0x1]
    %v2407 = vperm.slane %v2405, 0
    %v2537 = vunpack.c.l.b16 %v2277
    %v2538 = vunpack.c.l.b16 %v2278
    %v2539 = vunpack.c.l.b16 %v2279
    %v2540 = vunpack.c.l.b16 %v2280
    %v2541 = vunpack.c.l.b16 %v2281
    %v2542 = vunpack.c.l.b16 %v2282
    %v2543 = vunpack.c.l.b16 %v2283
    %v2544 = vunpack.c.l.b16 %v2284
    %v2545 = vunpack.c.l.b16 %v2285
    %v2546 = vunpack.c.l.b16 %v2286
    %v2547 = vunpack.c.l.b16 %v2287
    %v2548 = vunpack.c.l.b16 %v2288
    %v2549 = vunpack.c.l.b16 %v2289
    %v2550 = vunpack.c.l.b16 %v2290
    %v2551 = vunpack.c.l.b16 %v2291
    %v2552 = vunpack.c.l.b16 %v2292
    %v2553 = vunpack.c.l.b16 %v2293
    %v2554 = vunpack.c.l.b16 %v2294
    %v2555 = vunpack.c.l.b16 %v2295
    %v2556 = vunpack.c.l.b16 %v2296
    %v2557 = vunpack.c.l.b16 %v2297
    %v2558 = vunpack.c.l.b16 %v2298
    %v2559 = vunpack.c.l.b16 %v2299
    %v2560 = vunpack.c.l.b16 %v2300
    %v2561 = vunpack.c.l.b16 %v2301
    %v2562 = vunpack.c.l.b16 %v2302
    %v2563 = vunpack.c.l.b16 %v2303
    %v2564 = vunpack.c.l.b16 %v2304
    %v2565 = vunpack.c.l.b16 %v2305
    %v2566 = vunpack.c.l.b16 %v2306
    %v2567 = vunpack.c.l.b16 %v2307
    %v2568 = vunpack.c.l.b16 %v2308
    %v2569 = vunpack.c.l.b16 %v2309
    %v2570 = vunpack.c.l.b16 %v2310
    %v2571 = vunpack.c.l.b16 %v2311
    %v2572 = vunpack.c.l.b16 %v2312
    %v2573 = vunpack.c.l.b16 %v2313
    %v2574 = vunpack.c.l.b16 %v2314
    %v2575 = vunpack.c.l.b16 %v2315
    %v2576 = vunpack.c.l.b16 %v2316
    %v2577 = vunpack.c.l.b16 %v2317
    %v2578 = vunpack.c.l.b16 %v2318
    %v2579 = vunpack.c.l.b16 %v2319
    %v2580 = vunpack.c.l.b16 %v2320
    %v2581 = vunpack.c.l.b16 %v2321
    %v2582 = vunpack.c.l.b16 %v2322
    %v2583 = vunpack.c.l.b16 %v2323
    %v2584 = vunpack.c.l.b16 %v2324
    %v2585 = vunpack.c.l.b16 %v2325
    %v2586 = vunpack.c.l.b16 %v2326
    %v2587 = vunpack.c.l.b16 %v2327
    %v2588 = vunpack.c.l.b16 %v2328
    %v2589 = vunpack.c.l.b16 %v2329
    %v2590 = vunpack.c.l.b16 %v2330
    %v2591 = vunpack.c.l.b16 %v2331
    %v2592 = vunpack.c.l.b16 %v2332
    %v2593 = vunpack.c.l.b16 %v2333
    %v2594 = vunpack.c.l.b16 %v2334
    %v2595 = vunpack.c.l.b16 %v2335
    %v2596 = vunpack.c.l.b16 %v2336
    %v2597 = vunpack.c.l.b16 %v2337
    %v2598 = vunpack.c.l.b16 %v2338
    %v2599 = vunpack.c.l.b16 %v2339
    %v2600 = vunpack.c.l.b16 %v2340
    %v2601 = vunpack.c.l.b16 %v2341
    %v2602 = vunpack.c.l.b16 %v2342
    %v2603 = vunpack.c.l.b16 %v2343
    %v2604 = vunpack.c.l.b16 %v2344
    %v2605 = vunpack.c.l.b16 %v2345
    %v2606 = vunpack.c.l.b16 %v2346
    %v2607 = vunpack.c.l.b16 %v2347
    %v2608 = vunpack.c.l.b16 %v2348
    %v2609 = vunpack.c.l.b16 %v2349
    %v2610 = vunpack.c.l.b16 %v2350
    %v2611 = vunpack.c.l.b16 %v2351
    %v2612 = vunpack.c.l.b16 %v2352
    %v2613 = vunpack.c.l.b16 %v2353
    %v2614 = vunpack.c.l.b16 %v2354
    %v2615 = vunpack.c.l.b16 %v2355
    %v2616 = vunpack.c.l.b16 %v2356
    %v2617 = vunpack.c.l.b16 %v2357
    %v2618 = vunpack.c.l.b16 %v2358
    %v2619 = vunpack.c.l.b16 %v2359
    %v2620 = vunpack.c.l.b16 %v2360
    %v2621 = vunpack.c.l.b16 %v2361
    %v2622 = vunpack.c.l.b16 %v2362
    %v2623 = vunpack.c.l.b16 %v2363
    %v2624 = vunpack.c.l.b16 %v2364
    %v2625 = vunpack.c.l.b16 %v2365
    %v2626 = vunpack.c.l.b16 %v2366
    %v2627 = vunpack.c.l.b16 %v2367
    %v2628 = vunpack.c.l.b16 %v2368
    %v2629 = vunpack.c.l.b16 %v2369
    %v2630 = vunpack.c.l.b16 %v2370
    %v2631 = vunpack.c.l.b16 %v2371
    %v2632 = vunpack.c.l.b16 %v2372
    %v2633 = vunpack.c.l.b16 %v2373
    %v2634 = vunpack.c.l.b16 %v2374
    %v2635 = vunpack.c.l.b16 %v2375
    %v2636 = vunpack.c.l.b16 %v2376
    %v2637 = vunpack.c.l.b16 %v2377
    %v2638 = vunpack.c.l.b16 %v2378
    %v2639 = vunpack.c.l.b16 %v2379
    %v2640 = vunpack.c.l.b16 %v2380
    %v2641 = vunpack.c.l.b16 %v2381
    %v2642 = vunpack.c.l.b16 %v2382
    %v2643 = vunpack.c.l.b16 %v2383
    %v2644 = vunpack.c.l.b16 %v2384
    %v2645 = vunpack.c.l.b16 %v2385
    %v2646 = vunpack.c.l.b16 %v2386
    %v2647 = vunpack.c.l.b16 %v2387
    %v2648 = vunpack.c.l.b16 %v2388
    %v2649 = vunpack.c.l.b16 %v2389
    %v2650 = vunpack.c.l.b16 %v2390
    %v2651 = vunpack.c.l.b16 %v2391
    %v2652 = vunpack.c.l.b16 %v2392
    %v2653 = vunpack.c.l.b16 %v2393
    %v2654 = vunpack.c.l.b16 %v2394
    %v2655 = vunpack.c.l.b16 %v2395
    %v2656 = vunpack.c.l.b16 %v2396
    %v2657 = vunpack.c.l.b16 %v2397
    %v2658 = vunpack.c.l.b16 %v2398
    %v2659 = vunpack.c.l.b16 %v2399
    %v2660 = vunpack.c.l.b16 %v2400
    %v2661 = vunpack.c.l.b16 %v2401
    %v2662 = vunpack.c.l.b16 %v2402
    %v2663 = vunpack.c.l.b16 %v2403
    %v2664 = vunpack.c.l.b16 %v2404
    %v2665 = vpack.c.b16 %v2538, %v2537
    %v2666 = vpack.c.b16 %v2540, %v2539
    %v2667 = vpack.c.b16 %v2542, %v2541
    %v2668 = vpack.c.b16 %v2544, %v2543
    %v2669 = vpack.c.b16 %v2546, %v2545
    %v2670 = vpack.c.b16 %v2548, %v2547
    %v2671 = vpack.c.b16 %v2550, %v2549
    %v2672 = vpack.c.b16 %v2552, %v2551
    %v2673 = vpack.c.b16 %v2554, %v2553
    %v2674 = vpack.c.b16 %v2556, %v2555
    %v2675 = vpack.c.b16 %v2558, %v2557
    %v2676 = vpack.c.b16 %v2560, %v2559
    %v2677 = vpack.c.b16 %v2562, %v2561
    %v2678 = vpack.c.b16 %v2564, %v2563
    %v2679 = vpack.c.b16 %v2566, %v2565
    %v2680 = vpack.c.b16 %v2568, %v2567
    %v2681 = vpack.c.b16 %v2570, %v2569
    %v2682 = vpack.c.b16 %v2572, %v2571
    %v2683 = vpack.c.b16 %v2574, %v2573
    %v2684 = vpack.c.b16 %v2576, %v2575
    %v2685 = vpack.c.b16 %v2578, %v2577
    %v2686 = vpack.c.b16 %v2580, %v2579
    %v2687 = vpack.c.b16 %v2582, %v2581
    %v2688 = vpack.c.b16 %v2584, %v2583
    %v2689 = vpack.c.b16 %v2586, %v2585
    %v2690 = vpack.c.b16 %v2588, %v2587
    %v2691 = vpack.c.b16 %v2590, %v2589
    %v2692 = vpack.c.b16 %v2592, %v2591
    %v2693 = vpack.c.b16 %v2594, %v2593
    %v2694 = vpack.c.b16 %v2596, %v2595
    %v2695 = vpack.c.b16 %v2598, %v2597
    %v2696 = vpack.c.b16 %v2600, %v2599
    %v2697 = vpack.c.b16 %v2602, %v2601
    %v2698 = vpack.c.b16 %v2604, %v2603
    %v2699 = vpack.c.b16 %v2606, %v2605
    %v2700 = vpack.c.b16 %v2608, %v2607
    %v2701 = vpack.c.b16 %v2610, %v2609
    %v2702 = vpack.c.b16 %v2612, %v2611
    %v2703 = vpack.c.b16 %v2614, %v2613
    %v2704 = vpack.c.b16 %v2616, %v2615
    %v2705 = vpack.c.b16 %v2618, %v2617
    %v2706 = vpack.c.b16 %v2620, %v2619
    %v2707 = vpack.c.b16 %v2622, %v2621
    %v2708 = vpack.c.b16 %v2624, %v2623
    %v2709 = vpack.c.b16 %v2626, %v2625
    %v2710 = vpack.c.b16 %v2628, %v2627
    %v2711 = vpack.c.b16 %v2630, %v2629
    %v2712 = vpack.c.b16 %v2632, %v2631
    %v2713 = vpack.c.b16 %v2634, %v2633
    %v2714 = vpack.c.b16 %v2636, %v2635
    %v2715 = vpack.c.b16 %v2638, %v2637
    %v2716 = vpack.c.b16 %v2640, %v2639
    %v2717 = vpack.c.b16 %v2642, %v2641
    %v2718 = vpack.c.b16 %v2644, %v2643
    %v2719 = vpack.c.b16 %v2646, %v2645
    %v2720 = vpack.c.b16 %v2648, %v2647
    %v2721 = vpack.c.b16 %v2650, %v2649
    %v2722 = vpack.c.b16 %v2652, %v2651
    %v2723 = vpack.c.b16 %v2654, %v2653
    %v2724 = vpack.c.b16 %v2656, %v2655
    %v2725 = vpack.c.b16 %v2658, %v2657
    %v2726 = vpack.c.b16 %v2660, %v2659
    %v2727 = vpack.c.b16 %v2662, %v2661
    %v2728 = vpack.c.b16 %v2664, %v2663
    %2793 = vmatpush.bf16.msra.mxu0 %v2672
    %2794 = vmatpush.bf16.msra.mxu0 %v2671
    %2795 = vmatpush.bf16.msra.mxu0 %v2670
    %2796 = vmatpush.bf16.msra.mxu0 %v2669
    %2797 = vmatpush.bf16.msra.mxu0 %v2668
    %2798 = vmatpush.bf16.msra.mxu0 %v2667
    %2799 = vmatpush.bf16.msra.mxu0 %v2666
    %2800 = vmatpush.bf16.msra.mxu0 %v2665
    %2801 = vmatmul.bf16.gmra.mxu0 %v2269
    %v2802 = vpop.f32.mrf.mxu0
    %v2803 = vadd.f32 %v2407, %v2802
    %v2804 = vpop.f32.mrf.mxu0
    %v2805 = vadd.f32 %v2407, %v2804
    %2806 = vdwg.mxu0
    %2807 = vmatpush.bf16.msra.mxu0 %v2680
    %2808 = vmatpush.bf16.msra.mxu0 %v2679
    %2809 = vmatpush.bf16.msra.mxu0 %v2678
    %2810 = vmatpush.bf16.msra.mxu0 %v2677
    %2811 = vmatpush.bf16.msra.mxu0 %v2676
    %2812 = vmatpush.bf16.msra.mxu0 %v2675
    %2813 = vmatpush.bf16.msra.mxu0 %v2674
    %2814 = vmatpush.bf16.msra.mxu0 %v2673
    %2815 = vmatmul.bf16.gmra.mxu0 %v2270
    %v2816 = vpop.f32.mrf.mxu0
    %v2817 = vadd.f32 %v2803, %v2816
    %v2818 = vpop.f32.mrf.mxu0
    %v2819 = vadd.f32 %v2805, %v2818
    %2820 = vdwg.mxu0
    %2821 = vmatpush.bf16.msra.mxu0 %v2688
    %2822 = vmatpush.bf16.msra.mxu0 %v2687
    %2823 = vmatpush.bf16.msra.mxu0 %v2686
    %2824 = vmatpush.bf16.msra.mxu0 %v2685
    %2825 = vmatpush.bf16.msra.mxu0 %v2684
    %2826 = vmatpush.bf16.msra.mxu0 %v2683
    %2827 = vmatpush.bf16.msra.mxu0 %v2682
    %2828 = vmatpush.bf16.msra.mxu0 %v2681
    %2829 = vmatmul.bf16.gmra.mxu0 %v2271
    %v2830 = vpop.f32.mrf.mxu0
    %v2831 = vadd.f32 %v2817, %v2830
    %v2832 = vpop.f32.mrf.mxu0
    %v2833 = vadd.f32 %v2819, %v2832
    %2834 = vdwg.mxu0
    %2835 = vmatpush.bf16.msra.mxu0 %v2696
    %2836 = vmatpush.bf16.msra.mxu0 %v2695
    %2837 = vmatpush.bf16.msra.mxu0 %v2694
    %2838 = vmatpush.bf16.msra.mxu0 %v2693
    %2839 = vmatpush.bf16.msra.mxu0 %v2692
    %2840 = vmatpush.bf16.msra.mxu0 %v2691
    %2841 = vmatpush.bf16.msra.mxu0 %v2690
    %2842 = vmatpush.bf16.msra.mxu0 %v2689
    %2843 = vmatmul.bf16.gmra.mxu0 %v2272
    %v2844 = vpop.f32.mrf.mxu0
    %v2845 = vadd.f32 %v2831, %v2844
    %v2846 = vpop.f32.mrf.mxu0
    %v2847 = vadd.f32 %v2833, %v2846
    %2848 = vdwg.mxu0
    %2849 = vmatpush.bf16.msra.mxu0 %v2704
    %2850 = vmatpush.bf16.msra.mxu0 %v2703
    %2851 = vmatpush.bf16.msra.mxu0 %v2702
    %2852 = vmatpush.bf16.msra.mxu0 %v2701
    %2853 = vmatpush.bf16.msra.mxu0 %v2700
    %2854 = vmatpush.bf16.msra.mxu0 %v2699
    %2855 = vmatpush.bf16.msra.mxu0 %v2698
    %2856 = vmatpush.bf16.msra.mxu0 %v2697
    %2857 = vmatmul.bf16.gmra.mxu0 %v2273
    %v2858 = vpop.f32.mrf.mxu0
    %v2859 = vadd.f32 %v2845, %v2858
    %v2860 = vpop.f32.mrf.mxu0
    %v2861 = vadd.f32 %v2847, %v2860
    %2862 = vdwg.mxu0
    %2863 = vmatpush.bf16.msra.mxu0 %v2712
    %2864 = vmatpush.bf16.msra.mxu0 %v2711
    %2865 = vmatpush.bf16.msra.mxu0 %v2710
    %2866 = vmatpush.bf16.msra.mxu0 %v2709
    %2867 = vmatpush.bf16.msra.mxu0 %v2708
    %2868 = vmatpush.bf16.msra.mxu0 %v2707
    %2869 = vmatpush.bf16.msra.mxu0 %v2706
    %2870 = vmatpush.bf16.msra.mxu0 %v2705
    %2871 = vmatmul.bf16.gmra.mxu0 %v2274
    %v2872 = vpop.f32.mrf.mxu0
    %v2873 = vadd.f32 %v2859, %v2872
    %v2874 = vpop.f32.mrf.mxu0
    %v2875 = vadd.f32 %v2861, %v2874
    %2876 = vdwg.mxu0
    %2877 = vmatpush.bf16.msra.mxu0 %v2720
    %2878 = vmatpush.bf16.msra.mxu0 %v2719
    %2879 = vmatpush.bf16.msra.mxu0 %v2718
    %2880 = vmatpush.bf16.msra.mxu0 %v2717
    %2881 = vmatpush.bf16.msra.mxu0 %v2716
    %2882 = vmatpush.bf16.msra.mxu0 %v2715
    %2883 = vmatpush.bf16.msra.mxu0 %v2714
    %2884 = vmatpush.bf16.msra.mxu0 %v2713
    %2885 = vmatmul.bf16.gmra.mxu0 %v2275
    %v2886 = vpop.f32.mrf.mxu0
    %v2887 = vadd.f32 %v2873, %v2886
    %v2888 = vpop.f32.mrf.mxu0
    %v2889 = vadd.f32 %v2875, %v2888
    %2890 = vdwg.mxu0
    %2891 = vmatpush.bf16.msra.mxu0 %v2728
    %2892 = vmatpush.bf16.msra.mxu0 %v2727
    %2893 = vmatpush.bf16.msra.mxu0 %v2726
    %2894 = vmatpush.bf16.msra.mxu0 %v2725
    %2895 = vmatpush.bf16.msra.mxu0 %v2724
    %2896 = vmatpush.bf16.msra.mxu0 %v2723
    %2897 = vmatpush.bf16.msra.mxu0 %v2722
    %2898 = vmatpush.bf16.msra.mxu0 %v2721
    %2899 = vmatmul.bf16.gmra.mxu0 %v2276
    %v2900 = vpop.f32.mrf.mxu0
    %v2901 = vadd.f32 %v2887, %v2900
    %v2902 = vpop.f32.mrf.mxu0
    %v2903 = vadd.f32 %v2889, %v2902
    %2904 = vdwg.mxu0
    %2905 = vst [vmem:[#allocation13] sm:$0xff] %v2901
    %2906 = vst [vmem:[#allocation13 + $0x8] sm:$0xff] %v2903
    // Predicated region
    $region54: #{tpu_custom_call.1} parent=1 // pred_check
      _
    $region55: #{tpu_custom_call.1} parent=1 // pred_check_branch
      %2908 = sbr.rel (0) target = $region57
    $region56: #{tpu_custom_call.1} parent=1 // pred_region
      %2910 = vsyncadd [#allocation4], 224
      %s2911 = sshll.u32 [#allocation13], 4
      %s2912 = int_to_ptr.vmem [resolvable:$true] %s2911
      %s2913 = sshll.u32 %s7, 4
      %s2914 = int_to_ptr.hbm [resolvable:$true] %s2913
      %2919 = dma.vmem_to_hbm [thread:$0]  %s2912, 32, %s2914, [#allocation4], 32, 32, 2
    $region57: #{tpu_custom_call.1} parent=1 // pred_fallthru
      _
    // Predicated region
    $region58: #{tpu_custom_call.1} parent=1 // pred_check
      _
    $region59: #{tpu_custom_call.1} parent=1 // pred_check_branch
      %2921 = sbr.rel (0) target = $region61
    $region60: #{tpu_custom_call.1} parent=1 // pred_region
      %2923 = dma.done [#allocation4], 256
    $region61: #{tpu_custom_call.1} parent=1 // pred_fallthru
      _
    %2924 = vsyncpa [#allocation3], 1
    %2925 = vsyncpa [#allocation6], 1
    %2926 = vsyncpa [#allocation9], 1
    %2927 = vsyncpa [#allocation12], 1
    %2928 = vsyncpa [#allocation4], 1

// kernel: tpu_custom_call.1
$region0: #{tpu_custom_call.1}
  #allocation0 [shape = 'u32[]', space=smem, size = 0x4, offset = 0x4, fixed_abs, tag = 'smem constant byte address 0x4 - core index']
  #allocation1 [shape = 'u32[72,128]{1,0:T(1,128)}', space=vmem, size = 0x9000, scoped, tag = 'internal scratch']
  %s0 = inlined_call_operand.hbm [shape: f32[2,32], index: 0, kind: input, shape index: {}]
  %s1 = inlined_call_operand.hbm [shape: bf16[32,512], index: 1, kind: input, shape index: {}]
  %s2 = inlined_call_operand.hbm [shape: f32[1,512], index: 2, kind: input, shape index: {}]
  %s3 = inlined_call_operand.hbm [shape: bf16[512,1024], index: 3, kind: input, shape index: {}]
  %s4 = inlined_call_operand.hbm [shape: f32[1,1024], index: 4, kind: input, shape index: {}]
  %s5 = inlined_call_operand.hbm [shape: bf16[1024,128], index: 5, kind: input, shape index: {}]
  %s6 = inlined_call_operand.vmem [shape: f32[1,128], index: 6, kind: input, shape index: {}]
  %s7 = inlined_call_operand.hbm [shape: f32[2,128], index: 7, kind: output, shape index: {}]
  %s8 = sld [smem:[#allocation0]]
  $region62: #{tpu_custom_call.1} parent=0
    _
  %s10 = ssub.s32 1, %s8
  %s11 = scalar_select 0, %s10, %s8
  $region1: #{tpu_custom_call.1} parent=0
    #allocation2 [shape = 'u8[8192]{0}', space=vmem, size = 0x2000, scoped, tag = 'input window, operand 0, single buffered']
    #allocation3 [shape = 's32[1]{0}', space=sflag, size = 0x4, scoped, tag = 'scoped memory for tpu_custom_call.1']
    #allocation4 [shape = 's32[1]{0}', space=sflag, size = 0x4, scoped, tag = 'scoped memory for tpu_custom_call.1']
    #allocation5 [shape = 'u8[32768]{0}', space=vmem, size = 0x8000, scoped, tag = 'input window, operand 1, single buffered']
    #allocation6 [shape = 's32[1]{0}', space=sflag, size = 0x4, scoped, tag = 'scoped memory for tpu_custom_call.1']
    #allocation7 [shape = 'u8[2048]{0}', space=vmem, size = 0x800, scoped, tag = 'input window, operand 2, single buffered']
    #allocation8 [shape = 'u8[1048576]{0}', space=vmem, size = 0x100000, scoped, tag = 'input window, operand 3, single buffered']
    #allocation9 [shape = 's32[1]{0}', space=sflag, size = 0x4, scoped, tag = 'scoped memory for tpu_custom_call.1']
    #allocation10 [shape = 'u8[4096]{0}', space=vmem, size = 0x1000, scoped, tag = 'input window, operand 4, single buffered']
    #allocation11 [shape = 'u8[262144]{0}', space=vmem, size = 0x40000, scoped, tag = 'input window, operand 5, single buffered']
    #allocation12 [shape = 's32[1]{0}', space=sflag, size = 0x4, scoped, tag = 'scoped memory for tpu_custom_call.1']
    #allocation13 [shape = 'u8[8192]{0}', space=vmem, size = 0x2000, scoped, tag = 'output window, operand 0, single buffered']
    %12 = vsyncpa [#allocation3], 0
    %13 = vsyncpa [#allocation6], 0
    %14 = vsyncpa [#allocation9], 0
    %15 = vsyncpa [#allocation12], 0
    %16 = vsyncpa [#allocation4], 0
    // Predicated region
    $region2: #{tpu_custom_call.1} parent=1 // pred_check
      _
    $region3: #{tpu_custom_call.1} parent=1 // pred_check_branch
      %18 = sbr.rel (0) target = $region5
    $region4: #{tpu_custom_call.1} parent=1 // pred_region
      %20 = vsyncadd [#allocation3], 224
      %s21 = sshll.u32 %s0, 4
      %s22 = int_to_ptr.hbm [resolvable:$true] %s21
      %s23 = sshll.u32 [#allocation2], 4
      %s24 = int_to_ptr.vmem [resolvable:$true] %s23
      %29 = dma.hbm_to_vmem [thread:$0]  %s22, 32, %s24, [#allocation3], 32, 32, 2
    $region5: #{tpu_custom_call.1} parent=1 // pred_fallthru
      _
    // Predicated region
    $region6: #{tpu_custom_call.1} parent=1 // pred_check
      _
    $region7: #{tpu_custom_call.1} parent=1 // pred_check_branch
      %31 = sbr.rel (0) target = $region9
    $region8: #{tpu_custom_call.1} parent=1 // pred_region
      %33 = vsyncadd [#allocation6], 0
      %s34 = sshll.u32 %s1, 4
      %s35 = int_to_ptr.hbm [resolvable:$true] %s34
      %s36 = sshll.u32 [#allocation5], 4
      %s37 = int_to_ptr.vmem [resolvable:$true] %s36
      %42 = dma.hbm_to_vmem [thread:$0]  %s35, 1024, %s37, [#allocation6], 256, 256, 16
    $region9: #{tpu_custom_call.1} parent=1 // pred_fallthru
      _
    // Predicated region
    $region10: #{tpu_custom_call.1} parent=1 // pred_check
      _
    $region11: #{tpu_custom_call.1} parent=1 // pred_check_branch
      %44 = sbr.rel (0) target = $region13
    $region12: #{tpu_custom_call.1} parent=1 // pred_region
      %46 = vsyncadd [#allocation6], 0
      %s48 = sshll.u32 %s2, 4
      %s49 = int_to_ptr.hbm [resolvable:$true] %s48
      %s50 = sshll.u32 [#allocation7], 4
      %s51 = int_to_ptr.vmem [resolvable:$true] %s50
      %53 = dma.hbm_to_vmem [thread:$0]  %s49, 64, %s51, [#allocation6]
    $region13: #{tpu_custom_call.1} parent=1 // pred_fallthru
      _
    // Predicated region
    $region14: #{tpu_custom_call.1} parent=1 // pred_check
      _
    $region15: #{tpu_custom_call.1} parent=1 // pred_check_branch
      %55 = sbr.rel (0) target = $region17
    $region16: #{tpu_custom_call.1} parent=1 // pred_region
      %57 = vsyncadd [#allocation9], 0
      %s58 = sshll.u32 %s3, 4
      %s59 = int_to_ptr.hbm [resolvable:$true] %s58
      %s60 = sshll.u32 [#allocation8], 4
      %s61 = int_to_ptr.vmem [resolvable:$true] %s60
      %66 = dma.hbm_to_vmem [thread:$0]  %s59, 32768, %s61, [#allocation9], 512, 512, 32
    $region17: #{tpu_custom_call.1} parent=1 // pred_fallthru
      _
    // Predicated region
    $region18: #{tpu_custom_call.1} parent=1 // pred_check
      _
    $region19: #{tpu_custom_call.1} parent=1 // pred_check_branch
      %68 = sbr.rel (0) target = $region21
    $region20: #{tpu_custom_call.1} parent=1 // pred_region
      %70 = vsyncadd [#allocation9], 0
      %s72 = sshll.u32 %s4, 4
      %s73 = int_to_ptr.hbm [resolvable:$true] %s72
      %s74 = sshll.u32 [#allocation10], 4
      %s75 = int_to_ptr.vmem [resolvable:$true] %s74
      %77 = dma.hbm_to_vmem [thread:$0]  %s73, 128, %s75, [#allocation9]
    $region21: #{tpu_custom_call.1} parent=1 // pred_fallthru
      _
    // Predicated region
    $region22: #{tpu_custom_call.1} parent=1 // pred_check
      _
    $region23: #{tpu_custom_call.1} parent=1 // pred_check_branch
      %79 = sbr.rel (0) target = $region25
    $region24: #{tpu_custom_call.1} parent=1 // pred_region
      %81 = vsyncadd [#allocation12], 0
      %s82 = sshll.u32 %s5, 4
      %s83 = int_to_ptr.hbm [resolvable:$true] %s82
      %s84 = sshll.u32 [#allocation11], 4
      %s85 = int_to_ptr.vmem [resolvable:$true] %s84
      %90 = dma.hbm_to_vmem [thread:$0]  %s83, 8192, %s85, [#allocation12], 64, 64, 4
    $region25: #{tpu_custom_call.1} parent=1 // pred_fallthru
      _
    // Predicated region
    $region26: #{tpu_custom_call.1} parent=1 // pred_check
      _
    $region27: #{tpu_custom_call.1} parent=1 // pred_check_branch
      %92 = sbr.rel (0) target = $region29
    $region28: #{tpu_custom_call.1} parent=1 // pred_region
      _
    $region29: #{tpu_custom_call.1} parent=1 // pred_fallthru
      _
    // Predicated region
    $region30: #{tpu_custom_call.1} parent=1 // pred_check
      _
    $region31: #{tpu_custom_call.1} parent=1 // pred_check_branch
      %94 = sbr.rel (0) target = $region33
    $region32: #{tpu_custom_call.1} parent=1 // pred_region
      %96 = dma.done [#allocation3], 256
    $region33: #{tpu_custom_call.1} parent=1 // pred_fallthru
      _
    // Predicated region
    $region34: #{tpu_custom_call.1} parent=1 // pred_check
      _
    $region35: #{tpu_custom_call.1} parent=1 // pred_check_branch
      %98 = sbr.rel (0) target = $region37
    $region36: #{tpu_custom_call.1} parent=1 // pred_region
      %100 = dma.done [#allocation6], 1024
    $region37: #{tpu_custom_call.1} parent=1 // pred_fallthru
      _
    // Predicated region
    $region38: #{tpu_custom_call.1} parent=1 // pred_check
      _
    $region39: #{tpu_custom_call.1} parent=1 // pred_check_branch
      %102 = sbr.rel (0) target = $region41
    $region40: #{tpu_custom_call.1} parent=1 // pred_region
      %104 = dma.done [#allocation6], 64
    $region41: #{tpu_custom_call.1} parent=1 // pred_fallthru
      _
    // Predicated region
    $region42: #{tpu_custom_call.1} parent=1 // pred_check
      _
    $region43: #{tpu_custom_call.1} parent=1 // pred_check_branch
      %106 = sbr.rel (0) target = $region45
    $region44: #{tpu_custom_call.1} parent=1 // pred_region
      %108 = dma.done [#allocation9], 32768
    $region45: #{tpu_custom_call.1} parent=1 // pred_fallthru
      _
    // Predicated region
    $region46: #{tpu_custom_call.1} parent=1 // pred_check
      _
    $region47: #{tpu_custom_call.1} parent=1 // pred_check_branch
      %110 = sbr.rel (0) target = $region49
    $region48: #{tpu_custom_call.1} parent=1 // pred_region
      %112 = dma.done [#allocation9], 128
    $region49: #{tpu_custom_call.1} parent=1 // pred_fallthru
      _
    // Predicated region
    $region50: #{tpu_custom_call.1} parent=1 // pred_check
      _
    $region51: #{tpu_custom_call.1} parent=1 // pred_check_branch
      %114 = sbr.rel (0) target = $region53
    $region52: #{tpu_custom_call.1} parent=1 // pred_region
      %116 = dma.done [#allocation12], 8192
    $region53: #{tpu_custom_call.1} parent=1 // pred_fallthru
      _
    %v118 = vld [vmem:[#allocation2] sm:$0xff]
    %v119 = vld [vmem:[#allocation2 + $0x8] sm:$0xff]
    %v120 = vpack.c.bf16 %v119, %v118
    %v121 = vld [vmem:[#allocation5] sm:$0xff]
    %v122 = vld [vmem:[#allocation5 + $0x8] sm:$0xff]
    %v123 = vld [vmem:[#allocation5 + $0x10] sm:$0xff]
    %v124 = vld [vmem:[#allocation5 + $0x18] sm:$0xff]
    %v125 = vld [vmem:[#allocation5 + $0x20] sm:$0xff]
    %v126 = vld [vmem:[#allocation5 + $0x28] sm:$0xff]
    %v127 = vld [vmem:[#allocation5 + $0x30] sm:$0xff]
    %v128 = vld [vmem:[#allocation5 + $0x38] sm:$0xff]
    %v129 = vld [vmem:[#allocation7] sm:$0xf]
    %v131 = vperm.slane %v129, 0
    %v132 = vperm.slane %v129, 1
    %v133 = vperm.slane %v129, 2
    %v134 = vperm.slane %v129, 3
    %v147 = vunpack.c.l.b16 %v121
    %v148 = vunpack.c.h.b16 %v121
    %v149 = vunpack.c.l.b16 %v122
    %v150 = vunpack.c.h.b16 %v122
    %v151 = vunpack.c.l.b16 %v123
    %v152 = vunpack.c.h.b16 %v123
    %v153 = vunpack.c.l.b16 %v124
    %v154 = vunpack.c.h.b16 %v124
    %v155 = vunpack.c.l.b16 %v125
    %v156 = vunpack.c.h.b16 %v125
    %v157 = vunpack.c.l.b16 %v126
    %v158 = vunpack.c.h.b16 %v126
    %v159 = vunpack.c.l.b16 %v127
    %v160 = vunpack.c.h.b16 %v127
    %v161 = vunpack.c.l.b16 %v128
    %v162 = vunpack.c.h.b16 %v128
    %v163 = vpack.c.b16 %v151, %v147
    %v164 = vpack.c.b16 %v152, %v148
    %v165 = vpack.c.b16 %v153, %v149
    %v166 = vpack.c.b16 %v154, %v150
    %v167 = vpack.c.b16 %v159, %v155
    %v168 = vpack.c.b16 %v160, %v156
    %v169 = vpack.c.b16 %v161, %v157
    %v170 = vpack.c.b16 %v162, %v158
    %vm179 = vcmask 261120
    %v181 = vsel %vm179, %v120, 0
    %183 = vmatpush.bf16.msra.mxu0 0
    %184 = vmatpush.bf16.msra.mxu0 0
    %185 = vmatpush.bf16.msra.mxu0 0
    %186 = vmatpush.bf16.msra.mxu0 0
    %187 = vmatpush.bf16.msra.mxu0 0
    %188 = vmatpush.bf16.msra.mxu0 0
    %189 = vmatpush.bf16.msra.mxu0 %v167
    %190 = vmatpush.bf16.msra.mxu0 %v163
    %191 = vmatmul.bf16.gmra.mxu0 %v181
    %v192 = vpop.f32.mrf.mxu0
    %v193 = vadd.f32 %v131, %v192
    %v194 = vpop.f32.mrf.mxu0
    %v195 = vadd.f32 %v131, %v194
    %196 = vdwg.mxu0
    %197 = vmatpush.bf16.msra.mxu0 0
    %198 = vmatpush.bf16.msra.mxu0 0
    %199 = vmatpush.bf16.msra.mxu0 0
    %200 = vmatpush.bf16.msra.mxu0 0
    %201 = vmatpush.bf16.msra.mxu0 0
    %202 = vmatpush.bf16.msra.mxu0 0
    %203 = vmatpush.bf16.msra.mxu0 %v168
    %204 = vmatpush.bf16.msra.mxu0 %v164
    %205 = vmatmul.bf16.gmra.mxu0 %v181
    %v206 = vpop.f32.mrf.mxu0
    %v207 = vadd.f32 %v132, %v206
    %v208 = vpop.f32.mrf.mxu0
    %v209 = vadd.f32 %v132, %v208
    %210 = vdwg.mxu0
    %211 = vmatpush.bf16.msra.mxu0 0
    %212 = vmatpush.bf16.msra.mxu0 0
    %213 = vmatpush.bf16.msra.mxu0 0
    %214 = vmatpush.bf16.msra.mxu0 0
    %215 = vmatpush.bf16.msra.mxu0 0
    %216 = vmatpush.bf16.msra.mxu0 0
    %217 = vmatpush.bf16.msra.mxu0 %v169
    %218 = vmatpush.bf16.msra.mxu0 %v165
    %219 = vmatmul.bf16.gmra.mxu0 %v181
    %v220 = vpop.f32.mrf.mxu0
    %v221 = vadd.f32 %v133, %v220
    %v222 = vpop.f32.mrf.mxu0
    %v223 = vadd.f32 %v133, %v222
    %224 = vdwg.mxu0
    %225 = vmatpush.bf16.msra.mxu0 0
    %226 = vmatpush.bf16.msra.mxu0 0
    %227 = vmatpush.bf16.msra.mxu0 0
    %228 = vmatpush.bf16.msra.mxu0 0
    %229 = vmatpush.bf16.msra.mxu0 0
    %230 = vmatpush.bf16.msra.mxu0 0
    %231 = vmatpush.bf16.msra.mxu0 %v170
    %232 = vmatpush.bf16.msra.mxu0 %v166
    %233 = vmatmul.bf16.gmra.mxu0 %v181
    %v234 = vpop.f32.mrf.mxu0
    %v235 = vadd.f32 %v134, %v234
    %v236 = vpop.f32.mrf.mxu0
    %v237 = vadd.f32 %v134, %v236
    %238 = vdwg.mxu0
    %v239 = vmax.f32 %v193, 0.0
    %v240 = vmax.f32 %v207, 0.0
    %v241 = vmax.f32 %v221, 0.0
    %v242 = vmax.f32 %v235, 0.0
    %v243 = vmax.f32 %v195, 0.0
    %v244 = vmax.f32 %v209, 0.0
    %v245 = vmax.f32 %v223, 0.0
    %v246 = vmax.f32 %v237, 0.0
    %v247 = vpack.c.bf16 %v243, %v239
    %v248 = vpack.c.bf16 %v244, %v240
    %v249 = vpack.c.bf16 %v245, %v241
    %v250 = vpack.c.bf16 %v246, %v242
    %v251 = vld [vmem:[#allocation8] sm:$0xff]
    %v252 = vld [vmem:[#allocation8 + $0x8] sm:$0xff]
    %v253 = vld [vmem:[#allocation8 + $0x10] sm:$0xff]
    %v254 = vld [vmem:[#allocation8 + $0x18] sm:$0xff]
    %v255 = vld [vmem:[#allocation8 + $0x20] sm:$0xff]
    %v256 = vld [vmem:[#allocation8 + $0x28] sm:$0xff]
    %v257 = vld [vmem:[#allocation8 + $0x30] sm:$0xff]
    %v258 = vld [vmem:[#allocation8 + $0x38] sm:$0xff]
    %v259 = vld [vmem:[#allocation8 + $0x40] sm:$0xff]
    %v260 = vld [vmem:[#allocation8 + $0x48] sm:$0xff]
    %v261 = vld [vmem:[#allocation8 + $0x50] sm:$0xff]
    %v262 = vld [vmem:[#allocation8 + $0x58] sm:$0xff]
    %v263 = vld [vmem:[#allocation8 + $0x60] sm:$0xff]
    %v264 = vld [vmem:[#allocation8 + $0x68] sm:$0xff]
    %v265 = vld [vmem:[#allocation8 + $0x70] sm:$0xff]
    %v266 = vld [vmem:[#allocation8 + $0x78] sm:$0xff]
    %v267 = vld [vmem:[#allocation8 + $0x80] sm:$0xff]
    %v268 = vld [vmem:[#allocation8 + $0x88] sm:$0xff]
    %v269 = vld [vmem:[#allocation8 + $0x90] sm:$0xff]
    %v270 = vld [vmem:[#allocation8 + $0x98] sm:$0xff]
    %v271 = vld [vmem:[#allocation8 + $0xa0] sm:$0xff]
    %v272 = vld [vmem:[#allocation8 + $0xa8] sm:$0xff]
    %v273 = vld [vmem:[#allocation8 + $0xb0] sm:$0xff]
    %v274 = vld [vmem:[#allocation8 + $0xb8] sm:$0xff]
    %v275 = vld [vmem:[#allocation8 + $0xc0] sm:$0xff]
    %v276 = vld [vmem:[#allocation8 + $0xc8] sm:$0xff]
    %v277 = vld [vmem:[#allocation8 + $0xd0] sm:$0xff]
    %v278 = vld [vmem:[#allocation8 + $0xd8] sm:$0xff]
    %v279 = vld [vmem:[#allocation8 + $0xe0] sm:$0xff]
    %v280 = vld [vmem:[#allocation8 + $0xe8] sm:$0xff]
    %v281 = vld [vmem:[#allocation8 + $0xf0] sm:$0xff]
    %v282 = vld [vmem:[#allocation8 + $0xf8] sm:$0xff]
    %v283 = vld [vmem:[#allocation8 + $0x100] sm:$0xff]
    %v284 = vld [vmem:[#allocation8 + $0x108] sm:$0xff]
    %v285 = vld [vmem:[#allocation8 + $0x110] sm:$0xff]
    %v286 = vld [vmem:[#allocation8 + $0x118] sm:$0xff]
    %v287 = vld [vmem:[#allocation8 + $0x120] sm:$0xff]
    %v288 = vld [vmem:[#allocation8 + $0x128] sm:$0xff]
    %v289 = vld [vmem:[#allocation8 + $0x130] sm:$0xff]
    %v290 = vld [vmem:[#allocation8 + $0x138] sm:$0xff]
    %v291 = vld [vmem:[#allocation8 + $0x140] sm:$0xff]
    %v292 = vld [vmem:[#allocation8 + $0x148] sm:$0xff]
    %v293 = vld [vmem:[#allocation8 + $0x150] sm:$0xff]
    %v294 = vld [vmem:[#allocation8 + $0x158] sm:$0xff]
    %v295 = vld [vmem:[#allocation8 + $0x160] sm:$0xff]
    %v296 = vld [vmem:[#allocation8 + $0x168] sm:$0xff]
    %v297 = vld [vmem:[#allocation8 + $0x170] sm:$0xff]
    %v298 = vld [vmem:[#allocation8 + $0x178] sm:$0xff]
    %v299 = vld [vmem:[#allocation8 + $0x180] sm:$0xff]
    %v300 = vld [vmem:[#allocation8 + $0x188] sm:$0xff]
    %v301 = vld [vmem:[#allocation8 + $0x190] sm:$0xff]
    %v302 = vld [vmem:[#allocation8 + $0x198] sm:$0xff]
    %v303 = vld [vmem:[#allocation8 + $0x1a0] sm:$0xff]
    %v304 = vld [vmem:[#allocation8 + $0x1a8] sm:$0xff]
    %v305 = vld [vmem:[#allocation8 + $0x1b0] sm:$0xff]
    %v306 = vld [vmem:[#allocation8 + $0x1b8] sm:$0xff]
    %v307 = vld [vmem:[#allocation8 + $0x1c0] sm:$0xff]
    %v308 = vld [vmem:[#allocation8 + $0x1c8] sm:$0xff]
    %v309 = vld [vmem:[#allocation8 + $0x1d0] sm:$0xff]
    %v310 = vld [vmem:[#allocation8 + $0x1d8] sm:$0xff]
    %v311 = vld [vmem:[#allocation8 + $0x1e0] sm:$0xff]
    %v312 = vld [vmem:[#allocation8 + $0x1e8] sm:$0xff]
    %v313 = vld [vmem:[#allocation8 + $0x1f0] sm:$0xff]
    %v314 = vld [vmem:[#allocation8 + $0x1f8] sm:$0xff]
    %v315 = vld [vmem:[#allocation8 + $0x200] sm:$0xff]
    %v316 = vld [vmem:[#allocation8 + $0x208] sm:$0xff]
    %v317 = vld [vmem:[#allocation8 + $0x210] sm:$0xff]
    %v318 = vld [vmem:[#allocation8 + $0x218] sm:$0xff]
    %v319 = vld [vmem:[#allocation8 + $0x220] sm:$0xff]
    %v320 = vld [vmem:[#allocation8 + $0x228] sm:$0xff]
    %v321 = vld [vmem:[#allocation8 + $0x230] sm:$0xff]
    %v322 = vld [vmem:[#allocation8 + $0x238] sm:$0xff]
    %v323 = vld [vmem:[#allocation8 + $0x240] sm:$0xff]
    %v324 = vld [vmem:[#allocation8 + $0x248] sm:$0xff]
    %v325 = vld [vmem:[#allocation8 + $0x250] sm:$0xff]
    %v326 = vld [vmem:[#allocation8 + $0x258] sm:$0xff]
    %v327 = vld [vmem:[#allocation8 + $0x260] sm:$0xff]
    %v328 = vld [vmem:[#allocation8 + $0x268] sm:$0xff]
    %v329 = vld [vmem:[#allocation8 + $0x270] sm:$0xff]
    %v330 = vld [vmem:[#allocation8 + $0x278] sm:$0xff]
    %v331 = vld [vmem:[#allocation8 + $0x280] sm:$0xff]
    %v332 = vld [vmem:[#allocation8 + $0x288] sm:$0xff]
    %v333 = vld [vmem:[#allocation8 + $0x290] sm:$0xff]
    %v334 = vld [vmem:[#allocation8 + $0x298] sm:$0xff]
    %v335 = vld [vmem:[#allocation8 + $0x2a0] sm:$0xff]
    %v336 = vld [vmem:[#allocation8 + $0x2a8] sm:$0xff]
    %v337 = vld [vmem:[#allocation8 + $0x2b0] sm:$0xff]
    %v338 = vld [vmem:[#allocation8 + $0x2b8] sm:$0xff]
    %v339 = vld [vmem:[#allocation8 + $0x2c0] sm:$0xff]
    %v340 = vld [vmem:[#allocation8 + $0x2c8] sm:$0xff]
    %v341 = vld [vmem:[#allocation8 + $0x2d0] sm:$0xff]
    %v342 = vld [vmem:[#allocation8 + $0x2d8] sm:$0xff]
    %v343 = vld [vmem:[#allocation8 + $0x2e0] sm:$0xff]
    %v344 = vld [vmem:[#allocation8 + $0x2e8] sm:$0xff]
    %v345 = vld [vmem:[#allocation8 + $0x2f0] sm:$0xff]
    %v346 = vld [vmem:[#allocation8 + $0x2f8] sm:$0xff]
    %v347 = vld [vmem:[#allocation8 + $0x300] sm:$0xff]
    %v348 = vld [vmem:[#allocation8 + $0x308] sm:$0xff]
    %v349 = vld [vmem:[#allocation8 + $0x310] sm:$0xff]
    %v350 = vld [vmem:[#allocation8 + $0x318] sm:$0xff]
    %v351 = vld [vmem:[#allocation8 + $0x320] sm:$0xff]
    %v352 = vld [vmem:[#allocation8 + $0x328] sm:$0xff]
    %v353 = vld [vmem:[#allocation8 + $0x330] sm:$0xff]
    %v354 = vld [vmem:[#allocation8 + $0x338] sm:$0xff]
    %v355 = vld [vmem:[#allocation8 + $0x340] sm:$0xff]
    %v356 = vld [vmem:[#allocation8 + $0x348] sm:$0xff]
    %v357 = vld [vmem:[#allocation8 + $0x350] sm:$0xff]
    %v358 = vld [vmem:[#allocation8 + $0x358] sm:$0xff]
    %v359 = vld [vmem:[#allocation8 + $0x360] sm:$0xff]
    %v360 = vld [vmem:[#allocation8 + $0x368] sm:$0xff]
    %v361 = vld [vmem:[#allocation8 + $0x370] sm:$0xff]
    %v362 = vld [vmem:[#allocation8 + $0x378] sm:$0xff]
    %v363 = vld [vmem:[#allocation8 + $0x380] sm:$0xff]
    %v364 = vld [vmem:[#allocation8 + $0x388] sm:$0xff]
    %v365 = vld [vmem:[#allocation8 + $0x390] sm:$0xff]
    %v366 = vld [vmem:[#allocation8 + $0x398] sm:$0xff]
    %v367 = vld [vmem:[#allocation8 + $0x3a0] sm:$0xff]
    %v368 = vld [vmem:[#allocation8 + $0x3a8] sm:$0xff]
    %v369 = vld [vmem:[#allocation8 + $0x3b0] sm:$0xff]
    %v370 = vld [vmem:[#allocation8 + $0x3b8] sm:$0xff]
    %v371 = vld [vmem:[#allocation8 + $0x3c0] sm:$0xff]
    %v372 = vld [vmem:[#allocation8 + $0x3c8] sm:$0xff]
    %v373 = vld [vmem:[#allocation8 + $0x3d0] sm:$0xff]
    %v374 = vld [vmem:[#allocation8 + $0x3d8] sm:$0xff]
    %v375 = vld [vmem:[#allocation8 + $0x3e0] sm:$0xff]
    %v376 = vld [vmem:[#allocation8 + $0x3e8] sm:$0xff]
    %v377 = vld [vmem:[#allocation8 + $0x3f0] sm:$0xff]
    %v378 = vld [vmem:[#allocation8 + $0x3f8] sm:$0xff]
    %v379 = vld [vmem:[#allocation8 + $0x400] sm:$0xff]
    %v380 = vld [vmem:[#allocation8 + $0x408] sm:$0xff]
    %v381 = vld [vmem:[#allocation8 + $0x410] sm:$0xff]
    %v382 = vld [vmem:[#allocation8 + $0x418] sm:$0xff]
    %v383 = vld [vmem:[#allocation8 + $0x420] sm:$0xff]
    %v384 = vld [vmem:[#allocation8 + $0x428] sm:$0xff]
    %v385 = vld [vmem:[#allocation8 + $0x430] sm:$0xff]
    %v386 = vld [vmem:[#allocation8 + $0x438] sm:$0xff]
    %v387 = vld [vmem:[#allocation8 + $0x440] sm:$0xff]
    %v388 = vld [vmem:[#allocation8 + $0x448] sm:$0xff]
    %v389 = vld [vmem:[#allocation8 + $0x450] sm:$0xff]
    %v390 = vld [vmem:[#allocation8 + $0x458] sm:$0xff]
    %v391 = vld [vmem:[#allocation8 + $0x460] sm:$0xff]
    %v392 = vld [vmem:[#allocation8 + $0x468] sm:$0xff]
    %v393 = vld [vmem:[#allocation8 + $0x470] sm:$0xff]
    %v394 = vld [vmem:[#allocation8 + $0x478] sm:$0xff]
    %v395 = vld [vmem:[#allocation8 + $0x480] sm:$0xff]
    %v396 = vld [vmem:[#allocation8 + $0x488] sm:$0xff]
    %v397 = vld [vmem:[#allocation8 + $0x490] sm:$0xff]
    %v398 = vld [vmem:[#allocation8 + $0x498] sm:$0xff]
    %v399 = vld [vmem:[#allocation8 + $0x4a0] sm:$0xff]
    %v400 = vld [vmem:[#allocation8 + $0x4a8] sm:$0xff]
    %v401 = vld [vmem:[#allocation8 + $0x4b0] sm:$0xff]
    %v402 = vld [vmem:[#allocation8 + $0x4b8] sm:$0xff]
    %v403 = vld [vmem:[#allocation8 + $0x4c0] sm:$0xff]
    %v404 = vld [vmem:[#allocation8 + $0x4c8] sm:$0xff]
    %v405 = vld [vmem:[#allocation8 + $0x4d0] sm:$0xff]
    %v406 = vld [vmem:[#allocation8 + $0x4d8] sm:$0xff]
    %v407 = vld [vmem:[#allocation8 + $0x4e0] sm:$0xff]
    %v408 = vld [vmem:[#allocation8 + $0x4e8] sm:$0xff]
    %v409 = vld [vmem:[#allocation8 + $0x4f0] sm:$0xff]
    %v410 = vld [vmem:[#allocation8 + $0x4f8] sm:$0xff]
    %v411 = vld [vmem:[#allocation8 + $0x500] sm:$0xff]
    %v412 = vld [vmem:[#allocation8 + $0x508] sm:$0xff]
    %v413 = vld [vmem:[#allocation8 + $0x510] sm:$0xff]
    %v414 = vld [vmem:[#allocation8 + $0x518] sm:$0xff]
    %v415 = vld [vmem:[#allocation8 + $0x520] sm:$0xff]
    %v416 = vld [vmem:[#allocation8 + $0x528] sm:$0xff]
    %v417 = vld [vmem:[#allocation8 + $0x530] sm:$0xff]
    %v418 = vld [vmem:[#allocation8 + $0x538] sm:$0xff]
    %v419 = vld [vmem:[#allocation8 + $0x540] sm:$0xff]
    %v420 = vld [vmem:[#allocation8 + $0x548] sm:$0xff]
    %v421 = vld [vmem:[#allocation8 + $0x550] sm:$0xff]
    %v422 = vld [vmem:[#allocation8 + $0x558] sm:$0xff]
    %v423 = vld [vmem:[#allocation8 + $0x560] sm:$0xff]
    %v424 = vld [vmem:[#allocation8 + $0x568] sm:$0xff]
    %v425 = vld [vmem:[#allocation8 + $0x570] sm:$0xff]
    %v426 = vld [vmem:[#allocation8 + $0x578] sm:$0xff]
    %v427 = vld [vmem:[#allocation8 + $0x580] sm:$0xff]
    %v428 = vld [vmem:[#allocation8 + $0x588] sm:$0xff]
    %v429 = vld [vmem:[#allocation8 + $0x590] sm:$0xff]
    %v430 = vld [vmem:[#allocation8 + $0x598] sm:$0xff]
    %v431 = vld [vmem:[#allocation8 + $0x5a0] sm:$0xff]
    %v432 = vld [vmem:[#allocation8 + $0x5a8] sm:$0xff]
    %v433 = vld [vmem:[#allocation8 + $0x5b0] sm:$0xff]
    %v434 = vld [vmem:[#allocation8 + $0x5b8] sm:$0xff]
    %v435 = vld [vmem:[#allocation8 + $0x5c0] sm:$0xff]
    %v436 = vld [vmem:[#allocation8 + $0x5c8] sm:$0xff]
    %v437 = vld [vmem:[#allocation8 + $0x5d0] sm:$0xff]
    %v438 = vld [vmem:[#allocation8 + $0x5d8] sm:$0xff]
    %v439 = vld [vmem:[#allocation8 + $0x5e0] sm:$0xff]
    %v440 = vld [vmem:[#allocation8 + $0x5e8] sm:$0xff]
    %v441 = vld [vmem:[#allocation8 + $0x5f0] sm:$0xff]
    %v442 = vld [vmem:[#allocation8 + $0x5f8] sm:$0xff]
    %v443 = vld [vmem:[#allocation8 + $0x600] sm:$0xff]
    %v444 = vld [vmem:[#allocation8 + $0x608] sm:$0xff]
    %v445 = vld [vmem:[#allocation8 + $0x610] sm:$0xff]
    %v446 = vld [vmem:[#allocation8 + $0x618] sm:$0xff]
    %v447 = vld [vmem:[#allocation8 + $0x620] sm:$0xff]
    %v448 = vld [vmem:[#allocation8 + $0x628] sm:$0xff]
    %v449 = vld [vmem:[#allocation8 + $0x630] sm:$0xff]
    %v450 = vld [vmem:[#allocation8 + $0x638] sm:$0xff]
    %v451 = vld [vmem:[#allocation8 + $0x640] sm:$0xff]
    %v452 = vld [vmem:[#allocation8 + $0x648] sm:$0xff]
    %v453 = vld [vmem:[#allocation8 + $0x650] sm:$0xff]
    %v454 = vld [vmem:[#allocation8 + $0x658] sm:$0xff]
    %v455 = vld [vmem:[#allocation8 + $0x660] sm:$0xff]
    %v456 = vld [vmem:[#allocation8 + $0x668] sm:$0xff]
    %v457 = vld [vmem:[#allocation8 + $0x670] sm:$0xff]
    %v458 = vld [vmem:[#allocation8 + $0x678] sm:$0xff]
    %v459 = vld [vmem:[#allocation8 + $0x680] sm:$0xff]
    %v460 = vld [vmem:[#allocation8 + $0x688] sm:$0xff]
    %v461 = vld [vmem:[#allocation8 + $0x690] sm:$0xff]
    %v462 = vld [vmem:[#allocation8 + $0x698] sm:$0xff]
    %v463 = vld [vmem:[#allocation8 + $0x6a0] sm:$0xff]
    %v464 = vld [vmem:[#allocation8 + $0x6a8] sm:$0xff]
    %v465 = vld [vmem:[#allocation8 + $0x6b0] sm:$0xff]
    %v466 = vld [vmem:[#allocation8 + $0x6b8] sm:$0xff]
    %v467 = vld [vmem:[#allocation8 + $0x6c0] sm:$0xff]
    %v468 = vld [vmem:[#allocation8 + $0x6c8] sm:$0xff]
    %v469 = vld [vmem:[#allocation8 + $0x6d0] sm:$0xff]
    %v470 = vld [vmem:[#allocation8 + $0x6d8] sm:$0xff]
    %v471 = vld [vmem:[#allocation8 + $0x6e0] sm:$0xff]
    %v472 = vld [vmem:[#allocation8 + $0x6e8] sm:$0xff]
    %v473 = vld [vmem:[#allocation8 + $0x6f0] sm:$0xff]
    %v474 = vld [vmem:[#allocation8 + $0x6f8] sm:$0xff]
    %v475 = vld [vmem:[#allocation8 + $0x700] sm:$0xff]
    %v476 = vld [vmem:[#allocation8 + $0x708] sm:$0xff]
    %v477 = vld [vmem:[#allocation8 + $0x710] sm:$0xff]
    %v478 = vld [vmem:[#allocation8 + $0x718] sm:$0xff]
    %v479 = vld [vmem:[#allocation8 + $0x720] sm:$0xff]
    %v480 = vld [vmem:[#allocation8 + $0x728] sm:$0xff]
    %v481 = vld [vmem:[#allocation8 + $0x730] sm:$0xff]
    %v482 = vld [vmem:[#allocation8 + $0x738] sm:$0xff]
    %v483 = vld [vmem:[#allocation8 + $0x740] sm:$0xff]
    %v484 = vld [vmem:[#allocation8 + $0x748] sm:$0xff]
    %v485 = vld [vmem:[#allocation8 + $0x750] sm:$0xff]
    %v486 = vld [vmem:[#allocation8 + $0x758] sm:$0xff]
    %v487 = vld [vmem:[#allocation8 + $0x760] sm:$0xff]
    %v488 = vld [vmem:[#allocation8 + $0x768] sm:$0xff]
    %v489 = vld [vmem:[#allocation8 + $0x770] sm:$0xff]
    %v490 = vld [vmem:[#allocation8 + $0x778] sm:$0xff]
    %v491 = vld [vmem:[#allocation8 + $0x780] sm:$0xff]
    %v492 = vld [vmem:[#allocation8 + $0x788] sm:$0xff]
    %v493 = vld [vmem:[#allocation8 + $0x790] sm:$0xff]
    %v494 = vld [vmem:[#allocation8 + $0x798] sm:$0xff]
    %v495 = vld [vmem:[#allocation8 + $0x7a0] sm:$0xff]
    %v496 = vld [vmem:[#allocation8 + $0x7a8] sm:$0xff]
    %v497 = vld [vmem:[#allocation8 + $0x7b0] sm:$0xff]
    %v498 = vld [vmem:[#allocation8 + $0x7b8] sm:$0xff]
    %v499 = vld [vmem:[#allocation8 + $0x7c0] sm:$0xff]
    %v500 = vld [vmem:[#allocation8 + $0x7c8] sm:$0xff]
    %v501 = vld [vmem:[#allocation8 + $0x7d0] sm:$0xff]
    %v502 = vld [vmem:[#allocation8 + $0x7d8] sm:$0xff]
    %v503 = vld [vmem:[#allocation8 + $0x7e0] sm:$0xff]
    %v504 = vld [vmem:[#allocation8 + $0x7e8] sm:$0xff]
    %v505 = vld [vmem:[#allocation8 + $0x7f0] sm:$0xff]
    %v506 = vld [vmem:[#allocation8 + $0x7f8] sm:$0xff]
    %v507 = vld [vmem:[#allocation10] sm:$0xff]
    %v509 = vperm.slane %v507, 0
    %v510 = vperm.slane %v507, 1
    %v511 = vperm.slane %v507, 2
    %v512 = vperm.slane %v507, 3
    %v513 = vperm.slane %v507, 4
    %v514 = vperm.slane %v507, 5
    %v515 = vperm.slane %v507, 6
    %v516 = vperm.slane %v507, 7
    %v781 = vunpack.c.l.b16 %v251
    %v782 = vunpack.c.h.b16 %v251
    %v783 = vunpack.c.l.b16 %v252
    %v784 = vunpack.c.h.b16 %v252
    %v785 = vunpack.c.l.b16 %v253
    %v786 = vunpack.c.h.b16 %v253
    %v787 = vunpack.c.l.b16 %v254
    %v788 = vunpack.c.h.b16 %v254
    %v789 = vunpack.c.l.b16 %v255
    %v790 = vunpack.c.h.b16 %v255
    %v791 = vunpack.c.l.b16 %v256
    %v792 = vunpack.c.h.b16 %v256
    %v793 = vunpack.c.l.b16 %v257
    %v794 = vunpack.c.h.b16 %v257
    %v795 = vunpack.c.l.b16 %v258
    %v796 = vunpack.c.h.b16 %v258
    %v797 = vunpack.c.l.b16 %v259
    %v798 = vunpack.c.h.b16 %v259
    %v799 = vunpack.c.l.b16 %v260
    %v800 = vunpack.c.h.b16 %v260
    %v801 = vunpack.c.l.b16 %v261
    %v802 = vunpack.c.h.b16 %v261
    %v803 = vunpack.c.l.b16 %v262
    %v804 = vunpack.c.h.b16 %v262
    %v805 = vunpack.c.l.b16 %v263
    %v806 = vunpack.c.h.b16 %v263
    %v807 = vunpack.c.l.b16 %v264
    %v808 = vunpack.c.h.b16 %v264
    %v809 = vunpack.c.l.b16 %v265
    %v810 = vunpack.c.h.b16 %v265
    %v811 = vunpack.c.l.b16 %v266
    %v812 = vunpack.c.h.b16 %v266
    %v813 = vunpack.c.l.b16 %v267
    %v814 = vunpack.c.h.b16 %v267
    %v815 = vunpack.c.l.b16 %v268
    %v816 = vunpack.c.h.b16 %v268
    %v817 = vunpack.c.l.b16 %v269
    %v818 = vunpack.c.h.b16 %v269
    %v819 = vunpack.c.l.b16 %v270
    %v820 = vunpack.c.h.b16 %v270
    %v821 = vunpack.c.l.b16 %v271
    %v822 = vunpack.c.h.b16 %v271
    %v823 = vunpack.c.l.b16 %v272
    %v824 = vunpack.c.h.b16 %v272
    %v825 = vunpack.c.l.b16 %v273
    %v826 = vunpack.c.h.b16 %v273
    %v827 = vunpack.c.l.b16 %v274
    %v828 = vunpack.c.h.b16 %v274
    %v829 = vunpack.c.l.b16 %v275
    %v830 = vunpack.c.h.b16 %v275
    %v831 = vunpack.c.l.b16 %v276
    %v832 = vunpack.c.h.b16 %v276
    %v833 = vunpack.c.l.b16 %v277
    %v834 = vunpack.c.h.b16 %v277
    %v835 = vunpack.c.l.b16 %v278
    %v836 = vunpack.c.h.b16 %v278
    %v837 = vunpack.c.l.b16 %v279
    %v838 = vunpack.c.h.b16 %v279
    %v839 = vunpack.c.l.b16 %v280
    %v840 = vunpack.c.h.b16 %v280
    %v841 = vunpack.c.l.b16 %v281
    %v842 = vunpack.c.h.b16 %v281
    %v843 = vunpack.c.l.b16 %v282
    %v844 = vunpack.c.h.b16 %v282
    %v845 = vunpack.c.l.b16 %v283
    %v846 = vunpack.c.h.b16 %v283
    %v847 = vunpack.c.l.b16 %v284
    %v848 = vunpack.c.h.b16 %v284
    %v849 = vunpack.c.l.b16 %v285
    %v850 = vunpack.c.h.b16 %v285
    %v851 = vunpack.c.l.b16 %v286
    %v852 = vunpack.c.h.b16 %v286
    %v853 = vunpack.c.l.b16 %v287
    %v854 = vunpack.c.h.b16 %v287
    %v855 = vunpack.c.l.b16 %v288
    %v856 = vunpack.c.h.b16 %v288
    %v857 = vunpack.c.l.b16 %v289
    %v858 = vunpack.c.h.b16 %v289
    %v859 = vunpack.c.l.b16 %v290
    %v860 = vunpack.c.h.b16 %v290
    %v861 = vunpack.c.l.b16 %v291
    %v862 = vunpack.c.h.b16 %v291
    %v863 = vunpack.c.l.b16 %v292
    %v864 = vunpack.c.h.b16 %v292
    %v865 = vunpack.c.l.b16 %v293
    %v866 = vunpack.c.h.b16 %v293
    %v867 = vunpack.c.l.b16 %v294
    %v868 = vunpack.c.h.b16 %v294
    %v869 = vunpack.c.l.b16 %v295
    %v870 = vunpack.c.h.b16 %v295
    %v871 = vunpack.c.l.b16 %v296
    %v872 = vunpack.c.h.b16 %v296
    %v873 = vunpack.c.l.b16 %v297
    %v874 = vunpack.c.h.b16 %v297
    %v875 = vunpack.c.l.b16 %v298
    %v876 = vunpack.c.h.b16 %v298
    %v877 = vunpack.c.l.b16 %v299
    %v878 = vunpack.c.h.b16 %v299
    %v879 = vunpack.c.l.b16 %v300
    %v880 = vunpack.c.h.b16 %v300
    %v881 = vunpack.c.l.b16 %v301
    %v882 = vunpack.c.h.b16 %v301
    %v883 = vunpack.c.l.b16 %v302
    %v884 = vunpack.c.h.b16 %v302
    %v885 = vunpack.c.l.b16 %v303
    %v886 = vunpack.c.h.b16 %v303
    %v887 = vunpack.c.l.b16 %v304
    %v888 = vunpack.c.h.b16 %v304
    %v889 = vunpack.c.l.b16 %v305
    %v890 = vunpack.c.h.b16 %v305
    %v891 = vunpack.c.l.b16 %v306
    %v892 = vunpack.c.h.b16 %v306
    %v893 = vunpack.c.l.b16 %v307
    %v894 = vunpack.c.h.b16 %v307
    %v895 = vunpack.c.l.b16 %v308
    %v896 = vunpack.c.h.b16 %v308
    %v897 = vunpack.c.l.b16 %v309
    %v898 = vunpack.c.h.b16 %v309
    %v899 = vunpack.c.l.b16 %v310
    %v900 = vunpack.c.h.b16 %v310
    %v901 = vunpack.c.l.b16 %v311
    %v902 = vunpack.c.h.b16 %v311
    %v903 = vunpack.c.l.b16 %v312
    %v904 = vunpack.c.h.b16 %v312
    %v905 = vunpack.c.l.b16 %v313
    %v906 = vunpack.c.h.b16 %v313
    %v907 = vunpack.c.l.b16 %v314
    %v908 = vunpack.c.h.b16 %v314
    %v909 = vunpack.c.l.b16 %v315
    %v910 = vunpack.c.h.b16 %v315
    %v911 = vunpack.c.l.b16 %v316
    %v912 = vunpack.c.h.b16 %v316
    %v913 = vunpack.c.l.b16 %v317
    %v914 = vunpack.c.h.b16 %v317
    %v915 = vunpack.c.l.b16 %v318
    %v916 = vunpack.c.h.b16 %v318
    %v917 = vunpack.c.l.b16 %v319
    %v918 = vunpack.c.h.b16 %v319
    %v919 = vunpack.c.l.b16 %v320
    %v920 = vunpack.c.h.b16 %v320
    %v921 = vunpack.c.l.b16 %v321
    %v922 = vunpack.c.h.b16 %v321
    %v923 = vunpack.c.l.b16 %v322
    %v924 = vunpack.c.h.b16 %v322
    %v925 = vunpack.c.l.b16 %v323
    %v926 = vunpack.c.h.b16 %v323
    %v927 = vunpack.c.l.b16 %v324
    %v928 = vunpack.c.h.b16 %v324
    %v929 = vunpack.c.l.b16 %v325
    %v930 = vunpack.c.h.b16 %v325
    %v931 = vunpack.c.l.b16 %v326
    %v932 = vunpack.c.h.b16 %v326
    %v933 = vunpack.c.l.b16 %v327
    %v934 = vunpack.c.h.b16 %v327
    %v935 = vunpack.c.l.b16 %v328
    %v936 = vunpack.c.h.b16 %v328
    %v937 = vunpack.c.l.b16 %v329
    %v938 = vunpack.c.h.b16 %v329
    %v939 = vunpack.c.l.b16 %v330
    %v940 = vunpack.c.h.b16 %v330
    %v941 = vunpack.c.l.b16 %v331
    %v942 = vunpack.c.h.b16 %v331
    %v943 = vunpack.c.l.b16 %v332
    %v944 = vunpack.c.h.b16 %v332
    %v945 = vunpack.c.l.b16 %v333
    %v946 = vunpack.c.h.b16 %v333
    %v947 = vunpack.c.l.b16 %v334
    %v948 = vunpack.c.h.b16 %v334
    %v949 = vunpack.c.l.b16 %v335
    %v950 = vunpack.c.h.b16 %v335
    %v951 = vunpack.c.l.b16 %v336
    %v952 = vunpack.c.h.b16 %v336
    %v953 = vunpack.c.l.b16 %v337
    %v954 = vunpack.c.h.b16 %v337
    %v955 = vunpack.c.l.b16 %v338
    %v956 = vunpack.c.h.b16 %v338
    %v957 = vunpack.c.l.b16 %v339
    %v958 = vunpack.c.h.b16 %v339
    %v959 = vunpack.c.l.b16 %v340
    %v960 = vunpack.c.h.b16 %v340
    %v961 = vunpack.c.l.b16 %v341
    %v962 = vunpack.c.h.b16 %v341
    %v963 = vunpack.c.l.b16 %v342
    %v964 = vunpack.c.h.b16 %v342
    %v965 = vunpack.c.l.b16 %v343
    %v966 = vunpack.c.h.b16 %v343
    %v967 = vunpack.c.l.b16 %v344
    %v968 = vunpack.c.h.b16 %v344
    %v969 = vunpack.c.l.b16 %v345
    %v970 = vunpack.c.h.b16 %v345
    %v971 = vunpack.c.l.b16 %v346
    %v972 = vunpack.c.h.b16 %v346
    %v973 = vunpack.c.l.b16 %v347
    %v974 = vunpack.c.h.b16 %v347
    %v975 = vunpack.c.l.b16 %v348
    %v976 = vunpack.c.h.b16 %v348
    %v977 = vunpack.c.l.b16 %v349
    %v978 = vunpack.c.h.b16 %v349
    %v979 = vunpack.c.l.b16 %v350
    %v980 = vunpack.c.h.b16 %v350
    %v981 = vunpack.c.l.b16 %v351
    %v982 = vunpack.c.h.b16 %v351
    %v983 = vunpack.c.l.b16 %v352
    %v984 = vunpack.c.h.b16 %v352
    %v985 = vunpack.c.l.b16 %v353
    %v986 = vunpack.c.h.b16 %v353
    %v987 = vunpack.c.l.b16 %v354
    %v988 = vunpack.c.h.b16 %v354
    %v989 = vunpack.c.l.b16 %v355
    %v990 = vunpack.c.h.b16 %v355
    %v991 = vunpack.c.l.b16 %v356
    %v992 = vunpack.c.h.b16 %v356
    %v993 = vunpack.c.l.b16 %v357
    %v994 = vunpack.c.h.b16 %v357
    %v995 = vunpack.c.l.b16 %v358
    %v996 = vunpack.c.h.b16 %v358
    %v997 = vunpack.c.l.b16 %v359
    %v998 = vunpack.c.h.b16 %v359
    %v999 = vunpack.c.l.b16 %v360
    %v1000 = vunpack.c.h.b16 %v360
    %v1001 = vunpack.c.l.b16 %v361
    %v1002 = vunpack.c.h.b16 %v361
    %v1003 = vunpack.c.l.b16 %v362
    %v1004 = vunpack.c.h.b16 %v362
    %v1005 = vunpack.c.l.b16 %v363
    %v1006 = vunpack.c.h.b16 %v363
    %v1007 = vunpack.c.l.b16 %v364
    %v1008 = vunpack.c.h.b16 %v364
    %v1009 = vunpack.c.l.b16 %v365
    %v1010 = vunpack.c.h.b16 %v365
    %v1011 = vunpack.c.l.b16 %v366
    %v1012 = vunpack.c.h.b16 %v366
    %v1013 = vunpack.c.l.b16 %v367
    %v1014 = vunpack.c.h.b16 %v367
    %v1015 = vunpack.c.l.b16 %v368
    %v1016 = vunpack.c.h.b16 %v368
    %v1017 = vunpack.c.l.b16 %v369
    %v1018 = vunpack.c.h.b16 %v369
    %v1019 = vunpack.c.l.b16 %v370
    %v1020 = vunpack.c.h.b16 %v370
    %v1021 = vunpack.c.l.b16 %v371
    %v1022 = vunpack.c.h.b16 %v371
    %v1023 = vunpack.c.l.b16 %v372
    %v1024 = vunpack.c.h.b16 %v372
    %v1025 = vunpack.c.l.b16 %v373
    %v1026 = vunpack.c.h.b16 %v373
    %v1027 = vunpack.c.l.b16 %v374
    %v1028 = vunpack.c.h.b16 %v374
    %v1029 = vunpack.c.l.b16 %v375
    %v1030 = vunpack.c.h.b16 %v375
    %v1031 = vunpack.c.l.b16 %v376
    %v1032 = vunpack.c.h.b16 %v376
    %v1033 = vunpack.c.l.b16 %v377
    %v1034 = vunpack.c.h.b16 %v377
    %v1035 = vunpack.c.l.b16 %v378
    %v1036 = vunpack.c.h.b16 %v378
    %v1037 = vunpack.c.l.b16 %v379
    %v1038 = vunpack.c.h.b16 %v379
    %v1039 = vunpack.c.l.b16 %v380
    %v1040 = vunpack.c.h.b16 %v380
    %v1041 = vunpack.c.l.b16 %v381
    %v1042 = vunpack.c.h.b16 %v381
    %v1043 = vunpack.c.l.b16 %v382
    %v1044 = vunpack.c.h.b16 %v382
    %v1045 = vunpack.c.l.b16 %v383
    %v1046 = vunpack.c.h.b16 %v383
    %v1047 = vunpack.c.l.b16 %v384
    %v1048 = vunpack.c.h.b16 %v384
    %v1049 = vunpack.c.l.b16 %v385
    %v1050 = vunpack.c.h.b16 %v385
    %v1051 = vunpack.c.l.b16 %v386
    %v1052 = vunpack.c.h.b16 %v386
    %v1053 = vunpack.c.l.b16 %v387
    %v1054 = vunpack.c.h.b16 %v387
    %v1055 = vunpack.c.l.b16 %v388
    %v1056 = vunpack.c.h.b16 %v388
    %v1057 = vunpack.c.l.b16 %v389
    %v1058 = vunpack.c.h.b16 %v389
    %v1059 = vunpack.c.l.b16 %v390
    %v1060 = vunpack.c.h.b16 %v390
    %v1061 = vunpack.c.l.b16 %v391
    %v1062 = vunpack.c.h.b16 %v391
    %v1063 = vunpack.c.l.b16 %v392
    %v1064 = vunpack.c.h.b16 %v392
    %v1065 = vunpack.c.l.b16 %v393
    %v1066 = vunpack.c.h.b16 %v393
    %v1067 = vunpack.c.l.b16 %v394
    %v1068 = vunpack.c.h.b16 %v394
    %v1069 = vunpack.c.l.b16 %v395
    %v1070 = vunpack.c.h.b16 %v395
    %v1071 = vunpack.c.l.b16 %v396
    %v1072 = vunpack.c.h.b16 %v396
    %v1073 = vunpack.c.l.b16 %v397
    %v1074 = vunpack.c.h.b16 %v397
    %v1075 = vunpack.c.l.b16 %v398
    %v1076 = vunpack.c.h.b16 %v398
    %v1077 = vunpack.c.l.b16 %v399
    %v1078 = vunpack.c.h.b16 %v399
    %v1079 = vunpack.c.l.b16 %v400
    %v1080 = vunpack.c.h.b16 %v400
    %v1081 = vunpack.c.l.b16 %v401
    %v1082 = vunpack.c.h.b16 %v401
    %v1083 = vunpack.c.l.b16 %v402
    %v1084 = vunpack.c.h.b16 %v402
    %v1085 = vunpack.c.l.b16 %v403
    %v1086 = vunpack.c.h.b16 %v403
    %v1087 = vunpack.c.l.b16 %v404
    %v1088 = vunpack.c.h.b16 %v404
    %v1089 = vunpack.c.l.b16 %v405
    %v1090 = vunpack.c.h.b16 %v405
    %v1091 = vunpack.c.l.b16 %v406
    %v1092 = vunpack.c.h.b16 %v406
    %v1093 = vunpack.c.l.b16 %v407
    %v1094 = vunpack.c.h.b16 %v407
    %v1095 = vunpack.c.l.b16 %v408
    %v1096 = vunpack.c.h.b16 %v408
    %v1097 = vunpack.c.l.b16 %v409
    %v1098 = vunpack.c.h.b16 %v409
    %v1099 = vunpack.c.l.b16 %v410
    %v1100 = vunpack.c.h.b16 %v410
    %v1101 = vunpack.c.l.b16 %v411
    %v1102 = vunpack.c.h.b16 %v411
    %v1103 = vunpack.c.l.b16 %v412
    %v1104 = vunpack.c.h.b16 %v412
    %v1105 = vunpack.c.l.b16 %v413
    %v1106 = vunpack.c.h.b16 %v413
    %v1107 = vunpack.c.l.b16 %v414
    %v1108 = vunpack.c.h.b16 %v414
    %v1109 = vunpack.c.l.b16 %v415
    %v1110 = vunpack.c.h.b16 %v415
    %v1111 = vunpack.c.l.b16 %v416
    %v1112 = vunpack.c.h.b16 %v416
    %v1113 = vunpack.c.l.b16 %v417
    %v1114 = vunpack.c.h.b16 %v417
    %v1115 = vunpack.c.l.b16 %v418
    %v1116 = vunpack.c.h.b16 %v418
    %v1117 = vunpack.c.l.b16 %v419
    %v1118 = vunpack.c.h.b16 %v419
    %v1119 = vunpack.c.l.b16 %v420
    %v1120 = vunpack.c.h.b16 %v420
    %v1121 = vunpack.c.l.b16 %v421
    %v1122 = vunpack.c.h.b16 %v421
    %v1123 = vunpack.c.l.b16 %v422
    %v1124 = vunpack.c.h.b16 %v422
    %v1125 = vunpack.c.l.b16 %v423
    %v1126 = vunpack.c.h.b16 %v423
    %v1127 = vunpack.c.l.b16 %v424
    %v1128 = vunpack.c.h.b16 %v424
    %v1129 = vunpack.c.l.b16 %v425
    %v1130 = vunpack.c.h.b16 %v425
    %v1131 = vunpack.c.l.b16 %v426
    %v1132 = vunpack.c.h.b16 %v426
    %v1133 = vunpack.c.l.b16 %v427
    %v1134 = vunpack.c.h.b16 %v427
    %v1135 = vunpack.c.l.b16 %v428
    %v1136 = vunpack.c.h.b16 %v428
    %v1137 = vunpack.c.l.b16 %v429
    %v1138 = vunpack.c.h.b16 %v429
    %v1139 = vunpack.c.l.b16 %v430
    %v1140 = vunpack.c.h.b16 %v430
    %v1141 = vunpack.c.l.b16 %v431
    %v1142 = vunpack.c.h.b16 %v431
    %v1143 = vunpack.c.l.b16 %v432
    %v1144 = vunpack.c.h.b16 %v432
    %v1145 = vunpack.c.l.b16 %v433
    %v1146 = vunpack.c.h.b16 %v433
    %v1147 = vunpack.c.l.b16 %v434
    %v1148 = vunpack.c.h.b16 %v434
    %v1149 = vunpack.c.l.b16 %v435
    %v1150 = vunpack.c.h.b16 %v435
    %v1151 = vunpack.c.l.b16 %v436
    %v1152 = vunpack.c.h.b16 %v436
    %v1153 = vunpack.c.l.b16 %v437
    %v1154 = vunpack.c.h.b16 %v437
    %v1155 = vunpack.c.l.b16 %v438
    %v1156 = vunpack.c.h.b16 %v438
    %v1157 = vunpack.c.l.b16 %v439
    %v1158 = vunpack.c.h.b16 %v439
    %v1159 = vunpack.c.l.b16 %v440
    %v1160 = vunpack.c.h.b16 %v440
    %v1161 = vunpack.c.l.b16 %v441
    %v1162 = vunpack.c.h.b16 %v441
    %v1163 = vunpack.c.l.b16 %v442
    %v1164 = vunpack.c.h.b16 %v442
    %v1165 = vunpack.c.l.b16 %v443
    %v1166 = vunpack.c.h.b16 %v443
    %v1167 = vunpack.c.l.b16 %v444
    %v1168 = vunpack.c.h.b16 %v444
    %v1169 = vunpack.c.l.b16 %v445
    %v1170 = vunpack.c.h.b16 %v445
    %v1171 = vunpack.c.l.b16 %v446
    %v1172 = vunpack.c.h.b16 %v446
    %v1173 = vunpack.c.l.b16 %v447
    %v1174 = vunpack.c.h.b16 %v447
    %v1175 = vunpack.c.l.b16 %v448
    %v1176 = vunpack.c.h.b16 %v448
    %v1177 = vunpack.c.l.b16 %v449
    %v1178 = vunpack.c.h.b16 %v449
    %v1179 = vunpack.c.l.b16 %v450
    %v1180 = vunpack.c.h.b16 %v450
    %v1181 = vunpack.c.l.b16 %v451
    %v1182 = vunpack.c.h.b16 %v451
    %v1183 = vunpack.c.l.b16 %v452
    %v1184 = vunpack.c.h.b16 %v452
    %v1185 = vunpack.c.l.b16 %v453
    %v1186 = vunpack.c.h.b16 %v453
    %v1187 = vunpack.c.l.b16 %v454
    %v1188 = vunpack.c.h.b16 %v454
    %v1189 = vunpack.c.l.b16 %v455
    %v1190 = vunpack.c.h.b16 %v455
    %v1191 = vunpack.c.l.b16 %v456
    %v1192 = vunpack.c.h.b16 %v456
    %v1193 = vunpack.c.l.b16 %v457
    %v1194 = vunpack.c.h.b16 %v457
    %v1195 = vunpack.c.l.b16 %v458
    %v1196 = vunpack.c.h.b16 %v458
    %v1197 = vunpack.c.l.b16 %v459
    %v1198 = vunpack.c.h.b16 %v459
    %v1199 = vunpack.c.l.b16 %v460
    %v1200 = vunpack.c.h.b16 %v460
    %v1201 = vunpack.c.l.b16 %v461
    %v1202 = vunpack.c.h.b16 %v461
    %v1203 = vunpack.c.l.b16 %v462
    %v1204 = vunpack.c.h.b16 %v462
    %v1205 = vunpack.c.l.b16 %v463
    %v1206 = vunpack.c.h.b16 %v463
    %v1207 = vunpack.c.l.b16 %v464
    %v1208 = vunpack.c.h.b16 %v464
    %v1209 = vunpack.c.l.b16 %v465
    %v1210 = vunpack.c.h.b16 %v465
    %v1211 = vunpack.c.l.b16 %v466
    %v1212 = vunpack.c.h.b16 %v466
    %v1213 = vunpack.c.l.b16 %v467
    %v1214 = vunpack.c.h.b16 %v467
    %v1215 = vunpack.c.l.b16 %v468
    %v1216 = vunpack.c.h.b16 %v468
    %v1217 = vunpack.c.l.b16 %v469
    %v1218 = vunpack.c.h.b16 %v469
    %v1219 = vunpack.c.l.b16 %v470
    %v1220 = vunpack.c.h.b16 %v470
    %v1221 = vunpack.c.l.b16 %v471
    %v1222 = vunpack.c.h.b16 %v471
    %v1223 = vunpack.c.l.b16 %v472
    %v1224 = vunpack.c.h.b16 %v472
    %v1225 = vunpack.c.l.b16 %v473
    %v1226 = vunpack.c.h.b16 %v473
    %v1227 = vunpack.c.l.b16 %v474
    %v1228 = vunpack.c.h.b16 %v474
    %v1229 = vunpack.c.l.b16 %v475
    %v1230 = vunpack.c.h.b16 %v475
    %v1231 = vunpack.c.l.b16 %v476
    %v1232 = vunpack.c.h.b16 %v476
    %v1233 = vunpack.c.l.b16 %v477
    %v1234 = vunpack.c.h.b16 %v477
    %v1235 = vunpack.c.l.b16 %v478
    %v1236 = vunpack.c.h.b16 %v478
    %v1237 = vunpack.c.l.b16 %v479
    %v1238 = vunpack.c.h.b16 %v479
    %v1239 = vunpack.c.l.b16 %v480
    %v1240 = vunpack.c.h.b16 %v480
    %v1241 = vunpack.c.l.b16 %v481
    %v1242 = vunpack.c.h.b16 %v481
    %v1243 = vunpack.c.l.b16 %v482
    %v1244 = vunpack.c.h.b16 %v482
    %v1245 = vunpack.c.l.b16 %v483
    %v1246 = vunpack.c.h.b16 %v483
    %v1247 = vunpack.c.l.b16 %v484
    %v1248 = vunpack.c.h.b16 %v484
    %v1249 = vunpack.c.l.b16 %v485
    %v1250 = vunpack.c.h.b16 %v485
    %v1251 = vunpack.c.l.b16 %v486
    %v1252 = vunpack.c.h.b16 %v486
    %v1253 = vunpack.c.l.b16 %v487
    %v1254 = vunpack.c.h.b16 %v487
    %v1255 = vunpack.c.l.b16 %v488
    %v1256 = vunpack.c.h.b16 %v488
    %v1257 = vunpack.c.l.b16 %v489
    %v1258 = vunpack.c.h.b16 %v489
    %v1259 = vunpack.c.l.b16 %v490
    %v1260 = vunpack.c.h.b16 %v490
    %v1261 = vunpack.c.l.b16 %v491
    %v1262 = vunpack.c.h.b16 %v491
    %v1263 = vunpack.c.l.b16 %v492
    %v1264 = vunpack.c.h.b16 %v492
    %v1265 = vunpack.c.l.b16 %v493
    %v1266 = vunpack.c.h.b16 %v493
    %v1267 = vunpack.c.l.b16 %v494
    %v1268 = vunpack.c.h.b16 %v494
    %v1269 = vunpack.c.l.b16 %v495
    %v1270 = vunpack.c.h.b16 %v495
    %v1271 = vunpack.c.l.b16 %v496
    %v1272 = vunpack.c.h.b16 %v496
    %v1273 = vunpack.c.l.b16 %v497
    %v1274 = vunpack.c.h.b16 %v497
    %v1275 = vunpack.c.l.b16 %v498
    %v1276 = vunpack.c.h.b16 %v498
    %v1277 = vunpack.c.l.b16 %v499
    %v1278 = vunpack.c.h.b16 %v499
    %v1279 = vunpack.c.l.b16 %v500
    %v1280 = vunpack.c.h.b16 %v500
    %v1281 = vunpack.c.l.b16 %v501
    %v1282 = vunpack.c.h.b16 %v501
    %v1283 = vunpack.c.l.b16 %v502
    %v1284 = vunpack.c.h.b16 %v502
    %v1285 = vunpack.c.l.b16 %v503
    %v1286 = vunpack.c.h.b16 %v503
    %v1287 = vunpack.c.l.b16 %v504
    %v1288 = vunpack.c.h.b16 %v504
    %v1289 = vunpack.c.l.b16 %v505
    %v1290 = vunpack.c.h.b16 %v505
    %v1291 = vunpack.c.l.b16 %v506
    %v1292 = vunpack.c.h.b16 %v506
    %v1293 = vpack.c.b16 %v789, %v781
    %v1294 = vpack.c.b16 %v790, %v782
    %v1295 = vpack.c.b16 %v791, %v783
    %v1296 = vpack.c.b16 %v792, %v784
    %v1297 = vpack.c.b16 %v793, %v785
    %v1298 = vpack.c.b16 %v794, %v786
    %v1299 = vpack.c.b16 %v795, %v787
    %v1300 = vpack.c.b16 %v796, %v788
    %v1301 = vpack.c.b16 %v805, %v797
    %v1302 = vpack.c.b16 %v806, %v798
    %v1303 = vpack.c.b16 %v807, %v799
    %v1304 = vpack.c.b16 %v808, %v800
    %v1305 = vpack.c.b16 %v809, %v801
    %v1306 = vpack.c.b16 %v810, %v802
    %v1307 = vpack.c.b16 %v811, %v803
    %v1308 = vpack.c.b16 %v812, %v804
    %v1309 = vpack.c.b16 %v821, %v813
    %v1310 = vpack.c.b16 %v822, %v814
    %v1311 = vpack.c.b16 %v823, %v815
    %v1312 = vpack.c.b16 %v824, %v816
    %v1313 = vpack.c.b16 %v825, %v817
    %v1314 = vpack.c.b16 %v826, %v818
    %v1315 = vpack.c.b16 %v827, %v819
    %v1316 = vpack.c.b16 %v828, %v820
    %v1317 = vpack.c.b16 %v837, %v829
    %v1318 = vpack.c.b16 %v838, %v830
    %v1319 = vpack.c.b16 %v839, %v831
    %v1320 = vpack.c.b16 %v840, %v832
    %v1321 = vpack.c.b16 %v841, %v833
    %v1322 = vpack.c.b16 %v842, %v834
    %v1323 = vpack.c.b16 %v843, %v835
    %v1324 = vpack.c.b16 %v844, %v836
    %v1325 = vpack.c.b16 %v853, %v845
    %v1326 = vpack.c.b16 %v854, %v846
    %v1327 = vpack.c.b16 %v855, %v847
    %v1328 = vpack.c.b16 %v856, %v848
    %v1329 = vpack.c.b16 %v857, %v849
    %v1330 = vpack.c.b16 %v858, %v850
    %v1331 = vpack.c.b16 %v859, %v851
    %v1332 = vpack.c.b16 %v860, %v852
    %v1333 = vpack.c.b16 %v869, %v861
    %v1334 = vpack.c.b16 %v870, %v862
    %v1335 = vpack.c.b16 %v871, %v863
    %v1336 = vpack.c.b16 %v872, %v864
    %v1337 = vpack.c.b16 %v873, %v865
    %v1338 = vpack.c.b16 %v874, %v866
    %v1339 = vpack.c.b16 %v875, %v867
    %v1340 = vpack.c.b16 %v876, %v868
    %v1341 = vpack.c.b16 %v885, %v877
    %v1342 = vpack.c.b16 %v886, %v878
    %v1343 = vpack.c.b16 %v887, %v879
    %v1344 = vpack.c.b16 %v888, %v880
    %v1345 = vpack.c.b16 %v889, %v881
    %v1346 = vpack.c.b16 %v890, %v882
    %v1347 = vpack.c.b16 %v891, %v883
    %v1348 = vpack.c.b16 %v892, %v884
    %v1349 = vpack.c.b16 %v901, %v893
    %v1350 = vpack.c.b16 %v902, %v894
    %v1351 = vpack.c.b16 %v903, %v895
    %v1352 = vpack.c.b16 %v904, %v896
    %v1353 = vpack.c.b16 %v905, %v897
    %v1354 = vpack.c.b16 %v906, %v898
    %v1355 = vpack.c.b16 %v907, %v899
    %v1356 = vpack.c.b16 %v908, %v900
    %v1357 = vpack.c.b16 %v917, %v909
    %v1358 = vpack.c.b16 %v918, %v910
    %v1359 = vpack.c.b16 %v919, %v911
    %v1360 = vpack.c.b16 %v920, %v912
    %v1361 = vpack.c.b16 %v921, %v913
    %v1362 = vpack.c.b16 %v922, %v914
    %v1363 = vpack.c.b16 %v923, %v915
    %v1364 = vpack.c.b16 %v924, %v916
    %v1365 = vpack.c.b16 %v933, %v925
    %v1366 = vpack.c.b16 %v934, %v926
    %v1367 = vpack.c.b16 %v935, %v927
    %v1368 = vpack.c.b16 %v936, %v928
    %v1369 = vpack.c.b16 %v937, %v929
    %v1370 = vpack.c.b16 %v938, %v930
    %v1371 = vpack.c.b16 %v939, %v931
    %v1372 = vpack.c.b16 %v940, %v932
    %v1373 = vpack.c.b16 %v949, %v941
    %v1374 = vpack.c.b16 %v950, %v942
    %v1375 = vpack.c.b16 %v951, %v943
    %v1376 = vpack.c.b16 %v952, %v944
    %v1377 = vpack.c.b16 %v953, %v945
    %v1378 = vpack.c.b16 %v954, %v946
    %v1379 = vpack.c.b16 %v955, %v947
    %v1380 = vpack.c.b16 %v956, %v948
    %v1381 = vpack.c.b16 %v965, %v957
    %v1382 = vpack.c.b16 %v966, %v958
    %v1383 = vpack.c.b16 %v967, %v959
    %v1384 = vpack.c.b16 %v968, %v960
    %v1385 = vpack.c.b16 %v969, %v961
    %v1386 = vpack.c.b16 %v970, %v962
    %v1387 = vpack.c.b16 %v971, %v963
    %v1388 = vpack.c.b16 %v972, %v964
    %v1389 = vpack.c.b16 %v981, %v973
    %v1390 = vpack.c.b16 %v982, %v974
    %v1391 = vpack.c.b16 %v983, %v975
    %v1392 = vpack.c.b16 %v984, %v976
    %v1393 = vpack.c.b16 %v985, %v977
    %v1394 = vpack.c.b16 %v986, %v978
    %v1395 = vpack.c.b16 %v987, %v979
    %v1396 = vpack.c.b16 %v988, %v980
    %v1397 = vpack.c.b16 %v997, %v989
    %v1398 = vpack.c.b16 %v998, %v990
    %v1399 = vpack.c.b16 %v999, %v991
    %v1400 = vpack.c.b16 %v1000, %v992
    %v1401 = vpack.c.b16 %v1001, %v993
    %v1402 = vpack.c.b16 %v1002, %v994
    %v1403 = vpack.c.b16 %v1003, %v995
    %v1404 = vpack.c.b16 %v1004, %v996
    %v1405 = vpack.c.b16 %v1013, %v1005
    %v1406 = vpack.c.b16 %v1014, %v1006
    %v1407 = vpack.c.b16 %v1015, %v1007
    %v1408 = vpack.c.b16 %v1016, %v1008
    %v1409 = vpack.c.b16 %v1017, %v1009
    %v1410 = vpack.c.b16 %v1018, %v1010
    %v1411 = vpack.c.b16 %v1019, %v1011
    %v1412 = vpack.c.b16 %v1020, %v1012
    %v1413 = vpack.c.b16 %v1029, %v1021
    %v1414 = vpack.c.b16 %v1030, %v1022
    %v1415 = vpack.c.b16 %v1031, %v1023
    %v1416 = vpack.c.b16 %v1032, %v1024
    %v1417 = vpack.c.b16 %v1033, %v1025
    %v1418 = vpack.c.b16 %v1034, %v1026
    %v1419 = vpack.c.b16 %v1035, %v1027
    %v1420 = vpack.c.b16 %v1036, %v1028
    %v1421 = vpack.c.b16 %v1045, %v1037
    %v1422 = vpack.c.b16 %v1046, %v1038
    %v1423 = vpack.c.b16 %v1047, %v1039
    %v1424 = vpack.c.b16 %v1048, %v1040
    %v1425 = vpack.c.b16 %v1049, %v1041
    %v1426 = vpack.c.b16 %v1050, %v1042
    %v1427 = vpack.c.b16 %v1051, %v1043
    %v1428 = vpack.c.b16 %v1052, %v1044
    %v1429 = vpack.c.b16 %v1061, %v1053
    %v1430 = vpack.c.b16 %v1062, %v1054
    %v1431 = vpack.c.b16 %v1063, %v1055
    %v1432 = vpack.c.b16 %v1064, %v1056
    %v1433 = vpack.c.b16 %v1065, %v1057
    %v1434 = vpack.c.b16 %v1066, %v1058
    %v1435 = vpack.c.b16 %v1067, %v1059
    %v1436 = vpack.c.b16 %v1068, %v1060
    %v1437 = vpack.c.b16 %v1077, %v1069
    %v1438 = vpack.c.b16 %v1078, %v1070
    %v1439 = vpack.c.b16 %v1079, %v1071
    %v1440 = vpack.c.b16 %v1080, %v1072
    %v1441 = vpack.c.b16 %v1081, %v1073
    %v1442 = vpack.c.b16 %v1082, %v1074
    %v1443 = vpack.c.b16 %v1083, %v1075
    %v1444 = vpack.c.b16 %v1084, %v1076
    %v1445 = vpack.c.b16 %v1093, %v1085
    %v1446 = vpack.c.b16 %v1094, %v1086
    %v1447 = vpack.c.b16 %v1095, %v1087
    %v1448 = vpack.c.b16 %v1096, %v1088
    %v1449 = vpack.c.b16 %v1097, %v1089
    %v1450 = vpack.c.b16 %v1098, %v1090
    %v1451 = vpack.c.b16 %v1099, %v1091
    %v1452 = vpack.c.b16 %v1100, %v1092
    %v1453 = vpack.c.b16 %v1109, %v1101
    %v1454 = vpack.c.b16 %v1110, %v1102
    %v1455 = vpack.c.b16 %v1111, %v1103
    %v1456 = vpack.c.b16 %v1112, %v1104
    %v1457 = vpack.c.b16 %v1113, %v1105
    %v1458 = vpack.c.b16 %v1114, %v1106
    %v1459 = vpack.c.b16 %v1115, %v1107
    %v1460 = vpack.c.b16 %v1116, %v1108
    %v1461 = vpack.c.b16 %v1125, %v1117
    %v1462 = vpack.c.b16 %v1126, %v1118
    %v1463 = vpack.c.b16 %v1127, %v1119
    %v1464 = vpack.c.b16 %v1128, %v1120
    %v1465 = vpack.c.b16 %v1129, %v1121
    %v1466 = vpack.c.b16 %v1130, %v1122
    %v1467 = vpack.c.b16 %v1131, %v1123
    %v1468 = vpack.c.b16 %v1132, %v1124
    %v1469 = vpack.c.b16 %v1141, %v1133
    %v1470 = vpack.c.b16 %v1142, %v1134
    %v1471 = vpack.c.b16 %v1143, %v1135
    %v1472 = vpack.c.b16 %v1144, %v1136
    %v1473 = vpack.c.b16 %v1145, %v1137
    %v1474 = vpack.c.b16 %v1146, %v1138
    %v1475 = vpack.c.b16 %v1147, %v1139
    %v1476 = vpack.c.b16 %v1148, %v1140
    %v1477 = vpack.c.b16 %v1157, %v1149
    %v1478 = vpack.c.b16 %v1158, %v1150
    %v1479 = vpack.c.b16 %v1159, %v1151
    %v1480 = vpack.c.b16 %v1160, %v1152
    %v1481 = vpack.c.b16 %v1161, %v1153
    %v1482 = vpack.c.b16 %v1162, %v1154
    %v1483 = vpack.c.b16 %v1163, %v1155
    %v1484 = vpack.c.b16 %v1164, %v1156
    %v1485 = vpack.c.b16 %v1173, %v1165
    %v1486 = vpack.c.b16 %v1174, %v1166
    %v1487 = vpack.c.b16 %v1175, %v1167
    %v1488 = vpack.c.b16 %v1176, %v1168
    %v1489 = vpack.c.b16 %v1177, %v1169
    %v1490 = vpack.c.b16 %v1178, %v1170
    %v1491 = vpack.c.b16 %v1179, %v1171
    %v1492 = vpack.c.b16 %v1180, %v1172
    %v1493 = vpack.c.b16 %v1189, %v1181
    %v1494 = vpack.c.b16 %v1190, %v1182
    %v1495 = vpack.c.b16 %v1191, %v1183
    %v1496 = vpack.c.b16 %v1192, %v1184
    %v1497 = vpack.c.b16 %v1193, %v1185
    %v1498 = vpack.c.b16 %v1194, %v1186
    %v1499 = vpack.c.b16 %v1195, %v1187
    %v1500 = vpack.c.b16 %v1196, %v1188
    %v1501 = vpack.c.b16 %v1205, %v1197
    %v1502 = vpack.c.b16 %v1206, %v1198
    %v1503 = vpack.c.b16 %v1207, %v1199
    %v1504 = vpack.c.b16 %v1208, %v1200
    %v1505 = vpack.c.b16 %v1209, %v1201
    %v1506 = vpack.c.b16 %v1210, %v1202
    %v1507 = vpack.c.b16 %v1211, %v1203
    %v1508 = vpack.c.b16 %v1212, %v1204
    %v1509 = vpack.c.b16 %v1221, %v1213
    %v1510 = vpack.c.b16 %v1222, %v1214
    %v1511 = vpack.c.b16 %v1223, %v1215
    %v1512 = vpack.c.b16 %v1224, %v1216
    %v1513 = vpack.c.b16 %v1225, %v1217
    %v1514 = vpack.c.b16 %v1226, %v1218
    %v1515 = vpack.c.b16 %v1227, %v1219
    %v1516 = vpack.c.b16 %v1228, %v1220
    %v1517 = vpack.c.b16 %v1237, %v1229
    %v1518 = vpack.c.b16 %v1238, %v1230
    %v1519 = vpack.c.b16 %v1239, %v1231
    %v1520 = vpack.c.b16 %v1240, %v1232
    %v1521 = vpack.c.b16 %v1241, %v1233
    %v1522 = vpack.c.b16 %v1242, %v1234
    %v1523 = vpack.c.b16 %v1243, %v1235
    %v1524 = vpack.c.b16 %v1244, %v1236
    %v1525 = vpack.c.b16 %v1253, %v1245
    %v1526 = vpack.c.b16 %v1254, %v1246
    %v1527 = vpack.c.b16 %v1255, %v1247
    %v1528 = vpack.c.b16 %v1256, %v1248
    %v1529 = vpack.c.b16 %v1257, %v1249
    %v1530 = vpack.c.b16 %v1258, %v1250
    %v1531 = vpack.c.b16 %v1259, %v1251
    %v1532 = vpack.c.b16 %v1260, %v1252
    %v1533 = vpack.c.b16 %v1269, %v1261
    %v1534 = vpack.c.b16 %v1270, %v1262
    %v1535 = vpack.c.b16 %v1271, %v1263
    %v1536 = vpack.c.b16 %v1272, %v1264
    %v1537 = vpack.c.b16 %v1273, %v1265
    %v1538 = vpack.c.b16 %v1274, %v1266
    %v1539 = vpack.c.b16 %v1275, %v1267
    %v1540 = vpack.c.b16 %v1276, %v1268
    %v1541 = vpack.c.b16 %v1285, %v1277
    %v1542 = vpack.c.b16 %v1286, %v1278
    %v1543 = vpack.c.b16 %v1287, %v1279
    %v1544 = vpack.c.b16 %v1288, %v1280
    %v1545 = vpack.c.b16 %v1289, %v1281
    %v1546 = vpack.c.b16 %v1290, %v1282
    %v1547 = vpack.c.b16 %v1291, %v1283
    %v1548 = vpack.c.b16 %v1292, %v1284
    %1805 = vmatpush.bf16.msra.mxu0 %v1349
    %1806 = vmatpush.bf16.msra.mxu0 %v1341
    %1807 = vmatpush.bf16.msra.mxu0 %v1333
    %1808 = vmatpush.bf16.msra.mxu0 %v1325
    %1809 = vmatpush.bf16.msra.mxu0 %v1317
    %1810 = vmatpush.bf16.msra.mxu0 %v1309
    %1811 = vmatpush.bf16.msra.mxu0 %v1301
    %1812 = vmatpush.bf16.msra.mxu0 %v1293
    %1813 = vmatmul.bf16.gmra.mxu0 %v247
    %v1814 = vpop.f32.mrf.mxu0
    %v1815 = vadd.f32 %v509, %v1814
    %v1816 = vpop.f32.mrf.mxu0
    %v1817 = vadd.f32 %v509, %v1816
    %1818 = vdwg.mxu0
    %1819 = vmatpush.bf16.msra.mxu0 %v1413
    %1820 = vmatpush.bf16.msra.mxu0 %v1405
    %1821 = vmatpush.bf16.msra.mxu0 %v1397
    %1822 = vmatpush.bf16.msra.mxu0 %v1389
    %1823 = vmatpush.bf16.msra.mxu0 %v1381
    %1824 = vmatpush.bf16.msra.mxu0 %v1373
    %1825 = vmatpush.bf16.msra.mxu0 %v1365
    %1826 = vmatpush.bf16.msra.mxu0 %v1357
    %1827 = vmatmul.bf16.gmra.mxu0 %v248
    %v1828 = vpop.f32.mrf.mxu0
    %v1829 = vadd.f32 %v1815, %v1828
    %v1830 = vpop.f32.mrf.mxu0
    %v1831 = vadd.f32 %v1817, %v1830
    %1832 = vdwg.mxu0
    %1833 = vmatpush.bf16.msra.mxu0 %v1477
    %1834 = vmatpush.bf16.msra.mxu0 %v1469
    %1835 = vmatpush.bf16.msra.mxu0 %v1461
    %1836 = vmatpush.bf16.msra.mxu0 %v1453
    %1837 = vmatpush.bf16.msra.mxu0 %v1445
    %1838 = vmatpush.bf16.msra.mxu0 %v1437
    %1839 = vmatpush.bf16.msra.mxu0 %v1429
    %1840 = vmatpush.bf16.msra.mxu0 %v1421
    %1841 = vmatmul.bf16.gmra.mxu0 %v249
    %v1842 = vpop.f32.mrf.mxu0
    %v1843 = vadd.f32 %v1829, %v1842
    %v1844 = vpop.f32.mrf.mxu0
    %v1845 = vadd.f32 %v1831, %v1844
    %1846 = vdwg.mxu0
    %1847 = vmatpush.bf16.msra.mxu0 %v1541
    %1848 = vmatpush.bf16.msra.mxu0 %v1533
    %1849 = vmatpush.bf16.msra.mxu0 %v1525
    %1850 = vmatpush.bf16.msra.mxu0 %v1517
    %1851 = vmatpush.bf16.msra.mxu0 %v1509
    %1852 = vmatpush.bf16.msra.mxu0 %v1501
    %1853 = vmatpush.bf16.msra.mxu0 %v1493
    %1854 = vmatpush.bf16.msra.mxu0 %v1485
    %1855 = vmatmul.bf16.gmra.mxu0 %v250
    %v1856 = vpop.f32.mrf.mxu0
    %v1857 = vadd.f32 %v1843, %v1856
    %v1858 = vpop.f32.mrf.mxu0
    %v1859 = vadd.f32 %v1845, %v1858
    %1860 = vdwg.mxu0
    %1861 = vmatpush.bf16.msra.mxu0 %v1350
    %1862 = vmatpush.bf16.msra.mxu0 %v1342
    %1863 = vmatpush.bf16.msra.mxu0 %v1334
    %1864 = vmatpush.bf16.msra.mxu0 %v1326
    %1865 = vmatpush.bf16.msra.mxu0 %v1318
    %1866 = vmatpush.bf16.msra.mxu0 %v1310
    %1867 = vmatpush.bf16.msra.mxu0 %v1302
    %1868 = vmatpush.bf16.msra.mxu0 %v1294
    %1869 = vmatmul.bf16.gmra.mxu0 %v247
    %v1870 = vpop.f32.mrf.mxu0
    %v1871 = vadd.f32 %v510, %v1870
    %v1872 = vpop.f32.mrf.mxu0
    %v1873 = vadd.f32 %v510, %v1872
    %1874 = vdwg.mxu0
    %1875 = vmatpush.bf16.msra.mxu0 %v1414
    %1876 = vmatpush.bf16.msra.mxu0 %v1406
    %1877 = vmatpush.bf16.msra.mxu0 %v1398
    %1878 = vmatpush.bf16.msra.mxu0 %v1390
    %1879 = vmatpush.bf16.msra.mxu0 %v1382
    %1880 = vmatpush.bf16.msra.mxu0 %v1374
    %1881 = vmatpush.bf16.msra.mxu0 %v1366
    %1882 = vmatpush.bf16.msra.mxu0 %v1358
    %1883 = vmatmul.bf16.gmra.mxu0 %v248
    %v1884 = vpop.f32.mrf.mxu0
    %v1885 = vadd.f32 %v1871, %v1884
    %v1886 = vpop.f32.mrf.mxu0
    %v1887 = vadd.f32 %v1873, %v1886
    %1888 = vdwg.mxu0
    %1889 = vmatpush.bf16.msra.mxu0 %v1478
    %1890 = vmatpush.bf16.msra.mxu0 %v1470
    %1891 = vmatpush.bf16.msra.mxu0 %v1462
    %1892 = vmatpush.bf16.msra.mxu0 %v1454
    %1893 = vmatpush.bf16.msra.mxu0 %v1446
    %1894 = vmatpush.bf16.msra.mxu0 %v1438
    %1895 = vmatpush.bf16.msra.mxu0 %v1430
    %1896 = vmatpush.bf16.msra.mxu0 %v1422
    %1897 = vmatmul.bf16.gmra.mxu0 %v249
    %v1898 = vpop.f32.mrf.mxu0
    %v1899 = vadd.f32 %v1885, %v1898
    %v1900 = vpop.f32.mrf.mxu0
    %v1901 = vadd.f32 %v1887, %v1900
    %1902 = vdwg.mxu0
    %1903 = vmatpush.bf16.msra.mxu0 %v1542
    %1904 = vmatpush.bf16.msra.mxu0 %v1534
    %1905 = vmatpush.bf16.msra.mxu0 %v1526
    %1906 = vmatpush.bf16.msra.mxu0 %v1518
    %1907 = vmatpush.bf16.msra.mxu0 %v1510
    %1908 = vmatpush.bf16.msra.mxu0 %v1502
    %1909 = vmatpush.bf16.msra.mxu0 %v1494
    %1910 = vmatpush.bf16.msra.mxu0 %v1486
    %1911 = vmatmul.bf16.gmra.mxu0 %v250
    %v1912 = vpop.f32.mrf.mxu0
    %v1913 = vadd.f32 %v1899, %v1912
    %v1914 = vpop.f32.mrf.mxu0
    %v1915 = vadd.f32 %v1901, %v1914
    %1916 = vdwg.mxu0
    %1917 = vmatpush.bf16.msra.mxu0 %v1351
    %1918 = vmatpush.bf16.msra.mxu0 %v1343
    %1919 = vmatpush.bf16.msra.mxu0 %v1335
    %1920 = vmatpush.bf16.msra.mxu0 %v1327
    %1921 = vmatpush.bf16.msra.mxu0 %v1319
    %1922 = vmatpush.bf16.msra.mxu0 %v1311
    %1923 = vmatpush.bf16.msra.mxu0 %v1303
    %1924 = vmatpush.bf16.msra.mxu0 %v1295
    %1925 = vmatmul.bf16.gmra.mxu0 %v247
    %v1926 = vpop.f32.mrf.mxu0
    %v1927 = vadd.f32 %v511, %v1926
    %v1928 = vpop.f32.mrf.mxu0
    %v1929 = vadd.f32 %v511, %v1928
    %1930 = vdwg.mxu0
    %1931 = vmatpush.bf16.msra.mxu0 %v1415
    %1932 = vmatpush.bf16.msra.mxu0 %v1407
    %1933 = vmatpush.bf16.msra.mxu0 %v1399
    %1934 = vmatpush.bf16.msra.mxu0 %v1391
    %1935 = vmatpush.bf16.msra.mxu0 %v1383
    %1936 = vmatpush.bf16.msra.mxu0 %v1375
    %1937 = vmatpush.bf16.msra.mxu0 %v1367
    %1938 = vmatpush.bf16.msra.mxu0 %v1359
    %1939 = vmatmul.bf16.gmra.mxu0 %v248
    %v1940 = vpop.f32.mrf.mxu0
    %v1941 = vadd.f32 %v1927, %v1940
    %v1942 = vpop.f32.mrf.mxu0
    %v1943 = vadd.f32 %v1929, %v1942
    %1944 = vdwg.mxu0
    %1945 = vmatpush.bf16.msra.mxu0 %v1479
    %1946 = vmatpush.bf16.msra.mxu0 %v1471
    %1947 = vmatpush.bf16.msra.mxu0 %v1463
    %1948 = vmatpush.bf16.msra.mxu0 %v1455
    %1949 = vmatpush.bf16.msra.mxu0 %v1447
    %1950 = vmatpush.bf16.msra.mxu0 %v1439
    %1951 = vmatpush.bf16.msra.mxu0 %v1431
    %1952 = vmatpush.bf16.msra.mxu0 %v1423
    %1953 = vmatmul.bf16.gmra.mxu0 %v249
    %v1954 = vpop.f32.mrf.mxu0
    %v1955 = vadd.f32 %v1941, %v1954
    %v1956 = vpop.f32.mrf.mxu0
    %v1957 = vadd.f32 %v1943, %v1956
    %1958 = vdwg.mxu0
    %1959 = vmatpush.bf16.msra.mxu0 %v1543
    %1960 = vmatpush.bf16.msra.mxu0 %v1535
    %1961 = vmatpush.bf16.msra.mxu0 %v1527
    %1962 = vmatpush.bf16.msra.mxu0 %v1519
    %1963 = vmatpush.bf16.msra.mxu0 %v1511
    %1964 = vmatpush.bf16.msra.mxu0 %v1503
    %1965 = vmatpush.bf16.msra.mxu0 %v1495
    %1966 = vmatpush.bf16.msra.mxu0 %v1487
    %1967 = vmatmul.bf16.gmra.mxu0 %v250
    %v1968 = vpop.f32.mrf.mxu0
    %v1969 = vadd.f32 %v1955, %v1968
    %v1970 = vpop.f32.mrf.mxu0
    %v1971 = vadd.f32 %v1957, %v1970
    %1972 = vdwg.mxu0
    %1973 = vmatpush.bf16.msra.mxu0 %v1352
    %1974 = vmatpush.bf16.msra.mxu0 %v1344
    %1975 = vmatpush.bf16.msra.mxu0 %v1336
    %1976 = vmatpush.bf16.msra.mxu0 %v1328
    %1977 = vmatpush.bf16.msra.mxu0 %v1320
    %1978 = vmatpush.bf16.msra.mxu0 %v1312
    %1979 = vmatpush.bf16.msra.mxu0 %v1304
    %1980 = vmatpush.bf16.msra.mxu0 %v1296
    %1981 = vmatmul.bf16.gmra.mxu0 %v247
    %v1982 = vpop.f32.mrf.mxu0
    %v1983 = vadd.f32 %v512, %v1982
    %v1984 = vpop.f32.mrf.mxu0
    %v1985 = vadd.f32 %v512, %v1984
    %1986 = vdwg.mxu0
    %1987 = vmatpush.bf16.msra.mxu0 %v1416
    %1988 = vmatpush.bf16.msra.mxu0 %v1408
    %1989 = vmatpush.bf16.msra.mxu0 %v1400
    %1990 = vmatpush.bf16.msra.mxu0 %v1392
    %1991 = vmatpush.bf16.msra.mxu0 %v1384
    %1992 = vmatpush.bf16.msra.mxu0 %v1376
    %1993 = vmatpush.bf16.msra.mxu0 %v1368
    %1994 = vmatpush.bf16.msra.mxu0 %v1360
    %1995 = vmatmul.bf16.gmra.mxu0 %v248
    %v1996 = vpop.f32.mrf.mxu0
    %v1997 = vadd.f32 %v1983, %v1996
    %v1998 = vpop.f32.mrf.mxu0
    %v1999 = vadd.f32 %v1985, %v1998
    %2000 = vdwg.mxu0
    %2001 = vmatpush.bf16.msra.mxu0 %v1480
    %2002 = vmatpush.bf16.msra.mxu0 %v1472
    %2003 = vmatpush.bf16.msra.mxu0 %v1464
    %2004 = vmatpush.bf16.msra.mxu0 %v1456
    %2005 = vmatpush.bf16.msra.mxu0 %v1448
    %2006 = vmatpush.bf16.msra.mxu0 %v1440
    %2007 = vmatpush.bf16.msra.mxu0 %v1432
    %2008 = vmatpush.bf16.msra.mxu0 %v1424
    %2009 = vmatmul.bf16.gmra.mxu0 %v249
    %v2010 = vpop.f32.mrf.mxu0
    %v2011 = vadd.f32 %v1997, %v2010
    %v2012 = vpop.f32.mrf.mxu0
    %v2013 = vadd.f32 %v1999, %v2012
    %2014 = vdwg.mxu0
    %2015 = vmatpush.bf16.msra.mxu0 %v1544
    %2016 = vmatpush.bf16.msra.mxu0 %v1536
    %2017 = vmatpush.bf16.msra.mxu0 %v1528
    %2018 = vmatpush.bf16.msra.mxu0 %v1520
    %2019 = vmatpush.bf16.msra.mxu0 %v1512
    %2020 = vmatpush.bf16.msra.mxu0 %v1504
    %2021 = vmatpush.bf16.msra.mxu0 %v1496
    %2022 = vmatpush.bf16.msra.mxu0 %v1488
    %2023 = vmatmul.bf16.gmra.mxu0 %v250
    %v2024 = vpop.f32.mrf.mxu0
    %v2025 = vadd.f32 %v2011, %v2024
    %v2026 = vpop.f32.mrf.mxu0
    %v2027 = vadd.f32 %v2013, %v2026
    %2028 = vdwg.mxu0
    %2029 = vmatpush.bf16.msra.mxu0 %v1353
    %2030 = vmatpush.bf16.msra.mxu0 %v1345
    %2031 = vmatpush.bf16.msra.mxu0 %v1337
    %2032 = vmatpush.bf16.msra.mxu0 %v1329
    %2033 = vmatpush.bf16.msra.mxu0 %v1321
    %2034 = vmatpush.bf16.msra.mxu0 %v1313
    %2035 = vmatpush.bf16.msra.mxu0 %v1305
    %2036 = vmatpush.bf16.msra.mxu0 %v1297
    %2037 = vmatmul.bf16.gmra.mxu0 %v247
    %v2038 = vpop.f32.mrf.mxu0
    %v2039 = vadd.f32 %v513, %v2038
    %v2040 = vpop.f32.mrf.mxu0
    %v2041 = vadd.f32 %v513, %v2040
    %2042 = vdwg.mxu0
    %2043 = vmatpush.bf16.msra.mxu0 %v1417
    %2044 = vmatpush.bf16.msra.mxu0 %v1409
    %2045 = vmatpush.bf16.msra.mxu0 %v1401
    %2046 = vmatpush.bf16.msra.mxu0 %v1393
    %2047 = vmatpush.bf16.msra.mxu0 %v1385
    %2048 = vmatpush.bf16.msra.mxu0 %v1377
    %2049 = vmatpush.bf16.msra.mxu0 %v1369
    %2050 = vmatpush.bf16.msra.mxu0 %v1361
    %2051 = vmatmul.bf16.gmra.mxu0 %v248
    %v2052 = vpop.f32.mrf.mxu0
    %v2053 = vadd.f32 %v2039, %v2052
    %v2054 = vpop.f32.mrf.mxu0
    %v2055 = vadd.f32 %v2041, %v2054
    %2056 = vdwg.mxu0
    %2057 = vmatpush.bf16.msra.mxu0 %v1481
    %2058 = vmatpush.bf16.msra.mxu0 %v1473
    %2059 = vmatpush.bf16.msra.mxu0 %v1465
    %2060 = vmatpush.bf16.msra.mxu0 %v1457
    %2061 = vmatpush.bf16.msra.mxu0 %v1449
    %2062 = vmatpush.bf16.msra.mxu0 %v1441
    %2063 = vmatpush.bf16.msra.mxu0 %v1433
    %2064 = vmatpush.bf16.msra.mxu0 %v1425
    %2065 = vmatmul.bf16.gmra.mxu0 %v249
    %v2066 = vpop.f32.mrf.mxu0
    %v2067 = vadd.f32 %v2053, %v2066
    %v2068 = vpop.f32.mrf.mxu0
    %v2069 = vadd.f32 %v2055, %v2068
    %2070 = vdwg.mxu0
    %2071 = vmatpush.bf16.msra.mxu0 %v1545
    %2072 = vmatpush.bf16.msra.mxu0 %v1537
    %2073 = vmatpush.bf16.msra.mxu0 %v1529
    %2074 = vmatpush.bf16.msra.mxu0 %v1521
    %2075 = vmatpush.bf16.msra.mxu0 %v1513
    %2076 = vmatpush.bf16.msra.mxu0 %v1505
    %2077 = vmatpush.bf16.msra.mxu0 %v1497
    %2078 = vmatpush.bf16.msra.mxu0 %v1489
    %2079 = vmatmul.bf16.gmra.mxu0 %v250
    %v2080 = vpop.f32.mrf.mxu0
    %v2081 = vadd.f32 %v2067, %v2080
    %v2082 = vpop.f32.mrf.mxu0
    %v2083 = vadd.f32 %v2069, %v2082
    %2084 = vdwg.mxu0
    %2085 = vmatpush.bf16.msra.mxu0 %v1354
    %2086 = vmatpush.bf16.msra.mxu0 %v1346
    %2087 = vmatpush.bf16.msra.mxu0 %v1338
    %2088 = vmatpush.bf16.msra.mxu0 %v1330
    %2089 = vmatpush.bf16.msra.mxu0 %v1322
    %2090 = vmatpush.bf16.msra.mxu0 %v1314
    %2091 = vmatpush.bf16.msra.mxu0 %v1306
    %2092 = vmatpush.bf16.msra.mxu0 %v1298
    %2093 = vmatmul.bf16.gmra.mxu0 %v247
    %v2094 = vpop.f32.mrf.mxu0
    %v2095 = vadd.f32 %v514, %v2094
    %v2096 = vpop.f32.mrf.mxu0
    %v2097 = vadd.f32 %v514, %v2096
    %2098 = vdwg.mxu0
    %2099 = vmatpush.bf16.msra.mxu0 %v1418
    %2100 = vmatpush.bf16.msra.mxu0 %v1410
    %2101 = vmatpush.bf16.msra.mxu0 %v1402
    %2102 = vmatpush.bf16.msra.mxu0 %v1394
    %2103 = vmatpush.bf16.msra.mxu0 %v1386
    %2104 = vmatpush.bf16.msra.mxu0 %v1378
    %2105 = vmatpush.bf16.msra.mxu0 %v1370
    %2106 = vmatpush.bf16.msra.mxu0 %v1362
    %2107 = vmatmul.bf16.gmra.mxu0 %v248
    %v2108 = vpop.f32.mrf.mxu0
    %v2109 = vadd.f32 %v2095, %v2108
    %v2110 = vpop.f32.mrf.mxu0
    %v2111 = vadd.f32 %v2097, %v2110
    %2112 = vdwg.mxu0
    %2113 = vmatpush.bf16.msra.mxu0 %v1482
    %2114 = vmatpush.bf16.msra.mxu0 %v1474
    %2115 = vmatpush.bf16.msra.mxu0 %v1466
    %2116 = vmatpush.bf16.msra.mxu0 %v1458
    %2117 = vmatpush.bf16.msra.mxu0 %v1450
    %2118 = vmatpush.bf16.msra.mxu0 %v1442
    %2119 = vmatpush.bf16.msra.mxu0 %v1434
    %2120 = vmatpush.bf16.msra.mxu0 %v1426
    %2121 = vmatmul.bf16.gmra.mxu0 %v249
    %v2122 = vpop.f32.mrf.mxu0
    %v2123 = vadd.f32 %v2109, %v2122
    %v2124 = vpop.f32.mrf.mxu0
    %v2125 = vadd.f32 %v2111, %v2124
    %2126 = vdwg.mxu0
    %2127 = vmatpush.bf16.msra.mxu0 %v1546
    %2128 = vmatpush.bf16.msra.mxu0 %v1538
    %2129 = vmatpush.bf16.msra.mxu0 %v1530
    %2130 = vmatpush.bf16.msra.mxu0 %v1522
    %2131 = vmatpush.bf16.msra.mxu0 %v1514
    %2132 = vmatpush.bf16.msra.mxu0 %v1506
    %2133 = vmatpush.bf16.msra.mxu0 %v1498
    %2134 = vmatpush.bf16.msra.mxu0 %v1490
    %2135 = vmatmul.bf16.gmra.mxu0 %v250
    %v2136 = vpop.f32.mrf.mxu0
    %v2137 = vadd.f32 %v2123, %v2136
    %v2138 = vpop.f32.mrf.mxu0
    %v2139 = vadd.f32 %v2125, %v2138
    %2140 = vdwg.mxu0
    %2141 = vmatpush.bf16.msra.mxu0 %v1355
    %2142 = vmatpush.bf16.msra.mxu0 %v1347
    %2143 = vmatpush.bf16.msra.mxu0 %v1339
    %2144 = vmatpush.bf16.msra.mxu0 %v1331
    %2145 = vmatpush.bf16.msra.mxu0 %v1323
    %2146 = vmatpush.bf16.msra.mxu0 %v1315
    %2147 = vmatpush.bf16.msra.mxu0 %v1307
    %2148 = vmatpush.bf16.msra.mxu0 %v1299
    %2149 = vmatmul.bf16.gmra.mxu0 %v247
    %v2150 = vpop.f32.mrf.mxu0
    %v2151 = vadd.f32 %v515, %v2150
    %v2152 = vpop.f32.mrf.mxu0
    %v2153 = vadd.f32 %v515, %v2152
    %2154 = vdwg.mxu0
    %2155 = vmatpush.bf16.msra.mxu0 %v1419
    %2156 = vmatpush.bf16.msra.mxu0 %v1411
    %2157 = vmatpush.bf16.msra.mxu0 %v1403
    %2158 = vmatpush.bf16.msra.mxu0 %v1395
    %2159 = vmatpush.bf16.msra.mxu0 %v1387
    %2160 = vmatpush.bf16.msra.mxu0 %v1379
    %2161 = vmatpush.bf16.msra.mxu0 %v1371
    %2162 = vmatpush.bf16.msra.mxu0 %v1363
    %2163 = vmatmul.bf16.gmra.mxu0 %v248
    %v2164 = vpop.f32.mrf.mxu0
    %v2165 = vadd.f32 %v2151, %v2164
    %v2166 = vpop.f32.mrf.mxu0
    %v2167 = vadd.f32 %v2153, %v2166
    %2168 = vdwg.mxu0
    %2169 = vmatpush.bf16.msra.mxu0 %v1483
    %2170 = vmatpush.bf16.msra.mxu0 %v1475
    %2171 = vmatpush.bf16.msra.mxu0 %v1467
    %2172 = vmatpush.bf16.msra.mxu0 %v1459
    %2173 = vmatpush.bf16.msra.mxu0 %v1451
    %2174 = vmatpush.bf16.msra.mxu0 %v1443
    %2175 = vmatpush.bf16.msra.mxu0 %v1435
    %2176 = vmatpush.bf16.msra.mxu0 %v1427
    %2177 = vmatmul.bf16.gmra.mxu0 %v249
    %v2178 = vpop.f32.mrf.mxu0
    %v2179 = vadd.f32 %v2165, %v2178
    %v2180 = vpop.f32.mrf.mxu0
    %v2181 = vadd.f32 %v2167, %v2180
    %2182 = vdwg.mxu0
    %2183 = vmatpush.bf16.msra.mxu0 %v1547
    %2184 = vmatpush.bf16.msra.mxu0 %v1539
    %2185 = vmatpush.bf16.msra.mxu0 %v1531
    %2186 = vmatpush.bf16.msra.mxu0 %v1523
    %2187 = vmatpush.bf16.msra.mxu0 %v1515
    %2188 = vmatpush.bf16.msra.mxu0 %v1507
    %2189 = vmatpush.bf16.msra.mxu0 %v1499
    %2190 = vmatpush.bf16.msra.mxu0 %v1491
    %2191 = vmatmul.bf16.gmra.mxu0 %v250
    %v2192 = vpop.f32.mrf.mxu0
    %v2193 = vadd.f32 %v2179, %v2192
    %v2194 = vpop.f32.mrf.mxu0
    %v2195 = vadd.f32 %v2181, %v2194
    %2196 = vdwg.mxu0
    %2197 = vmatpush.bf16.msra.mxu0 %v1356
    %2198 = vmatpush.bf16.msra.mxu0 %v1348
    %2199 = vmatpush.bf16.msra.mxu0 %v1340
    %2200 = vmatpush.bf16.msra.mxu0 %v1332
    %2201 = vmatpush.bf16.msra.mxu0 %v1324
    %2202 = vmatpush.bf16.msra.mxu0 %v1316
    %2203 = vmatpush.bf16.msra.mxu0 %v1308
    %2204 = vmatpush.bf16.msra.mxu0 %v1300
    %2205 = vmatmul.bf16.gmra.mxu0 %v247
    %v2206 = vpop.f32.mrf.mxu0
    %v2207 = vadd.f32 %v516, %v2206
    %v2208 = vpop.f32.mrf.mxu0
    %v2209 = vadd.f32 %v516, %v2208
    %2210 = vdwg.mxu0
    %2211 = vmatpush.bf16.msra.mxu0 %v1420
    %2212 = vmatpush.bf16.msra.mxu0 %v1412
    %2213 = vmatpush.bf16.msra.mxu0 %v1404
    %2214 = vmatpush.bf16.msra.mxu0 %v1396
    %2215 = vmatpush.bf16.msra.mxu0 %v1388
    %2216 = vmatpush.bf16.msra.mxu0 %v1380
    %2217 = vmatpush.bf16.msra.mxu0 %v1372
    %2218 = vmatpush.bf16.msra.mxu0 %v1364
    %2219 = vmatmul.bf16.gmra.mxu0 %v248
    %v2220 = vpop.f32.mrf.mxu0
    %v2221 = vadd.f32 %v2207, %v2220
    %v2222 = vpop.f32.mrf.mxu0
    %v2223 = vadd.f32 %v2209, %v2222
    %2224 = vdwg.mxu0
    %2225 = vmatpush.bf16.msra.mxu0 %v1484
    %2226 = vmatpush.bf16.msra.mxu0 %v1476
    %2227 = vmatpush.bf16.msra.mxu0 %v1468
    %2228 = vmatpush.bf16.msra.mxu0 %v1460
    %2229 = vmatpush.bf16.msra.mxu0 %v1452
    %2230 = vmatpush.bf16.msra.mxu0 %v1444
    %2231 = vmatpush.bf16.msra.mxu0 %v1436
    %2232 = vmatpush.bf16.msra.mxu0 %v1428
    %2233 = vmatmul.bf16.gmra.mxu0 %v249
    %v2234 = vpop.f32.mrf.mxu0
    %v2235 = vadd.f32 %v2221, %v2234
    %v2236 = vpop.f32.mrf.mxu0
    %v2237 = vadd.f32 %v2223, %v2236
    %2238 = vdwg.mxu0
    %2239 = vmatpush.bf16.msra.mxu0 %v1548
    %2240 = vmatpush.bf16.msra.mxu0 %v1540
    %2241 = vmatpush.bf16.msra.mxu0 %v1532
    %2242 = vmatpush.bf16.msra.mxu0 %v1524
    %2243 = vmatpush.bf16.msra.mxu0 %v1516
    %2244 = vmatpush.bf16.msra.mxu0 %v1508
    %2245 = vmatpush.bf16.msra.mxu0 %v1500
    %2246 = vmatpush.bf16.msra.mxu0 %v1492
    %2247 = vmatmul.bf16.gmra.mxu0 %v250
    %v2248 = vpop.f32.mrf.mxu0
    %v2249 = vadd.f32 %v2235, %v2248
    %v2250 = vpop.f32.mrf.mxu0
    %v2251 = vadd.f32 %v2237, %v2250
    %2252 = vdwg.mxu0
    %v2253 = vmax.f32 %v1857, 0.0
    %v2254 = vmax.f32 %v1913, 0.0
    %v2255 = vmax.f32 %v1969, 0.0
    %v2256 = vmax.f32 %v2025, 0.0
    %v2257 = vmax.f32 %v2081, 0.0
    %v2258 = vmax.f32 %v2137, 0.0
    %v2259 = vmax.f32 %v2193, 0.0
    %v2260 = vmax.f32 %v2249, 0.0
    %v2261 = vmax.f32 %v1859, 0.0
    %v2262 = vmax.f32 %v1915, 0.0
    %v2263 = vmax.f32 %v1971, 0.0
    %v2264 = vmax.f32 %v2027, 0.0
    %v2265 = vmax.f32 %v2083, 0.0
    %v2266 = vmax.f32 %v2139, 0.0
    %v2267 = vmax.f32 %v2195, 0.0
    %v2268 = vmax.f32 %v2251, 0.0
    %v2269 = vpack.c.bf16 %v2261, %v2253
    %v2270 = vpack.c.bf16 %v2262, %v2254
    %v2271 = vpack.c.bf16 %v2263, %v2255
    %v2272 = vpack.c.bf16 %v2264, %v2256
    %v2273 = vpack.c.bf16 %v2265, %v2257
    %v2274 = vpack.c.bf16 %v2266, %v2258
    %v2275 = vpack.c.bf16 %v2267, %v2259
    %v2276 = vpack.c.bf16 %v2268, %v2260
    %v2277 = vld [vmem:[#allocation11] sm:$0xf]
    %v2278 = vld [vmem:[#allocation11 + $0x4] sm:$0xf]
    %v2279 = vld [vmem:[#allocation11 + $0x8] sm:$0xf]
    %v2280 = vld [vmem:[#allocation11 + $0xc] sm:$0xf]
    %v2281 = vld [vmem:[#allocation11 + $0x10] sm:$0xf]
    %v2282 = vld [vmem:[#allocation11 + $0x14] sm:$0xf]
    %v2283 = vld [vmem:[#allocation11 + $0x18] sm:$0xf]
    %v2284 = vld [vmem:[#allocation11 + $0x1c] sm:$0xf]
    %v2285 = vld [vmem:[#allocation11 + $0x20] sm:$0xf]
    %v2286 = vld [vmem:[#allocation11 + $0x24] sm:$0xf]
    %v2287 = vld [vmem:[#allocation11 + $0x28] sm:$0xf]
    %v2288 = vld [vmem:[#allocation11 + $0x2c] sm:$0xf]
    %v2289 = vld [vmem:[#allocation11 + $0x30] sm:$0xf]
    %v2290 = vld [vmem:[#allocation11 + $0x34] sm:$0xf]
    %v2291 = vld [vmem:[#allocation11 + $0x38] sm:$0xf]
    %v2292 = vld [vmem:[#allocation11 + $0x3c] sm:$0xf]
    %v2293 = vld [vmem:[#allocation11 + $0x40] sm:$0xf]
    %v2294 = vld [vmem:[#allocation11 + $0x44] sm:$0xf]
    %v2295 = vld [vmem:[#allocation11 + $0x48] sm:$0xf]
    %v2296 = vld [vmem:[#allocation11 + $0x4c] sm:$0xf]
    %v2297 = vld [vmem:[#allocation11 + $0x50] sm:$0xf]
    %v2298 = vld [vmem:[#allocation11 + $0x54] sm:$0xf]
    %v2299 = vld [vmem:[#allocation11 + $0x58] sm:$0xf]
    %v2300 = vld [vmem:[#allocation11 + $0x5c] sm:$0xf]
    %v2301 = vld [vmem:[#allocation11 + $0x60] sm:$0xf]
    %v2302 = vld [vmem:[#allocation11 + $0x64] sm:$0xf]
    %v2303 = vld [vmem:[#allocation11 + $0x68] sm:$0xf]
    %v2304 = vld [vmem:[#allocation11 + $0x6c] sm:$0xf]
    %v2305 = vld [vmem:[#allocation11 + $0x70] sm:$0xf]
    %v2306 = vld [vmem:[#allocation11 + $0x74] sm:$0xf]
    %v2307 = vld [vmem:[#allocation11 + $0x78] sm:$0xf]
    %v2308 = vld [vmem:[#allocation11 + $0x7c] sm:$0xf]
    %v2309 = vld [vmem:[#allocation11 + $0x80] sm:$0xf]
    %v2310 = vld [vmem:[#allocation11 + $0x84] sm:$0xf]
    %v2311 = vld [vmem:[#allocation11 + $0x88] sm:$0xf]
    %v2312 = vld [vmem:[#allocation11 + $0x8c] sm:$0xf]
    %v2313 = vld [vmem:[#allocation11 + $0x90] sm:$0xf]
    %v2314 = vld [vmem:[#allocation11 + $0x94] sm:$0xf]
    %v2315 = vld [vmem:[#allocation11 + $0x98] sm:$0xf]
    %v2316 = vld [vmem:[#allocation11 + $0x9c] sm:$0xf]
    %v2317 = vld [vmem:[#allocation11 + $0xa0] sm:$0xf]
    %v2318 = vld [vmem:[#allocation11 + $0xa4] sm:$0xf]
    %v2319 = vld [vmem:[#allocation11 + $0xa8] sm:$0xf]
    %v2320 = vld [vmem:[#allocation11 + $0xac] sm:$0xf]
    %v2321 = vld [vmem:[#allocation11 + $0xb0] sm:$0xf]
    %v2322 = vld [vmem:[#allocation11 + $0xb4] sm:$0xf]
    %v2323 = vld [vmem:[#allocation11 + $0xb8] sm:$0xf]
    %v2324 = vld [vmem:[#allocation11 + $0xbc] sm:$0xf]
    %v2325 = vld [vmem:[#allocation11 + $0xc0] sm:$0xf]
    %v2326 = vld [vmem:[#allocation11 + $0xc4] sm:$0xf]
    %v2327 = vld [vmem:[#allocation11 + $0xc8] sm:$0xf]
    %v2328 = vld [vmem:[#allocation11 + $0xcc] sm:$0xf]
    %v2329 = vld [vmem:[#allocation11 + $0xd0] sm:$0xf]
    %v2330 = vld [vmem:[#allocation11 + $0xd4] sm:$0xf]
    %v2331 = vld [vmem:[#allocation11 + $0xd8] sm:$0xf]
    %v2332 = vld [vmem:[#allocation11 + $0xdc] sm:$0xf]
    %v2333 = vld [vmem:[#allocation11 + $0xe0] sm:$0xf]
    %v2334 = vld [vmem:[#allocation11 + $0xe4] sm:$0xf]
    %v2335 = vld [vmem:[#allocation11 + $0xe8] sm:$0xf]
    %v2336 = vld [vmem:[#allocation11 + $0xec] sm:$0xf]
    %v2337 = vld [vmem:[#allocation11 + $0xf0] sm:$0xf]
    %v2338 = vld [vmem:[#allocation11 + $0xf4] sm:$0xf]
    %v2339 = vld [vmem:[#allocation11 + $0xf8] sm:$0xf]
    %v2340 = vld [vmem:[#allocation11 + $0xfc] sm:$0xf]
    %v2341 = vld [vmem:[#allocation11 + $0x100] sm:$0xf]
    %v2342 = vld [vmem:[#allocation11 + $0x104] sm:$0xf]
    %v2343 = vld [vmem:[#allocation11 + $0x108] sm:$0xf]
    %v2344 = vld [vmem:[#allocation11 + $0x10c] sm:$0xf]
    %v2345 = vld [vmem:[#allocation11 + $0x110] sm:$0xf]
    %v2346 = vld [vmem:[#allocation11 + $0x114] sm:$0xf]
    %v2347 = vld [vmem:[#allocation11 + $0x118] sm:$0xf]
    %v2348 = vld [vmem:[#allocation11 + $0x11c] sm:$0xf]
    %v2349 = vld [vmem:[#allocation11 + $0x120] sm:$0xf]
    %v2350 = vld [vmem:[#allocation11 + $0x124] sm:$0xf]
    %v2351 = vld [vmem:[#allocation11 + $0x128] sm:$0xf]
    %v2352 = vld [vmem:[#allocation11 + $0x12c] sm:$0xf]
    %v2353 = vld [vmem:[#allocation11 + $0x130] sm:$0xf]
    %v2354 = vld [vmem:[#allocation11 + $0x134] sm:$0xf]
    %v2355 = vld [vmem:[#allocation11 + $0x138] sm:$0xf]
    %v2356 = vld [vmem:[#allocation11 + $0x13c] sm:$0xf]
    %v2357 = vld [vmem:[#allocation11 + $0x140] sm:$0xf]
    %v2358 = vld [vmem:[#allocation11 + $0x144] sm:$0xf]
    %v2359 = vld [vmem:[#allocation11 + $0x148] sm:$0xf]
    %v2360 = vld [vmem:[#allocation11 + $0x14c] sm:$0xf]
    %v2361 = vld [vmem:[#allocation11 + $0x150] sm:$0xf]
    %v2362 = vld [vmem:[#allocation11 + $0x154] sm:$0xf]
    %v2363 = vld [vmem:[#allocation11 + $0x158] sm:$0xf]
    %v2364 = vld [vmem:[#allocation11 + $0x15c] sm:$0xf]
    %v2365 = vld [vmem:[#allocation11 + $0x160] sm:$0xf]
    %v2366 = vld [vmem:[#allocation11 + $0x164] sm:$0xf]
    %v2367 = vld [vmem:[#allocation11 + $0x168] sm:$0xf]
    %v2368 = vld [vmem:[#allocation11 + $0x16c] sm:$0xf]
    %v2369 = vld [vmem:[#allocation11 + $0x170] sm:$0xf]
    %v2370 = vld [vmem:[#allocation11 + $0x174] sm:$0xf]
    %v2371 = vld [vmem:[#allocation11 + $0x178] sm:$0xf]
    %v2372 = vld [vmem:[#allocation11 + $0x17c] sm:$0xf]
    %v2373 = vld [vmem:[#allocation11 + $0x180] sm:$0xf]
    %v2374 = vld [vmem:[#allocation11 + $0x184] sm:$0xf]
    %v2375 = vld [vmem:[#allocation11 + $0x188] sm:$0xf]
    %v2376 = vld [vmem:[#allocation11 + $0x18c] sm:$0xf]
    %v2377 = vld [vmem:[#allocation11 + $0x190] sm:$0xf]
    %v2378 = vld [vmem:[#allocation11 + $0x194] sm:$0xf]
    %v2379 = vld [vmem:[#allocation11 + $0x198] sm:$0xf]
    %v2380 = vld [vmem:[#allocation11 + $0x19c] sm:$0xf]
    %v2381 = vld [vmem:[#allocation11 + $0x1a0] sm:$0xf]
    %v2382 = vld [vmem:[#allocation11 + $0x1a4] sm:$0xf]
    %v2383 = vld [vmem:[#allocation11 + $0x1a8] sm:$0xf]
    %v2384 = vld [vmem:[#allocation11 + $0x1ac] sm:$0xf]
    %v2385 = vld [vmem:[#allocation11 + $0x1b0] sm:$0xf]
    %v2386 = vld [vmem:[#allocation11 + $0x1b4] sm:$0xf]
    %v2387 = vld [vmem:[#allocation11 + $0x1b8] sm:$0xf]
    %v2388 = vld [vmem:[#allocation11 + $0x1bc] sm:$0xf]
    %v2389 = vld [vmem:[#allocation11 + $0x1c0] sm:$0xf]
    %v2390 = vld [vmem:[#allocation11 + $0x1c4] sm:$0xf]
    %v2391 = vld [vmem:[#allocation11 + $0x1c8] sm:$0xf]
    %v2392 = vld [vmem:[#allocation11 + $0x1cc] sm:$0xf]
    %v2393 = vld [vmem:[#allocation11 + $0x1d0] sm:$0xf]
    %v2394 = vld [vmem:[#allocation11 + $0x1d4] sm:$0xf]
    %v2395 = vld [vmem:[#allocation11 + $0x1d8] sm:$0xf]
    %v2396 = vld [vmem:[#allocation11 + $0x1dc] sm:$0xf]
    %v2397 = vld [vmem:[#allocation11 + $0x1e0] sm:$0xf]
    %v2398 = vld [vmem:[#allocation11 + $0x1e4] sm:$0xf]
    %v2399 = vld [vmem:[#allocation11 + $0x1e8] sm:$0xf]
    %v2400 = vld [vmem:[#allocation11 + $0x1ec] sm:$0xf]
    %v2401 = vld [vmem:[#allocation11 + $0x1f0] sm:$0xf]
    %v2402 = vld [vmem:[#allocation11 + $0x1f4] sm:$0xf]
    %v2403 = vld [vmem:[#allocation11 + $0x1f8] sm:$0xf]
    %v2404 = vld [vmem:[#allocation11 + $0x1fc] sm:$0xf]
    %v2405 = vld [vmem:[%s6] sm:$0x1]
    %v2407 = vperm.slane %v2405, 0
    %v2537 = vunpack.c.l.b16 %v2277
    %v2538 = vunpack.c.l.b16 %v2278
    %v2539 = vunpack.c.l.b16 %v2279
    %v2540 = vunpack.c.l.b16 %v2280
    %v2541 = vunpack.c.l.b16 %v2281
    %v2542 = vunpack.c.l.b16 %v2282
    %v2543 = vunpack.c.l.b16 %v2283
    %v2544 = vunpack.c.l.b16 %v2284
    %v2545 = vunpack.c.l.b16 %v2285
    %v2546 = vunpack.c.l.b16 %v2286
    %v2547 = vunpack.c.l.b16 %v2287
    %v2548 = vunpack.c.l.b16 %v2288
    %v2549 = vunpack.c.l.b16 %v2289
    %v2550 = vunpack.c.l.b16 %v2290
    %v2551 = vunpack.c.l.b16 %v2291
    %v2552 = vunpack.c.l.b16 %v2292
    %v2553 = vunpack.c.l.b16 %v2293
    %v2554 = vunpack.c.l.b16 %v2294
    %v2555 = vunpack.c.l.b16 %v2295
    %v2556 = vunpack.c.l.b16 %v2296
    %v2557 = vunpack.c.l.b16 %v2297
    %v2558 = vunpack.c.l.b16 %v2298
    %v2559 = vunpack.c.l.b16 %v2299
    %v2560 = vunpack.c.l.b16 %v2300
    %v2561 = vunpack.c.l.b16 %v2301
    %v2562 = vunpack.c.l.b16 %v2302
    %v2563 = vunpack.c.l.b16 %v2303
    %v2564 = vunpack.c.l.b16 %v2304
    %v2565 = vunpack.c.l.b16 %v2305
    %v2566 = vunpack.c.l.b16 %v2306
    %v2567 = vunpack.c.l.b16 %v2307
    %v2568 = vunpack.c.l.b16 %v2308
    %v2569 = vunpack.c.l.b16 %v2309
    %v2570 = vunpack.c.l.b16 %v2310
    %v2571 = vunpack.c.l.b16 %v2311
    %v2572 = vunpack.c.l.b16 %v2312
    %v2573 = vunpack.c.l.b16 %v2313
    %v2574 = vunpack.c.l.b16 %v2314
    %v2575 = vunpack.c.l.b16 %v2315
    %v2576 = vunpack.c.l.b16 %v2316
    %v2577 = vunpack.c.l.b16 %v2317
    %v2578 = vunpack.c.l.b16 %v2318
    %v2579 = vunpack.c.l.b16 %v2319
    %v2580 = vunpack.c.l.b16 %v2320
    %v2581 = vunpack.c.l.b16 %v2321
    %v2582 = vunpack.c.l.b16 %v2322
    %v2583 = vunpack.c.l.b16 %v2323
    %v2584 = vunpack.c.l.b16 %v2324
    %v2585 = vunpack.c.l.b16 %v2325
    %v2586 = vunpack.c.l.b16 %v2326
    %v2587 = vunpack.c.l.b16 %v2327
    %v2588 = vunpack.c.l.b16 %v2328
    %v2589 = vunpack.c.l.b16 %v2329
    %v2590 = vunpack.c.l.b16 %v2330
    %v2591 = vunpack.c.l.b16 %v2331
    %v2592 = vunpack.c.l.b16 %v2332
    %v2593 = vunpack.c.l.b16 %v2333
    %v2594 = vunpack.c.l.b16 %v2334
    %v2595 = vunpack.c.l.b16 %v2335
    %v2596 = vunpack.c.l.b16 %v2336
    %v2597 = vunpack.c.l.b16 %v2337
    %v2598 = vunpack.c.l.b16 %v2338
    %v2599 = vunpack.c.l.b16 %v2339
    %v2600 = vunpack.c.l.b16 %v2340
    %v2601 = vunpack.c.l.b16 %v2341
    %v2602 = vunpack.c.l.b16 %v2342
    %v2603 = vunpack.c.l.b16 %v2343
    %v2604 = vunpack.c.l.b16 %v2344
    %v2605 = vunpack.c.l.b16 %v2345
    %v2606 = vunpack.c.l.b16 %v2346
    %v2607 = vunpack.c.l.b16 %v2347
    %v2608 = vunpack.c.l.b16 %v2348
    %v2609 = vunpack.c.l.b16 %v2349
    %v2610 = vunpack.c.l.b16 %v2350
    %v2611 = vunpack.c.l.b16 %v2351
    %v2612 = vunpack.c.l.b16 %v2352
    %v2613 = vunpack.c.l.b16 %v2353
    %v2614 = vunpack.c.l.b16 %v2354
    %v2615 = vunpack.c.l.b16 %v2355
    %v2616 = vunpack.c.l.b16 %v2356
    %v2617 = vunpack.c.l.b16 %v2357
    %v2618 = vunpack.c.l.b16 %v2358
    %v2619 = vunpack.c.l.b16 %v2359
    %v2620 = vunpack.c.l.b16 %v2360
    %v2621 = vunpack.c.l.b16 %v2361
    %v2622 = vunpack.c.l.b16 %v2362
    %v2623 = vunpack.c.l.b16 %v2363
    %v2624 = vunpack.c.l.b16 %v2364
    %v2625 = vunpack.c.l.b16 %v2365
    %v2626 = vunpack.c.l.b16 %v2366
    %v2627 = vunpack.c.l.b16 %v2367
    %v2628 = vunpack.c.l.b16 %v2368
    %v2629 = vunpack.c.l.b16 %v2369
    %v2630 = vunpack.c.l.b16 %v2370
    %v2631 = vunpack.c.l.b16 %v2371
    %v2632 = vunpack.c.l.b16 %v2372
    %v2633 = vunpack.c.l.b16 %v2373
    %v2634 = vunpack.c.l.b16 %v2374
    %v2635 = vunpack.c.l.b16 %v2375
    %v2636 = vunpack.c.l.b16 %v2376
    %v2637 = vunpack.c.l.b16 %v2377
    %v2638 = vunpack.c.l.b16 %v2378
    %v2639 = vunpack.c.l.b16 %v2379
    %v2640 = vunpack.c.l.b16 %v2380
    %v2641 = vunpack.c.l.b16 %v2381
    %v2642 = vunpack.c.l.b16 %v2382
    %v2643 = vunpack.c.l.b16 %v2383
    %v2644 = vunpack.c.l.b16 %v2384
    %v2645 = vunpack.c.l.b16 %v2385
    %v2646 = vunpack.c.l.b16 %v2386
    %v2647 = vunpack.c.l.b16 %v2387
    %v2648 = vunpack.c.l.b16 %v2388
    %v2649 = vunpack.c.l.b16 %v2389
    %v2650 = vunpack.c.l.b16 %v2390
    %v2651 = vunpack.c.l.b16 %v2391
    %v2652 = vunpack.c.l.b16 %v2392
    %v2653 = vunpack.c.l.b16 %v2393
    %v2654 = vunpack.c.l.b16 %v2394
    %v2655 = vunpack.c.l.b16 %v2395
    %v2656 = vunpack.c.l.b16 %v2396
    %v2657 = vunpack.c.l.b16 %v2397
    %v2658 = vunpack.c.l.b16 %v2398
    %v2659 = vunpack.c.l.b16 %v2399
    %v2660 = vunpack.c.l.b16 %v2400
    %v2661 = vunpack.c.l.b16 %v2401
    %v2662 = vunpack.c.l.b16 %v2402
    %v2663 = vunpack.c.l.b16 %v2403
    %v2664 = vunpack.c.l.b16 %v2404
    %v2665 = vpack.c.b16 %v2538, %v2537
    %v2666 = vpack.c.b16 %v2540, %v2539
    %v2667 = vpack.c.b16 %v2542, %v2541
    %v2668 = vpack.c.b16 %v2544, %v2543
    %v2669 = vpack.c.b16 %v2546, %v2545
    %v2670 = vpack.c.b16 %v2548, %v2547
    %v2671 = vpack.c.b16 %v2550, %v2549
    %v2672 = vpack.c.b16 %v2552, %v2551
    %v2673 = vpack.c.b16 %v2554, %v2553
    %v2674 = vpack.c.b16 %v2556, %v2555
    %v2675 = vpack.c.b16 %v2558, %v2557
    %v2676 = vpack.c.b16 %v2560, %v2559
    %v2677 = vpack.c.b16 %v2562, %v2561
    %v2678 = vpack.c.b16 %v2564, %v2563
    %v2679 = vpack.c.b16 %v2566, %v2565
    %v2680 = vpack.c.b16 %v2568, %v2567
    %v2681 = vpack.c.b16 %v2570, %v2569
    %v2682 = vpack.c.b16 %v2572, %v2571
    %v2683 = vpack.c.b16 %v2574, %v2573
    %v2684 = vpack.c.b16 %v2576, %v2575
    %v2685 = vpack.c.b16 %v2578, %v2577
    %v2686 = vpack.c.b16 %v2580, %v2579
    %v2687 = vpack.c.b16 %v2582, %v2581
    %v2688 = vpack.c.b16 %v2584, %v2583
    %v2689 = vpack.c.b16 %v2586, %v2585
    %v2690 = vpack.c.b16 %v2588, %v2587
    %v2691 = vpack.c.b16 %v2590, %v2589
    %v2692 = vpack.c.b16 %v2592, %v2591
    %v2693 = vpack.c.b16 %v2594, %v2593
    %v2694 = vpack.c.b16 %v2596, %v2595
    %v2695 = vpack.c.b16 %v2598, %v2597
    %v2696 = vpack.c.b16 %v2600, %v2599
    %v2697 = vpack.c.b16 %v2602, %v2601
    %v2698 = vpack.c.b16 %v2604, %v2603
    %v2699 = vpack.c.b16 %v2606, %v2605
    %v2700 = vpack.c.b16 %v2608, %v2607
    %v2701 = vpack.c.b16 %v2610, %v2609
    %v2702 = vpack.c.b16 %v2612, %v2611
    %v2703 = vpack.c.b16 %v2614, %v2613
    %v2704 = vpack.c.b16 %v2616, %v2615
    %v2705 = vpack.c.b16 %v2618, %v2617
    %v2706 = vpack.c.b16 %v2620, %v2619
    %v2707 = vpack.c.b16 %v2622, %v2621
    %v2708 = vpack.c.b16 %v2624, %v2623
    %v2709 = vpack.c.b16 %v2626, %v2625
    %v2710 = vpack.c.b16 %v2628, %v2627
    %v2711 = vpack.c.b16 %v2630, %v2629
    %v2712 = vpack.c.b16 %v2632, %v2631
    %v2713 = vpack.c.b16 %v2634, %v2633
    %v2714 = vpack.c.b16 %v2636, %v2635
    %v2715 = vpack.c.b16 %v2638, %v2637
    %v2716 = vpack.c.b16 %v2640, %v2639
    %v2717 = vpack.c.b16 %v2642, %v2641
    %v2718 = vpack.c.b16 %v2644, %v2643
    %v2719 = vpack.c.b16 %v2646, %v2645
    %v2720 = vpack.c.b16 %v2648, %v2647
    %v2721 = vpack.c.b16 %v2650, %v2649
    %v2722 = vpack.c.b16 %v2652, %v2651
    %v2723 = vpack.c.b16 %v2654, %v2653
    %v2724 = vpack.c.b16 %v2656, %v2655
    %v2725 = vpack.c.b16 %v2658, %v2657
    %v2726 = vpack.c.b16 %v2660, %v2659
    %v2727 = vpack.c.b16 %v2662, %v2661
    %v2728 = vpack.c.b16 %v2664, %v2663
    %2793 = vmatpush.bf16.msra.mxu0 %v2672
    %2794 = vmatpush.bf16.msra.mxu0 %v2671
    %2795 = vmatpush.bf16.msra.mxu0 %v2670
    %2796 = vmatpush.bf16.msra.mxu0 %v2669
    %2797 = vmatpush.bf16.msra.mxu0 %v2668
    %2798 = vmatpush.bf16.msra.mxu0 %v2667
    %2799 = vmatpush.bf16.msra.mxu0 %v2666
    %2800 = vmatpush.bf16.msra.mxu0 %v2665
    %2801 = vmatmul.bf16.gmra.mxu0 %v2269
    %v2802 = vpop.f32.mrf.mxu0
    %v2803 = vadd.f32 %v2407, %v2802
    %v2804 = vpop.f32.mrf.mxu0
    %v2805 = vadd.f32 %v2407, %v2804
    %2806 = vdwg.mxu0
    %2807 = vmatpush.bf16.msra.mxu0 %v2680
    %2808 = vmatpush.bf16.msra.mxu0 %v2679
    %2809 = vmatpush.bf16.msra.mxu0 %v2678
    %2810 = vmatpush.bf16.msra.mxu0 %v2677
    %2811 = vmatpush.bf16.msra.mxu0 %v2676
    %2812 = vmatpush.bf16.msra.mxu0 %v2675
    %2813 = vmatpush.bf16.msra.mxu0 %v2674
    %2814 = vmatpush.bf16.msra.mxu0 %v2673
    %2815 = vmatmul.bf16.gmra.mxu0 %v2270
    %v2816 = vpop.f32.mrf.mxu0
    %v2817 = vadd.f32 %v2803, %v2816
    %v2818 = vpop.f32.mrf.mxu0
    %v2819 = vadd.f32 %v2805, %v2818
    %2820 = vdwg.mxu0
    %2821 = vmatpush.bf16.msra.mxu0 %v2688
    %2822 = vmatpush.bf16.msra.mxu0 %v2687
    %2823 = vmatpush.bf16.msra.mxu0 %v2686
    %2824 = vmatpush.bf16.msra.mxu0 %v2685
    %2825 = vmatpush.bf16.msra.mxu0 %v2684
    %2826 = vmatpush.bf16.msra.mxu0 %v2683
    %2827 = vmatpush.bf16.msra.mxu0 %v2682
    %2828 = vmatpush.bf16.msra.mxu0 %v2681
    %2829 = vmatmul.bf16.gmra.mxu0 %v2271
    %v2830 = vpop.f32.mrf.mxu0
    %v2831 = vadd.f32 %v2817, %v2830
    %v2832 = vpop.f32.mrf.mxu0
    %v2833 = vadd.f32 %v2819, %v2832
    %2834 = vdwg.mxu0
    %2835 = vmatpush.bf16.msra.mxu0 %v2696
    %2836 = vmatpush.bf16.msra.mxu0 %v2695
    %2837 = vmatpush.bf16.msra.mxu0 %v2694
    %2838 = vmatpush.bf16.msra.mxu0 %v2693
    %2839 = vmatpush.bf16.msra.mxu0 %v2692
    %2840 = vmatpush.bf16.msra.mxu0 %v2691
    %2841 = vmatpush.bf16.msra.mxu0 %v2690
    %2842 = vmatpush.bf16.msra.mxu0 %v2689
    %2843 = vmatmul.bf16.gmra.mxu0 %v2272
    %v2844 = vpop.f32.mrf.mxu0
    %v2845 = vadd.f32 %v2831, %v2844
    %v2846 = vpop.f32.mrf.mxu0
    %v2847 = vadd.f32 %v2833, %v2846
    %2848 = vdwg.mxu0
    %2849 = vmatpush.bf16.msra.mxu0 %v2704
    %2850 = vmatpush.bf16.msra.mxu0 %v2703
    %2851 = vmatpush.bf16.msra.mxu0 %v2702
    %2852 = vmatpush.bf16.msra.mxu0 %v2701
    %2853 = vmatpush.bf16.msra.mxu0 %v2700
    %2854 = vmatpush.bf16.msra.mxu0 %v2699
    %2855 = vmatpush.bf16.msra.mxu0 %v2698
    %2856 = vmatpush.bf16.msra.mxu0 %v2697
    %2857 = vmatmul.bf16.gmra.mxu0 %v2273
    %v2858 = vpop.f32.mrf.mxu0
    %v2859 = vadd.f32 %v2845, %v2858
    %v2860 = vpop.f32.mrf.mxu0
    %v2861 = vadd.f32 %v2847, %v2860
    %2862 = vdwg.mxu0
    %2863 = vmatpush.bf16.msra.mxu0 %v2712
    %2864 = vmatpush.bf16.msra.mxu0 %v2711
    %2865 = vmatpush.bf16.msra.mxu0 %v2710
    %2866 = vmatpush.bf16.msra.mxu0 %v2709
    %2867 = vmatpush.bf16.msra.mxu0 %v2708
    %2868 = vmatpush.bf16.msra.mxu0 %v2707
    %2869 = vmatpush.bf16.msra.mxu0 %v2706
    %2870 = vmatpush.bf16.msra.mxu0 %v2705
    %2871 = vmatmul.bf16.gmra.mxu0 %v2274
    %v2872 = vpop.f32.mrf.mxu0
    %v2873 = vadd.f32 %v2859, %v2872
    %v2874 = vpop.f32.mrf.mxu0
    %v2875 = vadd.f32 %v2861, %v2874
    %2876 = vdwg.mxu0
    %2877 = vmatpush.bf16.msra.mxu0 %v2720
    %2878 = vmatpush.bf16.msra.mxu0 %v2719
    %2879 = vmatpush.bf16.msra.mxu0 %v2718
    %2880 = vmatpush.bf16.msra.mxu0 %v2717
    %2881 = vmatpush.bf16.msra.mxu0 %v2716
    %2882 = vmatpush.bf16.msra.mxu0 %v2715
    %2883 = vmatpush.bf16.msra.mxu0 %v2714
    %2884 = vmatpush.bf16.msra.mxu0 %v2713
    %2885 = vmatmul.bf16.gmra.mxu0 %v2275
    %v2886 = vpop.f32.mrf.mxu0
    %v2887 = vadd.f32 %v2873, %v2886
    %v2888 = vpop.f32.mrf.mxu0
    %v2889 = vadd.f32 %v2875, %v2888
    %2890 = vdwg.mxu0
    %2891 = vmatpush.bf16.msra.mxu0 %v2728
    %2892 = vmatpush.bf16.msra.mxu0 %v2727
    %2893 = vmatpush.bf16.msra.mxu0 %v2726
    %2894 = vmatpush.bf16.msra.mxu0 %v2725
    %2895 = vmatpush.bf16.msra.mxu0 %v2724
    %2896 = vmatpush.bf16.msra.mxu0 %v2723
    %2897 = vmatpush.bf16.msra.mxu0 %v2722
    %2898 = vmatpush.bf16.msra.mxu0 %v2721
    %2899 = vmatmul.bf16.gmra.mxu0 %v2276
    %v2900 = vpop.f32.mrf.mxu0
    %v2901 = vadd.f32 %v2887, %v2900
    %v2902 = vpop.f32.mrf.mxu0
    %v2903 = vadd.f32 %v2889, %v2902
    %2904 = vdwg.mxu0
    %2905 = vst [vmem:[#allocation13] sm:$0xff] %v2901
    %2906 = vst [vmem:[#allocation13 + $0x8] sm:$0xff] %v2903
    // Predicated region
    $region54: #{tpu_custom_call.1} parent=1 // pred_check
      _
    $region55: #{tpu_custom_call.1} parent=1 // pred_check_branch
      %2908 = sbr.rel (0) target = $region57
    $region56: #{tpu_custom_call.1} parent=1 // pred_region
      %2910 = vsyncadd [#allocation4], 224
      %s2911 = sshll.u32 [#allocation13], 4
      %s2912 = int_to_ptr.vmem [resolvable:$true] %s2911
      %s2913 = sshll.u32 %s7, 4
      %s2914 = int_to_ptr.hbm [resolvable:$true] %s2913
      %2919 = dma.vmem_to_hbm [thread:$0]  %s2912, 32, %s2914, [#allocation4], 32, 32, 2
    $region57: #{tpu_custom_call.1} parent=1 // pred_fallthru
      _
    // Predicated region
    $region58: #{tpu_custom_call.1} parent=1 // pred_check
      _
    $region59: #{tpu_custom_call.1} parent=1 // pred_check_branch
      %2921 = sbr.rel (0) target = $region61
    $region60: #{tpu_custom_call.1} parent=1 // pred_region
      %2923 = dma.done [#allocation4], 256
    $region61: #{tpu_custom_call.1} parent=1 // pred_fallthru
      _
    %2924 = vsyncpa [#allocation3], 1
    %2925 = vsyncpa [#allocation6], 1
    %2926 = vsyncpa [#allocation9], 1
    %2927 = vsyncpa [#allocation12], 1
    %2928 = vsyncpa [#allocation4], 1

</llo_original>
